<compile_context>
chip_gen: v5e
topology: v5e:2x2
jax: 0.10.0
libtpu: 0.0.40
codegen_flags: <defaults>
</compile_context>

<pallas_src>
import functools

import jax
import jax.numpy as jnp
from jax.experimental import pallas as pl
from jax.experimental.pallas import tpu as pltpu

_LN_EPS = 1e-5


# ---------------------------------------------------------------------------
# Fused decoder-layer kernel (single invocation, everything stays in VMEM)
# ---------------------------------------------------------------------------

def _decoder_layer_kernel(
    tgt_ref, qpos_ref, mem_ref, pos_ref,          # activations, torch (L, B, E) layout
    wqkv_ref, wo_ref, w1_ref, b1_ref, w2_ref, vecs_ref,   # packed parameters
    out_ref,                                      # (L, B, E)
    s_tgt, s_qpos, s_mem, s_kin, s_ctx,           # VMEM scratch
    *, nhead, eps,
):
    f32 = jnp.float32
    Lq, B, E = tgt_ref.shape
    Lk = mem_ref.shape[0]
    dh = E // nhead

    # ---- (L, B, E) -> batch-major (B*L, E) staging (replaces wrapper transposes)
    for b in range(B):
        rq = slice(b * Lq, (b + 1) * Lq)
        rk = slice(b * Lk, (b + 1) * Lk)
        s_tgt[rq, :] = tgt_ref[:, b, :].astype(f32)
        s_qpos[rq, :] = qpos_ref[:, b, :].astype(f32)
        m_b = mem_ref[:, b, :].astype(f32)
        s_mem[rk, :] = m_b
        s_kin[rk, :] = m_b + pos_ref[:, b, :].astype(f32)

    tgt = s_tgt[...]                # (B*Lq, E)
    qpos = s_qpos[...]              # (B*Lq, E)

    def vrow(i):                    # one packed (1, E) f32 bias / LN vector
        return vecs_ref[i:i + 1, :]

    def layer_norm(x, gi, bi):
        mu = jnp.mean(x, axis=-1, keepdims=True)
        c = x - mu
        var = jnp.mean(c * c, axis=-1, keepdims=True)
        return c * jax.lax.rsqrt(var + eps) * vrow(gi) + vrow(bi)

    def mha(q_in, k_in, v_in, w_off, wo_idx, b_base):
        # q_in: (B*Lq, E) batch-major; k_in / v_in: (B*Lkv, E) batch-major.
        lkv = k_in.shape[0] // B
        wq = wqkv_ref[w_off + 0]    # (E, E); 1/sqrt(dh) already folded in
        wk = wqkv_ref[w_off + 1]
        wv = wqkv_ref[w_off + 2]
        # Full-width projections: one (N,E)@(E,E) matmul per tensor.
        q2 = jnp.dot(q_in.astype(wq.dtype), wq, preferred_element_type=f32) + vrow(b_base + 0)
        k2 = jnp.dot(k_in.astype(wk.dtype), wk, preferred_element_type=f32) + vrow(b_base + 1)
        v2 = jnp.dot(v_in.astype(wv.dtype), wv, preferred_element_type=f32) + vrow(b_base + 2)
        # Scores / context: batched over B, statically unrolled over heads.
        # TODO(synk): fold the head loop into a single (B,H)-batched dot_general
        #             for production sizes.
        for h in range(nhead):
            sl = slice(h * dh, (h + 1) * dh)
            qh = q2[:, sl].reshape(B, Lq, dh)
            kh = k2[:, sl].reshape(B, lkv, dh)
            vh = v2[:, sl].reshape(B, lkv, dh)
            s = jax.lax.dot_general(
                qh, kh, (((2,), (2,)), ((0,), (0,))),
                preferred_element_type=f32)                      # (B, Lq, lkv)
            m = jnp.max(s, axis=-1, keepdims=True)
            p = jnp.exp(s - m)
            p = p / jnp.sum(p, axis=-1, keepdims=True)           # exact divide
            oh = jax.lax.dot_general(
                p, vh, (((2,), (1,)), ((0,), (0,))),
                preferred_element_type=f32)                      # (B, Lq, dh)
            s_ctx[:, sl] = oh.reshape(B * Lq, dh)                # head-merge buffer
        # Single full-width output projection.
        wo = wo_ref[wo_idx]
        ctx = s_ctx[...]
        return jnp.dot(ctx.astype(wo.dtype), wo, preferred_element_type=f32) + vrow(b_base + 3)

    # ---- self-attention + LN1 (q = k = tgt + query_pos, v = tgt) ----
    qk_in = tgt + qpos
    sa = mha(qk_in, qk_in, tgt, w_off=0, wo_idx=0, b_base=0)
    x = layer_norm(tgt + sa, 9, 10)

    # ---- cross-attention + LN2 (q = x + query_pos, k = mem + pos, v = mem) ----
    ca = mha(x + qpos, s_kin[...], s_mem[...], w_off=3, wo_idx=1, b_base=4)
    x = layer_norm(x + ca, 11, 12)

    # ---- feed-forward + LN3 ----
    w1 = w1_ref[...]
    h1 = jnp.dot(x.astype(w1.dtype), w1, preferred_element_type=f32) + b1_ref[...]
    h1 = jnp.maximum(h1, 0.0)                                    # relu
    w2 = w2_ref[...]
    ff = jnp.dot(h1.astype(w2.dtype), w2, preferred_element_type=f32) + vrow(8)
    x = layer_norm(x + ff, 13, 14)

    # ---- batch-major (B*Lq, E) -> native (Lq, B, E) output ----
    x = x.astype(out_ref.dtype)
    for b in range(B):
        out_ref[:, b, :] = x[b * Lq:(b + 1) * Lq, :]


# ---------------------------------------------------------------------------
# jit-ted wrapper (torch layout: sequence-first (L, B, E); zero layout HLOs)
# ---------------------------------------------------------------------------

_PARAM_ORDER = ("wqkv", "wo", "w1", "b1", "w2", "vecs")


@functools.partial(jax.jit, static_argnames=("nhead",))
def transformer_decoder_layer(tgt, memory, kparams, *, nhead, pos=None, query_pos=None):
    Lq, B, E = tgt.shape
    Lk = memory.shape[0]
    assert E % nhead == 0
    if query_pos is None:
        query_pos = jnp.zeros_like(tgt)
    if pos is None:
        pos = jnp.zeros_like(memory)

    return pl.pallas_call(
        functools.partial(_decoder_layer_kernel, nhead=nhead, eps=_LN_EPS),
        out_shape=jax.ShapeDtypeStruct((Lq, B, E), tgt.dtype),
        scratch_shapes=[
            pltpu.VMEM((B * Lq, E), jnp.float32),   # s_tgt  (batch-major tgt)
            pltpu.VMEM((B * Lq, E), jnp.float32),   # s_qpos (batch-major query_pos)
            pltpu.VMEM((B * Lk, E), jnp.float32),   # s_mem  (batch-major memory)
            pltpu.VMEM((B * Lk, E), jnp.float32),   # s_kin  (batch-major memory + pos)
            pltpu.VMEM((B * Lq, E), jnp.float32),   # s_ctx  (head-merge buffer)
        ],
    )(tgt, query_pos, memory, pos, *[kparams[k] for k in _PARAM_ORDER])


# ---------------------------------------------------------------------------
# Parameters: torch-style init + one-time conversion to the packed kernel layout
# ---------------------------------------------------------------------------

def init_torch_params(key, d_model, nhead, dim_feedforward):
    ks = jax.random.split(key, 10)
    s = 0.02
    E, F = d_model, dim_feedforward
    return {
        "sa_in_w": s * jax.random.normal(ks[0], (3 * E, E), jnp.float32),
        "sa_in_b": s * jax.random.normal(ks[1], (3 * E,), jnp.float32),
        "sa_out_w": s * jax.random.normal(ks[2], (E, E), jnp.float32),
        "sa_out_b": s * jax.random.normal(ks[3], (E,), jnp.float32),
        "ca_in_w": s * jax.random.normal(ks[4], (3 * E, E), jnp.float32),
        "ca_in_b": s * jax.random.normal(ks[5], (3 * E,), jnp.float32),
        "ca_out_w": s * jax.random.normal(ks[6], (E, E), jnp.float32),
        "ca_out_b": s * jax.random.normal(ks[7], (E,), jnp.float32),
        "w1": s * jax.random.normal(ks[8], (F, E), jnp.float32),
        "b1": jnp.zeros((F,), jnp.float32),
        "w2": s * jax.random.normal(ks[9], (E, F), jnp.float32),
        "b2": jnp.zeros((E,), jnp.float32),
        "ln1_g": jnp.ones((E,), jnp.float32), "ln1_b": jnp.zeros((E,), jnp.float32),
        "ln2_g": jnp.ones((E,), jnp.float32), "ln2_b": jnp.zeros((E,), jnp.float32),
        "ln3_g": jnp.ones((E,), jnp.float32), "ln3_b": jnp.zeros((E,), jnp.float32),
    }


def prepare_params(tp, d_model, nhead, dim_feedforward, *, matmul_dtype=jnp.float32):
    """One-time conversion of torch-layout weights to the packed kernel layout:
    pre-transposed to (K, N), 1/sqrt(dh) folded into W_q/b_q, QKV weights stacked
    into (6, E, E), out-proj weights into (2, E, E), and all (E,)-sized bias/LN
    vectors packed into a single (16, E) table.  `matmul_dtype=jnp.bfloat16`
    stores MXU operands in bf16 (accumulation stays f32 in the kernel)."""
    E, F = d_model, dim_feedforward
    dh = E // nhead
    scale = 1.0 / float(dh) ** 0.5

    def qkv_mats(in_w):
        wq, wk, wv = in_w[:E], in_w[E:2 * E], in_w[2 * E:]
        return [wq.T * scale, wk.T, wv.T]                       # each (E_in, E_out)

    wqkv = jnp.stack(qkv_mats(tp["sa_in_w"]) + qkv_mats(tp["ca_in_w"]))   # (6, E, E)
    wo = jnp.stack([tp["sa_out_w"].T, tp["ca_out_w"].T])                  # (2, E, E)

    vec_rows = [
        tp["sa_in_b"][:E] * scale, tp["sa_in_b"][E:2 * E], tp["sa_in_b"][2 * E:], tp["sa_out_b"],
        tp["ca_in_b"][:E] * scale, tp["ca_in_b"][E:2 * E], tp["ca_in_b"][2 * E:], tp["ca_out_b"],
        tp["b2"],
        tp["ln1_g"], tp["ln1_b"], tp["ln2_g"], tp["ln2_b"], tp["ln3_g"], tp["ln3_b"],
        jnp.zeros((E,), jnp.float32),                            # pad to 16 sublanes
    ]
    return {
        "wqkv": wqkv.astype(matmul_dtype),
        "wo": wo.astype(matmul_dtype),
        "w1": tp["w1"].T.astype(matmul_dtype),                   # (E, F)
        "w2": tp["w2"].T.astype(matmul_dtype),                   # (F, E)
        "b1": tp["b1"].reshape(1, F).astype(jnp.float32),
        "vecs": jnp.stack(vec_rows).astype(jnp.float32),         # (16, E)
    }


# ---------------------------------------------------------------------------
# Pure-JAX reference (PyTorch forward_post semantics) for the correctness check
# ---------------------------------------------------------------------------

def _mm(a, b):
    return jnp.matmul(a, b, precision=jax.lax.Precision.HIGHEST)


def _mha_ref(query, key, value, in_w, in_b, out_w, out_b, nhead):
    Lq, B, E = query.shape
    Lk = key.shape[0]
    dh = E // nhead
    wq, wk, wv = in_w[:E], in_w[E:2 * E], in_w[2 * E:]
    bq, bk, bv = in_b[:E], in_b[E:2 * E], in_b[2 * E:]
    q = _mm(query, wq.T) + bq
    k = _mm(key, wk.T) + bk
    v = _mm(value, wv.T) + bv

    def split(x, L):
        return x.reshape(L, B, nhead, dh).transpose(1, 2, 0, 3)  # (B,H,L,dh)

    qh, kh, vh = split(q, Lq), split(k, Lk), split(v, Lk)
    s = _mm(qh / jnp.sqrt(dh), kh.transpose(0, 1, 3, 2))         # (B,H,Lq,Lk)
    p = jax.nn.softmax(s, axis=-1)
    o = _mm(p, vh).transpose(2, 0, 1, 3).reshape(Lq, B, E)
    return _mm(o, out_w.T) + out_b


def _layer_ref(tgt, memory, tp, nhead, pos, query_pos, eps=_LN_EPS):
    def ln(x, g, b):
        m = x.mean(-1, keepdims=True)
        v = ((x - m) ** 2).mean(-1, keepdims=True)
        return (x - m) / jnp.sqrt(v + eps) * g + b

    q = tgt + query_pos
    sa = _mha_ref(q, q, tgt, tp["sa_in_w"], tp["sa_in_b"],
                  tp["sa_out_w"], tp["sa_out_b"], nhead)
    x = ln(tgt + sa, tp["ln1_g"], tp["ln1_b"])
    ca = _mha_ref(x + query_pos, memory + pos, memory,
                  tp["ca_in_w"], tp["ca_in_b"], tp["ca_out_w"], tp["ca_out_b"], nhead)
    x = ln(x + ca, tp["ln2_g"], tp["ln2_b"])
    h = jax.nn.relu(_mm(x, tp["w1"].T) + tp["b1"])
    ff = _mm(h, tp["w2"].T) + tp["b2"]
    return ln(x + ff, tp["ln3_g"], tp["ln3_b"])


# ---------------------------------------------------------------------------
# Main
# ---------------------------------------------------------------------------

if __name__ == "__main__":
    d_model, nhead, dim_feedforward = 32, 4, 64
    L_tgt, L_mem, B = 8, 16, 2

    key = jax.random.PRNGKey(0)
    k_tgt, k_mem, k_qp, k_pos, k_par = jax.random.split(key, 5)

    tgt = jax.random.normal(k_tgt, (L_tgt, B, d_model), jnp.float32)
    memory = jax.random.normal(k_mem, (L_mem, B, d_model), jnp.float32)
    query_pos = jax.random.normal(k_qp, (L_tgt, B, d_model), jnp.float32)
    pos = jax.random.normal(k_pos, (L_mem, B, d_model), jnp.float32)

    torch_params = init_torch_params(k_par, d_model, nhead, dim_feedforward)

    ref = _layer_ref(tgt, memory, torch_params, nhead, pos, query_pos)
    ref = jax.block_until_ready(ref)

    # f32 path (tight parity with the PyTorch-semantics reference)
    kparams = prepare_params(torch_params, d_model, nhead, dim_feedforward)
    out = transformer_decoder_layer(tgt, memory, kparams, nhead=nhead,
                                    pos=pos, query_pos=query_pos)
    out = jax.block_until_ready(out)
    assert out.shape == (L_tgt, B, d_model)
    assert bool(jnp.all(jnp.isfinite(out)))
    err = float(jnp.max(jnp.abs(out - ref)))
    assert bool(jnp.allclose(out, ref, rtol=2e-3, atol=2e-3)), f"f32 max abs err {err}"

    # bf16-at-the-MXU path (v6e/v7x-oriented; accumulation/LN/softmax stay f32)
    kparams_bf16 = prepare_params(torch_params, d_model, nhead, dim_feedforward,
                                  matmul_dtype=jnp.bfloat16)
    out_bf16 = transformer_decoder_layer(tgt, memory, kparams_bf16, nhead=nhead,
                                         pos=pos, query_pos=query_pos)
    out_bf16 = jax.block_until_ready(out_bf16)
    assert bool(jnp.all(jnp.isfinite(out_bf16)))
    err_bf16 = float(jnp.max(jnp.abs(out_bf16 - ref)))
    assert bool(jnp.allclose(out_bf16, ref, rtol=5e-2, atol=5e-2)), f"bf16 max abs err {err_bf16}"

    print("KERNEL_OK")
</pallas_src>

<mosaic_0001>
module attributes {stable_mosaic.version = 11 : i64} {
  func.func @_decoder_layer_kernel(%arg0: memref<8x2x32xf32, #tpu.memory_space<vmem>>, %arg1: memref<8x2x32xf32, #tpu.memory_space<vmem>>, %arg2: memref<16x2x32xf32, #tpu.memory_space<vmem>>, %arg3: memref<16x2x32xf32, #tpu.memory_space<vmem>>, %arg4: memref<6x32x32xf32, #tpu.memory_space<vmem>>, %arg5: memref<2x32x32xf32, #tpu.memory_space<vmem>>, %arg6: memref<32x64xf32, #tpu.memory_space<vmem>>, %arg7: memref<1x64xf32, #tpu.memory_space<vmem>>, %arg8: memref<64x32xf32, #tpu.memory_space<vmem>>, %arg9: memref<16x32xf32, #tpu.memory_space<vmem>>, %arg10: memref<8x2x32xf32, #tpu.memory_space<vmem>>, %arg11: memref<16x32xf32, #tpu.memory_space<vmem>>, %arg12: memref<16x32xf32, #tpu.memory_space<vmem>>, %arg13: memref<32x32xf32, #tpu.memory_space<vmem>>, %arg14: memref<32x32xf32, #tpu.memory_space<vmem>>, %arg15: memref<16x32xf32, #tpu.memory_space<vmem>>) attributes {dimension_semantics = [], scalar_prefetch = 0 : i64, scratch_operands = 5 : i64, tpu.core_type = #tpu.core_type<tc>} {
    %c0 = arith.constant 0 : index
    %c0_0 = arith.constant 0 : index
    %c0_1 = arith.constant 0 : index
    %0 = vector.load %arg0[%c0, %c0_0, %c0_1] : memref<8x2x32xf32, #tpu.memory_space<vmem>>, vector<8x1x32xf32>
    %1 = vector.shape_cast %0 : vector<8x1x32xf32> to vector<8x32xf32>
    %c0_2 = arith.constant 0 : index
    %c0_3 = arith.constant 0 : index
    %2 = vector.load %arg11[%c0_2, %c0_3] : memref<16x32xf32, #tpu.memory_space<vmem>>, vector<8x32xf32>
    tpu.vector_store %arg11[%c0_2, %c0_3], %1 {strides = array<i32>} : memref<16x32xf32, #tpu.memory_space<vmem>>, vector<8x32xf32>,
    %c0_4 = arith.constant 0 : index
    %c0_5 = arith.constant 0 : index
    %c0_6 = arith.constant 0 : index
    %3 = vector.load %arg1[%c0_4, %c0_5, %c0_6] : memref<8x2x32xf32, #tpu.memory_space<vmem>>, vector<8x1x32xf32>
    %4 = vector.shape_cast %3 : vector<8x1x32xf32> to vector<8x32xf32>
    %c0_7 = arith.constant 0 : index
    %c0_8 = arith.constant 0 : index
    %5 = vector.load %arg12[%c0_7, %c0_8] : memref<16x32xf32, #tpu.memory_space<vmem>>, vector<8x32xf32>
    tpu.vector_store %arg12[%c0_7, %c0_8], %4 {strides = array<i32>} : memref<16x32xf32, #tpu.memory_space<vmem>>, vector<8x32xf32>,
    %c0_9 = arith.constant 0 : index
    %c0_10 = arith.constant 0 : index
    %c0_11 = arith.constant 0 : index
    %6 = vector.load %arg2[%c0_9, %c0_10, %c0_11] : memref<16x2x32xf32, #tpu.memory_space<vmem>>, vector<16x1x32xf32>
    %7 = vector.shape_cast %6 : vector<16x1x32xf32> to vector<16x32xf32>
    %c0_12 = arith.constant 0 : index
    %c0_13 = arith.constant 0 : index
    %8 = vector.load %arg13[%c0_12, %c0_13] : memref<32x32xf32, #tpu.memory_space<vmem>>, vector<16x32xf32>
    tpu.vector_store %arg13[%c0_12, %c0_13], %7 {strides = array<i32>} : memref<32x32xf32, #tpu.memory_space<vmem>>, vector<16x32xf32>,
    %c0_14 = arith.constant 0 : index
    %c0_15 = arith.constant 0 : index
    %c0_16 = arith.constant 0 : index
    %9 = vector.load %arg3[%c0_14, %c0_15, %c0_16] : memref<16x2x32xf32, #tpu.memory_space<vmem>>, vector<16x1x32xf32>
    %10 = vector.shape_cast %9 : vector<16x1x32xf32> to vector<16x32xf32>
    %11 = arith.addf %7, %10 : vector<16x32xf32>
    %c0_17 = arith.constant 0 : index
    %c0_18 = arith.constant 0 : index
    %12 = vector.load %arg14[%c0_17, %c0_18] : memref<32x32xf32, #tpu.memory_space<vmem>>, vector<16x32xf32>
    tpu.vector_store %arg14[%c0_17, %c0_18], %11 {strides = array<i32>} : memref<32x32xf32, #tpu.memory_space<vmem>>, vector<16x32xf32>,
    %c0_19 = arith.constant 0 : index
    %c1 = arith.constant 1 : index
    %c0_20 = arith.constant 0 : index
    %13 = vector.load %arg0[%c0_19, %c1, %c0_20] : memref<8x2x32xf32, #tpu.memory_space<vmem>>, vector<8x1x32xf32>
    %14 = vector.shape_cast %13 : vector<8x1x32xf32> to vector<8x32xf32>
    %c8 = arith.constant 8 : index
    %c0_21 = arith.constant 0 : index
    %15 = vector.load %arg11[%c8, %c0_21] : memref<16x32xf32, #tpu.memory_space<vmem>>, vector<8x32xf32>
    tpu.vector_store %arg11[%c8, %c0_21], %14 {strides = array<i32>} : memref<16x32xf32, #tpu.memory_space<vmem>>, vector<8x32xf32>,
    %c0_22 = arith.constant 0 : index
    %c1_23 = arith.constant 1 : index
    %c0_24 = arith.constant 0 : index
    %16 = vector.load %arg1[%c0_22, %c1_23, %c0_24] : memref<8x2x32xf32, #tpu.memory_space<vmem>>, vector<8x1x32xf32>
    %17 = vector.shape_cast %16 : vector<8x1x32xf32> to vector<8x32xf32>
    %c8_25 = arith.constant 8 : index
    %c0_26 = arith.constant 0 : index
    %18 = vector.load %arg12[%c8_25, %c0_26] : memref<16x32xf32, #tpu.memory_space<vmem>>, vector<8x32xf32>
    tpu.vector_store %arg12[%c8_25, %c0_26], %17 {strides = array<i32>} : memref<16x32xf32, #tpu.memory_space<vmem>>, vector<8x32xf32>,
    %c0_27 = arith.constant 0 : index
    %c1_28 = arith.constant 1 : index
    %c0_29 = arith.constant 0 : index
    %19 = vector.load %arg2[%c0_27, %c1_28, %c0_29] : memref<16x2x32xf32, #tpu.memory_space<vmem>>, vector<16x1x32xf32>
    %20 = vector.shape_cast %19 : vector<16x1x32xf32> to vector<16x32xf32>
    %c16 = arith.constant 16 : index
    %c0_30 = arith.constant 0 : index
    %21 = vector.load %arg13[%c16, %c0_30] : memref<32x32xf32, #tpu.memory_space<vmem>>, vector<16x32xf32>
    tpu.vector_store %arg13[%c16, %c0_30], %20 {strides = array<i32>} : memref<32x32xf32, #tpu.memory_space<vmem>>, vector<16x32xf32>,
    %c0_31 = arith.constant 0 : index
    %c1_32 = arith.constant 1 : index
    %c0_33 = arith.constant 0 : index
    %22 = vector.load %arg3[%c0_31, %c1_32, %c0_33] : memref<16x2x32xf32, #tpu.memory_space<vmem>>, vector<16x1x32xf32>
    %23 = vector.shape_cast %22 : vector<16x1x32xf32> to vector<16x32xf32>
    %24 = arith.addf %20, %23 : vector<16x32xf32>
    %c16_34 = arith.constant 16 : index
    %c0_35 = arith.constant 0 : index
    %25 = vector.load %arg14[%c16_34, %c0_35] : memref<32x32xf32, #tpu.memory_space<vmem>>, vector<16x32xf32>
    tpu.vector_store %arg14[%c16_34, %c0_35], %24 {strides = array<i32>} : memref<32x32xf32, #tpu.memory_space<vmem>>, vector<16x32xf32>,
    %c0_36 = arith.constant 0 : index
    %c0_37 = arith.constant 0 : index
    %26 = vector.load %arg11[%c0_36, %c0_37] : memref<16x32xf32, #tpu.memory_space<vmem>>, vector<16x32xf32>
    %c0_38 = arith.constant 0 : index
    %c0_39 = arith.constant 0 : index
    %27 = vector.load %arg12[%c0_38, %c0_39] : memref<16x32xf32, #tpu.memory_space<vmem>>, vector<16x32xf32>
    %28 = arith.addf %26, %27 : vector<16x32xf32>
    %c0_40 = arith.constant 0 : index
    %c0_41 = arith.constant 0 : index
    %c0_42 = arith.constant 0 : index
    %29 = vector.load %arg4[%c0_40, %c0_41, %c0_42] : memref<6x32x32xf32, #tpu.memory_space<vmem>>, vector<1x32x32xf32>
    %30 = vector.shape_cast %29 : vector<1x32x32xf32> to vector<32x32xf32>
    %c1_43 = arith.constant 1 : index
    %c0_44 = arith.constant 0 : index
    %c0_45 = arith.constant 0 : index
    %31 = vector.load %arg4[%c1_43, %c0_44, %c0_45] : memref<6x32x32xf32, #tpu.memory_space<vmem>>, vector<1x32x32xf32>
    %32 = vector.shape_cast %31 : vector<1x32x32xf32> to vector<32x32xf32>
    %c2 = arith.constant 2 : index
    %c0_46 = arith.constant 0 : index
    %c0_47 = arith.constant 0 : index
    %33 = vector.load %arg4[%c2, %c0_46, %c0_47] : memref<6x32x32xf32, #tpu.memory_space<vmem>>, vector<1x32x32xf32>
    %34 = vector.shape_cast %33 : vector<1x32x32xf32> to vector<32x32xf32>
    %cst = arith.constant dense<0.000000e+00> : vector<16x32xf32>
    %35 = tpu.matmul %28, %30, %cst {dimension_numbers = #tpu.dot_dimension_numbers<[1], [0], [0], [1], [0, 0, 1, 1], [], []>} : vector<16x32xf32>, vector<32x32xf32>, vector<16x32xf32> -> vector<16x32xf32>
    %c0_48 = arith.constant 0 : index
    %c0_49 = arith.constant 0 : index
    %36 = vector.load %arg9[%c0_48, %c0_49] : memref<16x32xf32, #tpu.memory_space<vmem>>, vector<1x32xf32>
    %37 = vector.broadcast %36 : vector<1x32xf32> to vector<16x32xf32>
    %38 = arith.addf %35, %37 : vector<16x32xf32>
    %cst_50 = arith.constant dense<0.000000e+00> : vector<16x32xf32>
    %39 = tpu.matmul %28, %32, %cst_50 {dimension_numbers = #tpu.dot_dimension_numbers<[1], [0], [0], [1], [0, 0, 1, 1], [], []>} : vector<16x32xf32>, vector<32x32xf32>, vector<16x32xf32> -> vector<16x32xf32>
    %c1_51 = arith.constant 1 : index
    %c0_52 = arith.constant 0 : index
    %40 = vector.load %arg9[%c1_51, %c0_52] : memref<16x32xf32, #tpu.memory_space<vmem>>, vector<1x32xf32>
    %41 = vector.broadcast %40 : vector<1x32xf32> to vector<16x32xf32>
    %42 = arith.addf %39, %41 : vector<16x32xf32>
    %cst_53 = arith.constant dense<0.000000e+00> : vector<16x32xf32>
    %43 = tpu.matmul %26, %34, %cst_53 {dimension_numbers = #tpu.dot_dimension_numbers<[1], [0], [0], [1], [0, 0, 1, 1], [], []>} : vector<16x32xf32>, vector<32x32xf32>, vector<16x32xf32> -> vector<16x32xf32>
    %c2_54 = arith.constant 2 : index
    %c0_55 = arith.constant 0 : index
    %44 = vector.load %arg9[%c2_54, %c0_55] : memref<16x32xf32, #tpu.memory_space<vmem>>, vector<1x32xf32>
    %45 = vector.broadcast %44 : vector<1x32xf32> to vector<16x32xf32>
    %46 = arith.addf %43, %45 : vector<16x32xf32>
    %47 = vector.extract_strided_slice %38 {offsets = [0, 0], sizes = [16, 8], strides = [1, 1]} : vector<16x32xf32> to vector<16x8xf32>
    %48 = vector.shape_cast %47 : vector<16x8xf32> to vector<2x8x8xf32>
    %49 = vector.extract_strided_slice %42 {offsets = [0, 0], sizes = [16, 8], strides = [1, 1]} : vector<16x32xf32> to vector<16x8xf32>
    %50 = vector.shape_cast %49 : vector<16x8xf32> to vector<2x8x8xf32>
    %51 = vector.extract_strided_slice %46 {offsets = [0, 0], sizes = [16, 8], strides = [1, 1]} : vector<16x32xf32> to vector<16x8xf32>
    %52 = vector.shape_cast %51 : vector<16x8xf32> to vector<2x8x8xf32>
    %cst_56 = arith.constant dense<0.000000e+00> : vector<2x8x8xf32>
    %53 = tpu.matmul %48, %50, %cst_56 {dimension_numbers = #tpu.dot_dimension_numbers<[2], [2], [1], [1], [0, 0, 0, 1, 1, 1], [0], [0]>} : vector<2x8x8xf32>, vector<2x8x8xf32>, vector<2x8x8xf32> -> vector<2x8x8xf32>
    %cst_57 = arith.constant dense<0xFF800000> : vector<2x8xf32>
    %54 = vector.multi_reduction <maximumf>, %53, %cst_57 [2] : vector<2x8x8xf32> to vector<2x8xf32>
    %55 = vector.shape_cast %54 : vector<2x8xf32> to vector<2x8x1xf32>
    %56 = vector.broadcast %55 : vector<2x8x1xf32> to vector<2x8x8xf32>
    %57 = arith.subf %53, %56 : vector<2x8x8xf32>
    %58 = math.exp %57 : vector<2x8x8xf32>
    %cst_58 = arith.constant dense<0.000000e+00> : vector<2x8xf32>
    %59 = vector.multi_reduction <add>, %58, %cst_58 [2] : vector<2x8x8xf32> to vector<2x8xf32>
    %60 = vector.shape_cast %59 : vector<2x8xf32> to vector<2x8x1xf32>
    %61 = vector.broadcast %60 : vector<2x8x1xf32> to vector<2x8x8xf32>
    %62 = arith.divf %58, %61 : vector<2x8x8xf32>
    %cst_59 = arith.constant dense<0.000000e+00> : vector<2x8x8xf32>
    %63 = tpu.matmul %62, %52, %cst_59 {dimension_numbers = #tpu.dot_dimension_numbers<[2], [1], [1], [2], [0, 0, 0, 1, 1, 2], [0], [0]>} : vector<2x8x8xf32>, vector<2x8x8xf32>, vector<2x8x8xf32> -> vector<2x8x8xf32>
    %64 = vector.shape_cast %63 : vector<2x8x8xf32> to vector<16x8xf32>
    %c0_60 = arith.constant 0 : index
    %c0_61 = arith.constant 0 : index
    %65 = vector.load %arg15[%c0_60, %c0_61] : memref<16x32xf32, #tpu.memory_space<vmem>>, vector<16x8xf32>
    tpu.vector_store %arg15[%c0_60, %c0_61], %64 {strides = array<i32>} : memref<16x32xf32, #tpu.memory_space<vmem>>, vector<16x8xf32>,
    %66 = vector.extract_strided_slice %38 {offsets = [0, 8], sizes = [16, 8], strides = [1, 1]} : vector<16x32xf32> to vector<16x8xf32>
    %67 = vector.shape_cast %66 : vector<16x8xf32> to vector<2x8x8xf32>
    %68 = vector.extract_strided_slice %42 {offsets = [0, 8], sizes = [16, 8], strides = [1, 1]} : vector<16x32xf32> to vector<16x8xf32>
    %69 = vector.shape_cast %68 : vector<16x8xf32> to vector<2x8x8xf32>
    %70 = vector.extract_strided_slice %46 {offsets = [0, 8], sizes = [16, 8], strides = [1, 1]} : vector<16x32xf32> to vector<16x8xf32>
    %71 = vector.shape_cast %70 : vector<16x8xf32> to vector<2x8x8xf32>
    %cst_62 = arith.constant dense<0.000000e+00> : vector<2x8x8xf32>
    %72 = tpu.matmul %67, %69, %cst_62 {dimension_numbers = #tpu.dot_dimension_numbers<[2], [2], [1], [1], [0, 0, 0, 1, 1, 1], [0], [0]>} : vector<2x8x8xf32>, vector<2x8x8xf32>, vector<2x8x8xf32> -> vector<2x8x8xf32>
    %cst_63 = arith.constant dense<0xFF800000> : vector<2x8xf32>
    %73 = vector.multi_reduction <maximumf>, %72, %cst_63 [2] : vector<2x8x8xf32> to vector<2x8xf32>
    %74 = vector.shape_cast %73 : vector<2x8xf32> to vector<2x8x1xf32>
    %75 = vector.broadcast %74 : vector<2x8x1xf32> to vector<2x8x8xf32>
    %76 = arith.subf %72, %75 : vector<2x8x8xf32>
    %77 = math.exp %76 : vector<2x8x8xf32>
    %cst_64 = arith.constant dense<0.000000e+00> : vector<2x8xf32>
    %78 = vector.multi_reduction <add>, %77, %cst_64 [2] : vector<2x8x8xf32> to vector<2x8xf32>
    %79 = vector.shape_cast %78 : vector<2x8xf32> to vector<2x8x1xf32>
    %80 = vector.broadcast %79 : vector<2x8x1xf32> to vector<2x8x8xf32>
    %81 = arith.divf %77, %80 : vector<2x8x8xf32>
    %cst_65 = arith.constant dense<0.000000e+00> : vector<2x8x8xf32>
    %82 = tpu.matmul %81, %71, %cst_65 {dimension_numbers = #tpu.dot_dimension_numbers<[2], [1], [1], [2], [0, 0, 0, 1, 1, 2], [0], [0]>} : vector<2x8x8xf32>, vector<2x8x8xf32>, vector<2x8x8xf32> -> vector<2x8x8xf32>
    %83 = vector.shape_cast %82 : vector<2x8x8xf32> to vector<16x8xf32>
    %c0_66 = arith.constant 0 : index
    %c8_67 = arith.constant 8 : index
    %84 = vector.load %arg15[%c0_66, %c8_67] : memref<16x32xf32, #tpu.memory_space<vmem>>, vector<16x8xf32>
    tpu.vector_store %arg15[%c0_66, %c8_67], %83 {strides = array<i32>} : memref<16x32xf32, #tpu.memory_space<vmem>>, vector<16x8xf32>,
    %85 = vector.extract_strided_slice %38 {offsets = [0, 16], sizes = [16, 8], strides = [1, 1]} : vector<16x32xf32> to vector<16x8xf32>
    %86 = vector.shape_cast %85 : vector<16x8xf32> to vector<2x8x8xf32>
    %87 = vector.extract_strided_slice %42 {offsets = [0, 16], sizes = [16, 8], strides = [1, 1]} : vector<16x32xf32> to vector<16x8xf32>
    %88 = vector.shape_cast %87 : vector<16x8xf32> to vector<2x8x8xf32>
    %89 = vector.extract_strided_slice %46 {offsets = [0, 16], sizes = [16, 8], strides = [1, 1]} : vector<16x32xf32> to vector<16x8xf32>
    %90 = vector.shape_cast %89 : vector<16x8xf32> to vector<2x8x8xf32>
    %cst_68 = arith.constant dense<0.000000e+00> : vector<2x8x8xf32>
    %91 = tpu.matmul %86, %88, %cst_68 {dimension_numbers = #tpu.dot_dimension_numbers<[2], [2], [1], [1], [0, 0, 0, 1, 1, 1], [0], [0]>} : vector<2x8x8xf32>, vector<2x8x8xf32>, vector<2x8x8xf32> -> vector<2x8x8xf32>
    %cst_69 = arith.constant dense<0xFF800000> : vector<2x8xf32>
    %92 = vector.multi_reduction <maximumf>, %91, %cst_69 [2] : vector<2x8x8xf32> to vector<2x8xf32>
    %93 = vector.shape_cast %92 : vector<2x8xf32> to vector<2x8x1xf32>
    %94 = vector.broadcast %93 : vector<2x8x1xf32> to vector<2x8x8xf32>
    %95 = arith.subf %91, %94 : vector<2x8x8xf32>
    %96 = math.exp %95 : vector<2x8x8xf32>
    %cst_70 = arith.constant dense<0.000000e+00> : vector<2x8xf32>
    %97 = vector.multi_reduction <add>, %96, %cst_70 [2] : vector<2x8x8xf32> to vector<2x8xf32>
    %98 = vector.shape_cast %97 : vector<2x8xf32> to vector<2x8x1xf32>
    %99 = vector.broadcast %98 : vector<2x8x1xf32> to vector<2x8x8xf32>
    %100 = arith.divf %96, %99 : vector<2x8x8xf32>
    %cst_71 = arith.constant dense<0.000000e+00> : vector<2x8x8xf32>
    %101 = tpu.matmul %100, %90, %cst_71 {dimension_numbers = #tpu.dot_dimension_numbers<[2], [1], [1], [2], [0, 0, 0, 1, 1, 2], [0], [0]>} : vector<2x8x8xf32>, vector<2x8x8xf32>, vector<2x8x8xf32> -> vector<2x8x8xf32>
    %102 = vector.shape_cast %101 : vector<2x8x8xf32> to vector<16x8xf32>
    %c0_72 = arith.constant 0 : index
    %c16_73 = arith.constant 16 : index
    %103 = vector.load %arg15[%c0_72, %c16_73] : memref<16x32xf32, #tpu.memory_space<vmem>>, vector<16x8xf32>
    tpu.vector_store %arg15[%c0_72, %c16_73], %102 {strides = array<i32>} : memref<16x32xf32, #tpu.memory_space<vmem>>, vector<16x8xf32>,
    %104 = vector.extract_strided_slice %38 {offsets = [0, 24], sizes = [16, 8], strides = [1, 1]} : vector<16x32xf32> to vector<16x8xf32>
    %105 = vector.shape_cast %104 : vector<16x8xf32> to vector<2x8x8xf32>
    %106 = vector.extract_strided_slice %42 {offsets = [0, 24], sizes = [16, 8], strides = [1, 1]} : vector<16x32xf32> to vector<16x8xf32>
    %107 = vector.shape_cast %106 : vector<16x8xf32> to vector<2x8x8xf32>
    %108 = vector.extract_strided_slice %46 {offsets = [0, 24], sizes = [16, 8], strides = [1, 1]} : vector<16x32xf32> to vector<16x8xf32>
    %109 = vector.shape_cast %108 : vector<16x8xf32> to vector<2x8x8xf32>
    %cst_74 = arith.constant dense<0.000000e+00> : vector<2x8x8xf32>
    %110 = tpu.matmul %105, %107, %cst_74 {dimension_numbers = #tpu.dot_dimension_numbers<[2], [2], [1], [1], [0, 0, 0, 1, 1, 1], [0], [0]>} : vector<2x8x8xf32>, vector<2x8x8xf32>, vector<2x8x8xf32> -> vector<2x8x8xf32>
    %cst_75 = arith.constant dense<0xFF800000> : vector<2x8xf32>
    %111 = vector.multi_reduction <maximumf>, %110, %cst_75 [2] : vector<2x8x8xf32> to vector<2x8xf32>
    %112 = vector.shape_cast %111 : vector<2x8xf32> to vector<2x8x1xf32>
    %113 = vector.broadcast %112 : vector<2x8x1xf32> to vector<2x8x8xf32>
    %114 = arith.subf %110, %113 : vector<2x8x8xf32>
    %115 = math.exp %114 : vector<2x8x8xf32>
    %cst_76 = arith.constant dense<0.000000e+00> : vector<2x8xf32>
    %116 = vector.multi_reduction <add>, %115, %cst_76 [2] : vector<2x8x8xf32> to vector<2x8xf32>
    %117 = vector.shape_cast %116 : vector<2x8xf32> to vector<2x8x1xf32>
    %118 = vector.broadcast %117 : vector<2x8x1xf32> to vector<2x8x8xf32>
    %119 = arith.divf %115, %118 : vector<2x8x8xf32>
    %cst_77 = arith.constant dense<0.000000e+00> : vector<2x8x8xf32>
    %120 = tpu.matmul %119, %109, %cst_77 {dimension_numbers = #tpu.dot_dimension_numbers<[2], [1], [1], [2], [0, 0, 0, 1, 1, 2], [0], [0]>} : vector<2x8x8xf32>, vector<2x8x8xf32>, vector<2x8x8xf32> -> vector<2x8x8xf32>
    %121 = vector.shape_cast %120 : vector<2x8x8xf32> to vector<16x8xf32>
    %c0_78 = arith.constant 0 : index
    %c24 = arith.constant 24 : index
    %122 = vector.load %arg15[%c0_78, %c24] : memref<16x32xf32, #tpu.memory_space<vmem>>, vector<16x8xf32>
    tpu.vector_store %arg15[%c0_78, %c24], %121 {strides = array<i32>} : memref<16x32xf32, #tpu.memory_space<vmem>>, vector<16x8xf32>,
    %c0_79 = arith.constant 0 : index
    %c0_80 = arith.constant 0 : index
    %c0_81 = arith.constant 0 : index
    %123 = vector.load %arg5[%c0_79, %c0_80, %c0_81] : memref<2x32x32xf32, #tpu.memory_space<vmem>>, vector<1x32x32xf32>
    %124 = vector.shape_cast %123 : vector<1x32x32xf32> to vector<32x32xf32>
    %c0_82 = arith.constant 0 : index
    %c0_83 = arith.constant 0 : index
    %125 = vector.load %arg15[%c0_82, %c0_83] : memref<16x32xf32, #tpu.memory_space<vmem>>, vector<16x32xf32>
    %cst_84 = arith.constant dense<0.000000e+00> : vector<16x32xf32>
    %126 = tpu.matmul %125, %124, %cst_84 {dimension_numbers = #tpu.dot_dimension_numbers<[1], [0], [0], [1], [0, 0, 1, 1], [], []>} : vector<16x32xf32>, vector<32x32xf32>, vector<16x32xf32> -> vector<16x32xf32>
    %c3 = arith.constant 3 : index
    %c0_85 = arith.constant 0 : index
    %127 = vector.load %arg9[%c3, %c0_85] : memref<16x32xf32, #tpu.memory_space<vmem>>, vector<1x32xf32>
    %128 = vector.broadcast %127 : vector<1x32xf32> to vector<16x32xf32>
    %129 = arith.addf %126, %128 : vector<16x32xf32>
    %130 = arith.addf %26, %129 : vector<16x32xf32>
    %cst_86 = arith.constant dense<0.000000e+00> : vector<16xf32>
    %131 = vector.multi_reduction <add>, %130, %cst_86 [1] : vector<16x32xf32> to vector<16xf32>
    %132 = vector.shape_cast %131 : vector<16xf32> to vector<16x1xf32>
    %cst_87 = arith.constant 3.200000e+01 : f32
    %133 = vector.broadcast %cst_87 : f32 to vector<16x1xf32>
    %134 = arith.divf %132, %133 : vector<16x1xf32>
    %135 = vector.broadcast %134 : vector<16x1xf32> to vector<16x32xf32>
    %136 = arith.subf %130, %135 : vector<16x32xf32>
    %137 = arith.mulf %136, %136 : vector<16x32xf32>
    %cst_88 = arith.constant dense<0.000000e+00> : vector<16xf32>
    %138 = vector.multi_reduction <add>, %137, %cst_88 [1] : vector<16x32xf32> to vector<16xf32>
    %139 = vector.shape_cast %138 : vector<16xf32> to vector<16x1xf32>
    %cst_89 = arith.constant 3.200000e+01 : f32
    %140 = vector.broadcast %cst_89 : f32 to vector<16x1xf32>
    %141 = arith.divf %139, %140 : vector<16x1xf32>
    %cst_90 = arith.constant 9.99999974E-6 : f32
    %142 = vector.broadcast %cst_90 : f32 to vector<16x1xf32>
    %143 = arith.addf %141, %142 : vector<16x1xf32>
    %144 = math.rsqrt %143 : vector<16x1xf32>
    %145 = vector.broadcast %144 : vector<16x1xf32> to vector<16x32xf32>
    %146 = arith.mulf %136, %145 : vector<16x32xf32>
    %c9 = arith.constant 9 : index
    %c0_91 = arith.constant 0 : index
    %147 = vector.load %arg9[%c9, %c0_91] : memref<16x32xf32, #tpu.memory_space<vmem>>, vector<1x32xf32>
    %148 = vector.broadcast %147 : vector<1x32xf32> to vector<16x32xf32>
    %149 = arith.mulf %146, %148 : vector<16x32xf32>
    %c10 = arith.constant 10 : index
    %c0_92 = arith.constant 0 : index
    %150 = vector.load %arg9[%c10, %c0_92] : memref<16x32xf32, #tpu.memory_space<vmem>>, vector<1x32xf32>
    %151 = vector.broadcast %150 : vector<1x32xf32> to vector<16x32xf32>
    %152 = arith.addf %149, %151 : vector<16x32xf32>
    %153 = arith.addf %152, %27 : vector<16x32xf32>
    %c0_93 = arith.constant 0 : index
    %c0_94 = arith.constant 0 : index
    %154 = vector.load %arg14[%c0_93, %c0_94] : memref<32x32xf32, #tpu.memory_space<vmem>>, vector<32x32xf32>
    %c0_95 = arith.constant 0 : index
    %c0_96 = arith.constant 0 : index
    %155 = vector.load %arg13[%c0_95, %c0_96] : memref<32x32xf32, #tpu.memory_space<vmem>>, vector<32x32xf32>
    %c3_97 = arith.constant 3 : index
    %c0_98 = arith.constant 0 : index
    %c0_99 = arith.constant 0 : index
    %156 = vector.load %arg4[%c3_97, %c0_98, %c0_99] : memref<6x32x32xf32, #tpu.memory_space<vmem>>, vector<1x32x32xf32>
    %157 = vector.shape_cast %156 : vector<1x32x32xf32> to vector<32x32xf32>
    %c4 = arith.constant 4 : index
    %c0_100 = arith.constant 0 : index
    %c0_101 = arith.constant 0 : index
    %158 = vector.load %arg4[%c4, %c0_100, %c0_101] : memref<6x32x32xf32, #tpu.memory_space<vmem>>, vector<1x32x32xf32>
    %159 = vector.shape_cast %158 : vector<1x32x32xf32> to vector<32x32xf32>
    %c5 = arith.constant 5 : index
    %c0_102 = arith.constant 0 : index
    %c0_103 = arith.constant 0 : index
    %160 = vector.load %arg4[%c5, %c0_102, %c0_103] : memref<6x32x32xf32, #tpu.memory_space<vmem>>, vector<1x32x32xf32>
    %161 = vector.shape_cast %160 : vector<1x32x32xf32> to vector<32x32xf32>
    %cst_104 = arith.constant dense<0.000000e+00> : vector<16x32xf32>
    %162 = tpu.matmul %153, %157, %cst_104 {dimension_numbers = #tpu.dot_dimension_numbers<[1], [0], [0], [1], [0, 0, 1, 1], [], []>} : vector<16x32xf32>, vector<32x32xf32>, vector<16x32xf32> -> vector<16x32xf32>
    %c4_105 = arith.constant 4 : index
    %c0_106 = arith.constant 0 : index
    %163 = vector.load %arg9[%c4_105, %c0_106] : memref<16x32xf32, #tpu.memory_space<vmem>>, vector<1x32xf32>
    %164 = vector.broadcast %163 : vector<1x32xf32> to vector<16x32xf32>
    %165 = arith.addf %162, %164 : vector<16x32xf32>
    %cst_107 = arith.constant dense<0.000000e+00> : vector<32x32xf32>
    %166 = tpu.matmul %154, %159, %cst_107 {dimension_numbers = #tpu.dot_dimension_numbers<[1], [0], [0], [1], [0, 0, 1, 1], [], []>} : vector<32x32xf32>, vector<32x32xf32>, vector<32x32xf32> -> vector<32x32xf32>
    %c5_108 = arith.constant 5 : index
    %c0_109 = arith.constant 0 : index
    %167 = vector.load %arg9[%c5_108, %c0_109] : memref<16x32xf32, #tpu.memory_space<vmem>>, vector<1x32xf32>
    %168 = vector.broadcast %167 : vector<1x32xf32> to vector<32x32xf32>
    %169 = arith.addf %166, %168 : vector<32x32xf32>
    %cst_110 = arith.constant dense<0.000000e+00> : vector<32x32xf32>
    %170 = tpu.matmul %155, %161, %cst_110 {dimension_numbers = #tpu.dot_dimension_numbers<[1], [0], [0], [1], [0, 0, 1, 1], [], []>} : vector<32x32xf32>, vector<32x32xf32>, vector<32x32xf32> -> vector<32x32xf32>
    %c6 = arith.constant 6 : index
    %c0_111 = arith.constant 0 : index
    %171 = vector.load %arg9[%c6, %c0_111] : memref<16x32xf32, #tpu.memory_space<vmem>>, vector<1x32xf32>
    %172 = vector.broadcast %171 : vector<1x32xf32> to vector<32x32xf32>
    %173 = arith.addf %170, %172 : vector<32x32xf32>
    %174 = vector.extract_strided_slice %165 {offsets = [0, 0], sizes = [16, 8], strides = [1, 1]} : vector<16x32xf32> to vector<16x8xf32>
    %175 = vector.shape_cast %174 : vector<16x8xf32> to vector<2x8x8xf32>
    %176 = vector.extract_strided_slice %169 {offsets = [0, 0], sizes = [32, 8], strides = [1, 1]} : vector<32x32xf32> to vector<32x8xf32>
    %177 = vector.shape_cast %176 : vector<32x8xf32> to vector<2x16x8xf32>
    %178 = vector.extract_strided_slice %173 {offsets = [0, 0], sizes = [32, 8], strides = [1, 1]} : vector<32x32xf32> to vector<32x8xf32>
    %179 = vector.shape_cast %178 : vector<32x8xf32> to vector<2x16x8xf32>
    %cst_112 = arith.constant dense<0.000000e+00> : vector<2x8x16xf32>
    %180 = tpu.matmul %175, %177, %cst_112 {dimension_numbers = #tpu.dot_dimension_numbers<[2], [2], [1], [1], [0, 0, 0, 1, 1, 1], [0], [0]>} : vector<2x8x8xf32>, vector<2x16x8xf32>, vector<2x8x16xf32> -> vector<2x8x16xf32>
    %cst_113 = arith.constant dense<0xFF800000> : vector<2x8xf32>
    %181 = vector.multi_reduction <maximumf>, %180, %cst_113 [2] : vector<2x8x16xf32> to vector<2x8xf32>
    %182 = vector.shape_cast %181 : vector<2x8xf32> to vector<2x8x1xf32>
    %183 = vector.broadcast %182 : vector<2x8x1xf32> to vector<2x8x16xf32>
    %184 = arith.subf %180, %183 : vector<2x8x16xf32>
    %185 = math.exp %184 : vector<2x8x16xf32>
    %cst_114 = arith.constant dense<0.000000e+00> : vector<2x8xf32>
    %186 = vector.multi_reduction <add>, %185, %cst_114 [2] : vector<2x8x16xf32> to vector<2x8xf32>
    %187 = vector.shape_cast %186 : vector<2x8xf32> to vector<2x8x1xf32>
    %188 = vector.broadcast %187 : vector<2x8x1xf32> to vector<2x8x16xf32>
    %189 = arith.divf %185, %188 : vector<2x8x16xf32>
    %cst_115 = arith.constant dense<0.000000e+00> : vector<2x8x8xf32>
    %190 = tpu.matmul %189, %179, %cst_115 {dimension_numbers = #tpu.dot_dimension_numbers<[2], [1], [1], [2], [0, 0, 0, 1, 1, 2], [0], [0]>} : vector<2x8x16xf32>, vector<2x16x8xf32>, vector<2x8x8xf32> -> vector<2x8x8xf32>
    %191 = vector.shape_cast %190 : vector<2x8x8xf32> to vector<16x8xf32>
    %c0_116 = arith.constant 0 : index
    %c0_117 = arith.constant 0 : index
    %192 = vector.load %arg15[%c0_116, %c0_117] : memref<16x32xf32, #tpu.memory_space<vmem>>, vector<16x8xf32>
    tpu.vector_store %arg15[%c0_116, %c0_117], %191 {strides = array<i32>} : memref<16x32xf32, #tpu.memory_space<vmem>>, vector<16x8xf32>,
    %193 = vector.extract_strided_slice %165 {offsets = [0, 8], sizes = [16, 8], strides = [1, 1]} : vector<16x32xf32> to vector<16x8xf32>
    %194 = vector.shape_cast %193 : vector<16x8xf32> to vector<2x8x8xf32>
    %195 = vector.extract_strided_slice %169 {offsets = [0, 8], sizes = [32, 8], strides = [1, 1]} : vector<32x32xf32> to vector<32x8xf32>
    %196 = vector.shape_cast %195 : vector<32x8xf32> to vector<2x16x8xf32>
    %197 = vector.extract_strided_slice %173 {offsets = [0, 8], sizes = [32, 8], strides = [1, 1]} : vector<32x32xf32> to vector<32x8xf32>
    %198 = vector.shape_cast %197 : vector<32x8xf32> to vector<2x16x8xf32>
    %cst_118 = arith.constant dense<0.000000e+00> : vector<2x8x16xf32>
    %199 = tpu.matmul %194, %196, %cst_118 {dimension_numbers = #tpu.dot_dimension_numbers<[2], [2], [1], [1], [0, 0, 0, 1, 1, 1], [0], [0]>} : vector<2x8x8xf32>, vector<2x16x8xf32>, vector<2x8x16xf32> -> vector<2x8x16xf32>
    %cst_119 = arith.constant dense<0xFF800000> : vector<2x8xf32>
    %200 = vector.multi_reduction <maximumf>, %199, %cst_119 [2] : vector<2x8x16xf32> to vector<2x8xf32>
    %201 = vector.shape_cast %200 : vector<2x8xf32> to vector<2x8x1xf32>
    %202 = vector.broadcast %201 : vector<2x8x1xf32> to vector<2x8x16xf32>
    %203 = arith.subf %199, %202 : vector<2x8x16xf32>
    %204 = math.exp %203 : vector<2x8x16xf32>
    %cst_120 = arith.constant dense<0.000000e+00> : vector<2x8xf32>
    %205 = vector.multi_reduction <add>, %204, %cst_120 [2] : vector<2x8x16xf32> to vector<2x8xf32>
    %206 = vector.shape_cast %205 : vector<2x8xf32> to vector<2x8x1xf32>
    %207 = vector.broadcast %206 : vector<2x8x1xf32> to vector<2x8x16xf32>
    %208 = arith.divf %204, %207 : vector<2x8x16xf32>
    %cst_121 = arith.constant dense<0.000000e+00> : vector<2x8x8xf32>
    %209 = tpu.matmul %208, %198, %cst_121 {dimension_numbers = #tpu.dot_dimension_numbers<[2], [1], [1], [2], [0, 0, 0, 1, 1, 2], [0], [0]>} : vector<2x8x16xf32>, vector<2x16x8xf32>, vector<2x8x8xf32> -> vector<2x8x8xf32>
    %210 = vector.shape_cast %209 : vector<2x8x8xf32> to vector<16x8xf32>
    %c0_122 = arith.constant 0 : index
    %c8_123 = arith.constant 8 : index
    %211 = vector.load %arg15[%c0_122, %c8_123] : memref<16x32xf32, #tpu.memory_space<vmem>>, vector<16x8xf32>
    tpu.vector_store %arg15[%c0_122, %c8_123], %210 {strides = array<i32>} : memref<16x32xf32, #tpu.memory_space<vmem>>, vector<16x8xf32>,
    %212 = vector.extract_strided_slice %165 {offsets = [0, 16], sizes = [16, 8], strides = [1, 1]} : vector<16x32xf32> to vector<16x8xf32>
    %213 = vector.shape_cast %212 : vector<16x8xf32> to vector<2x8x8xf32>
    %214 = vector.extract_strided_slice %169 {offsets = [0, 16], sizes = [32, 8], strides = [1, 1]} : vector<32x32xf32> to vector<32x8xf32>
    %215 = vector.shape_cast %214 : vector<32x8xf32> to vector<2x16x8xf32>
    %216 = vector.extract_strided_slice %173 {offsets = [0, 16], sizes = [32, 8], strides = [1, 1]} : vector<32x32xf32> to vector<32x8xf32>
    %217 = vector.shape_cast %216 : vector<32x8xf32> to vector<2x16x8xf32>
    %cst_124 = arith.constant dense<0.000000e+00> : vector<2x8x16xf32>
    %218 = tpu.matmul %213, %215, %cst_124 {dimension_numbers = #tpu.dot_dimension_numbers<[2], [2], [1], [1], [0, 0, 0, 1, 1, 1], [0], [0]>} : vector<2x8x8xf32>, vector<2x16x8xf32>, vector<2x8x16xf32> -> vector<2x8x16xf32>
    %cst_125 = arith.constant dense<0xFF800000> : vector<2x8xf32>
    %219 = vector.multi_reduction <maximumf>, %218, %cst_125 [2] : vector<2x8x16xf32> to vector<2x8xf32>
    %220 = vector.shape_cast %219 : vector<2x8xf32> to vector<2x8x1xf32>
    %221 = vector.broadcast %220 : vector<2x8x1xf32> to vector<2x8x16xf32>
    %222 = arith.subf %218, %221 : vector<2x8x16xf32>
    %223 = math.exp %222 : vector<2x8x16xf32>
    %cst_126 = arith.constant dense<0.000000e+00> : vector<2x8xf32>
    %224 = vector.multi_reduction <add>, %223, %cst_126 [2] : vector<2x8x16xf32> to vector<2x8xf32>
    %225 = vector.shape_cast %224 : vector<2x8xf32> to vector<2x8x1xf32>
    %226 = vector.broadcast %225 : vector<2x8x1xf32> to vector<2x8x16xf32>
    %227 = arith.divf %223, %226 : vector<2x8x16xf32>
    %cst_127 = arith.constant dense<0.000000e+00> : vector<2x8x8xf32>
    %228 = tpu.matmul %227, %217, %cst_127 {dimension_numbers = #tpu.dot_dimension_numbers<[2], [1], [1], [2], [0, 0, 0, 1, 1, 2], [0], [0]>} : vector<2x8x16xf32>, vector<2x16x8xf32>, vector<2x8x8xf32> -> vector<2x8x8xf32>
    %229 = vector.shape_cast %228 : vector<2x8x8xf32> to vector<16x8xf32>
    %c0_128 = arith.constant 0 : index
    %c16_129 = arith.constant 16 : index
    %230 = vector.load %arg15[%c0_128, %c16_129] : memref<16x32xf32, #tpu.memory_space<vmem>>, vector<16x8xf32>
    tpu.vector_store %arg15[%c0_128, %c16_129], %229 {strides = array<i32>} : memref<16x32xf32, #tpu.memory_space<vmem>>, vector<16x8xf32>,
    %231 = vector.extract_strided_slice %165 {offsets = [0, 24], sizes = [16, 8], strides = [1, 1]} : vector<16x32xf32> to vector<16x8xf32>
    %232 = vector.shape_cast %231 : vector<16x8xf32> to vector<2x8x8xf32>
    %233 = vector.extract_strided_slice %169 {offsets = [0, 24], sizes = [32, 8], strides = [1, 1]} : vector<32x32xf32> to vector<32x8xf32>
    %234 = vector.shape_cast %233 : vector<32x8xf32> to vector<2x16x8xf32>
    %235 = vector.extract_strided_slice %173 {offsets = [0, 24], sizes = [32, 8], strides = [1, 1]} : vector<32x32xf32> to vector<32x8xf32>
    %236 = vector.shape_cast %235 : vector<32x8xf32> to vector<2x16x8xf32>
    %cst_130 = arith.constant dense<0.000000e+00> : vector<2x8x16xf32>
    %237 = tpu.matmul %232, %234, %cst_130 {dimension_numbers = #tpu.dot_dimension_numbers<[2], [2], [1], [1], [0, 0, 0, 1, 1, 1], [0], [0]>} : vector<2x8x8xf32>, vector<2x16x8xf32>, vector<2x8x16xf32> -> vector<2x8x16xf32>
    %cst_131 = arith.constant dense<0xFF800000> : vector<2x8xf32>
    %238 = vector.multi_reduction <maximumf>, %237, %cst_131 [2] : vector<2x8x16xf32> to vector<2x8xf32>
    %239 = vector.shape_cast %238 : vector<2x8xf32> to vector<2x8x1xf32>
    %240 = vector.broadcast %239 : vector<2x8x1xf32> to vector<2x8x16xf32>
    %241 = arith.subf %237, %240 : vector<2x8x16xf32>
    %242 = math.exp %241 : vector<2x8x16xf32>
    %cst_132 = arith.constant dense<0.000000e+00> : vector<2x8xf32>
    %243 = vector.multi_reduction <add>, %242, %cst_132 [2] : vector<2x8x16xf32> to vector<2x8xf32>
    %244 = vector.shape_cast %243 : vector<2x8xf32> to vector<2x8x1xf32>
    %245 = vector.broadcast %244 : vector<2x8x1xf32> to vector<2x8x16xf32>
    %246 = arith.divf %242, %245 : vector<2x8x16xf32>
    %cst_133 = arith.constant dense<0.000000e+00> : vector<2x8x8xf32>
    %247 = tpu.matmul %246, %236, %cst_133 {dimension_numbers = #tpu.dot_dimension_numbers<[2], [1], [1], [2], [0, 0, 0, 1, 1, 2], [0], [0]>} : vector<2x8x16xf32>, vector<2x16x8xf32>, vector<2x8x8xf32> -> vector<2x8x8xf32>
    %248 = vector.shape_cast %247 : vector<2x8x8xf32> to vector<16x8xf32>
    %c0_134 = arith.constant 0 : index
    %c24_135 = arith.constant 24 : index
    %249 = vector.load %arg15[%c0_134, %c24_135] : memref<16x32xf32, #tpu.memory_space<vmem>>, vector<16x8xf32>
    tpu.vector_store %arg15[%c0_134, %c24_135], %248 {strides = array<i32>} : memref<16x32xf32, #tpu.memory_space<vmem>>, vector<16x8xf32>,
    %c1_136 = arith.constant 1 : index
    %c0_137 = arith.constant 0 : index
    %c0_138 = arith.constant 0 : index
    %250 = vector.load %arg5[%c1_136, %c0_137, %c0_138] : memref<2x32x32xf32, #tpu.memory_space<vmem>>, vector<1x32x32xf32>
    %251 = vector.shape_cast %250 : vector<1x32x32xf32> to vector<32x32xf32>
    %c0_139 = arith.constant 0 : index
    %c0_140 = arith.constant 0 : index
    %252 = vector.load %arg15[%c0_139, %c0_140] : memref<16x32xf32, #tpu.memory_space<vmem>>, vector<16x32xf32>
    %cst_141 = arith.constant dense<0.000000e+00> : vector<16x32xf32>
    %253 = tpu.matmul %252, %251, %cst_141 {dimension_numbers = #tpu.dot_dimension_numbers<[1], [0], [0], [1], [0, 0, 1, 1], [], []>} : vector<16x32xf32>, vector<32x32xf32>, vector<16x32xf32> -> vector<16x32xf32>
    %c7 = arith.constant 7 : index
    %c0_142 = arith.constant 0 : index
    %254 = vector.load %arg9[%c7, %c0_142] : memref<16x32xf32, #tpu.memory_space<vmem>>, vector<1x32xf32>
    %255 = vector.broadcast %254 : vector<1x32xf32> to vector<16x32xf32>
    %256 = arith.addf %253, %255 : vector<16x32xf32>
    %257 = arith.addf %152, %256 : vector<16x32xf32>
    %cst_143 = arith.constant dense<0.000000e+00> : vector<16xf32>
    %258 = vector.multi_reduction <add>, %257, %cst_143 [1] : vector<16x32xf32> to vector<16xf32>
    %259 = vector.shape_cast %258 : vector<16xf32> to vector<16x1xf32>
    %cst_144 = arith.constant 3.200000e+01 : f32
    %260 = vector.broadcast %cst_144 : f32 to vector<16x1xf32>
    %261 = arith.divf %259, %260 : vector<16x1xf32>
    %262 = vector.broadcast %261 : vector<16x1xf32> to vector<16x32xf32>
    %263 = arith.subf %257, %262 : vector<16x32xf32>
    %264 = arith.mulf %263, %263 : vector<16x32xf32>
    %cst_145 = arith.constant dense<0.000000e+00> : vector<16xf32>
    %265 = vector.multi_reduction <add>, %264, %cst_145 [1] : vector<16x32xf32> to vector<16xf32>
    %266 = vector.shape_cast %265 : vector<16xf32> to vector<16x1xf32>
    %cst_146 = arith.constant 3.200000e+01 : f32
    %267 = vector.broadcast %cst_146 : f32 to vector<16x1xf32>
    %268 = arith.divf %266, %267 : vector<16x1xf32>
    %cst_147 = arith.constant 9.99999974E-6 : f32
    %269 = vector.broadcast %cst_147 : f32 to vector<16x1xf32>
    %270 = arith.addf %268, %269 : vector<16x1xf32>
    %271 = math.rsqrt %270 : vector<16x1xf32>
    %272 = vector.broadcast %271 : vector<16x1xf32> to vector<16x32xf32>
    %273 = arith.mulf %263, %272 : vector<16x32xf32>
    %c11 = arith.constant 11 : index
    %c0_148 = arith.constant 0 : index
    %274 = vector.load %arg9[%c11, %c0_148] : memref<16x32xf32, #tpu.memory_space<vmem>>, vector<1x32xf32>
    %275 = vector.broadcast %274 : vector<1x32xf32> to vector<16x32xf32>
    %276 = arith.mulf %273, %275 : vector<16x32xf32>
    %c12 = arith.constant 12 : index
    %c0_149 = arith.constant 0 : index
    %277 = vector.load %arg9[%c12, %c0_149] : memref<16x32xf32, #tpu.memory_space<vmem>>, vector<1x32xf32>
    %278 = vector.broadcast %277 : vector<1x32xf32> to vector<16x32xf32>
    %279 = arith.addf %276, %278 : vector<16x32xf32>
    %c0_150 = arith.constant 0 : index
    %c0_151 = arith.constant 0 : index
    %280 = vector.load %arg6[%c0_150, %c0_151] : memref<32x64xf32, #tpu.memory_space<vmem>>, vector<32x64xf32>
    %cst_152 = arith.constant dense<0.000000e+00> : vector<16x64xf32>
    %281 = tpu.matmul %279, %280, %cst_152 {dimension_numbers = #tpu.dot_dimension_numbers<[1], [0], [0], [1], [0, 0, 1, 1], [], []>} : vector<16x32xf32>, vector<32x64xf32>, vector<16x64xf32> -> vector<16x64xf32>
    %c0_153 = arith.constant 0 : index
    %c0_154 = arith.constant 0 : index
    %282 = vector.load %arg7[%c0_153, %c0_154] : memref<1x64xf32, #tpu.memory_space<vmem>>, vector<1x64xf32>
    %283 = vector.broadcast %282 : vector<1x64xf32> to vector<16x64xf32>
    %284 = arith.addf %281, %283 : vector<16x64xf32>
    %cst_155 = arith.constant 0.000000e+00 : f32
    %285 = vector.broadcast %cst_155 : f32 to vector<16x64xf32>
    %286 = arith.maximumf %284, %285 : vector<16x64xf32>
    %c0_156 = arith.constant 0 : index
    %c0_157 = arith.constant 0 : index
    %287 = vector.load %arg8[%c0_156, %c0_157] : memref<64x32xf32, #tpu.memory_space<vmem>>, vector<64x32xf32>
    %cst_158 = arith.constant dense<0.000000e+00> : vector<16x32xf32>
    %288 = tpu.matmul %286, %287, %cst_158 {dimension_numbers = #tpu.dot_dimension_numbers<[1], [0], [0], [1], [0, 0, 1, 1], [], []>} : vector<16x64xf32>, vector<64x32xf32>, vector<16x32xf32> -> vector<16x32xf32>
    %c8_159 = arith.constant 8 : index
    %c0_160 = arith.constant 0 : index
    %289 = vector.load %arg9[%c8_159, %c0_160] : memref<16x32xf32, #tpu.memory_space<vmem>>, vector<1x32xf32>
    %290 = vector.broadcast %289 : vector<1x32xf32> to vector<16x32xf32>
    %291 = arith.addf %288, %290 : vector<16x32xf32>
    %292 = arith.addf %279, %291 : vector<16x32xf32>
    %cst_161 = arith.constant dense<0.000000e+00> : vector<16xf32>
    %293 = vector.multi_reduction <add>, %292, %cst_161 [1] : vector<16x32xf32> to vector<16xf32>
    %294 = vector.shape_cast %293 : vector<16xf32> to vector<16x1xf32>
    %cst_162 = arith.constant 3.200000e+01 : f32
    %295 = vector.broadcast %cst_162 : f32 to vector<16x1xf32>
    %296 = arith.divf %294, %295 : vector<16x1xf32>
    %297 = vector.broadcast %296 : vector<16x1xf32> to vector<16x32xf32>
    %298 = arith.subf %292, %297 : vector<16x32xf32>
    %299 = arith.mulf %298, %298 : vector<16x32xf32>
    %cst_163 = arith.constant dense<0.000000e+00> : vector<16xf32>
    %300 = vector.multi_reduction <add>, %299, %cst_163 [1] : vector<16x32xf32> to vector<16xf32>
    %301 = vector.shape_cast %300 : vector<16xf32> to vector<16x1xf32>
    %cst_164 = arith.constant 3.200000e+01 : f32
    %302 = vector.broadcast %cst_164 : f32 to vector<16x1xf32>
    %303 = arith.divf %301, %302 : vector<16x1xf32>
    %cst_165 = arith.constant 9.99999974E-6 : f32
    %304 = vector.broadcast %cst_165 : f32 to vector<16x1xf32>
    %305 = arith.addf %303, %304 : vector<16x1xf32>
    %306 = math.rsqrt %305 : vector<16x1xf32>
    %307 = vector.broadcast %306 : vector<16x1xf32> to vector<16x32xf32>
    %308 = arith.mulf %298, %307 : vector<16x32xf32>
    %c13 = arith.constant 13 : index
    %c0_166 = arith.constant 0 : index
    %309 = vector.load %arg9[%c13, %c0_166] : memref<16x32xf32, #tpu.memory_space<vmem>>, vector<1x32xf32>
    %310 = vector.broadcast %309 : vector<1x32xf32> to vector<16x32xf32>
    %311 = arith.mulf %308, %310 : vector<16x32xf32>
    %c14 = arith.constant 14 : index
    %c0_167 = arith.constant 0 : index
    %312 = vector.load %arg9[%c14, %c0_167] : memref<16x32xf32, #tpu.memory_space<vmem>>, vector<1x32xf32>
    %313 = vector.broadcast %312 : vector<1x32xf32> to vector<16x32xf32>
    %314 = arith.addf %311, %313 : vector<16x32xf32>
    %315 = vector.extract_strided_slice %314 {offsets = [0, 0], sizes = [8, 32], strides = [1, 1]} : vector<16x32xf32> to vector<8x32xf32>
    %c0_168 = arith.constant 0 : index
    %c0_169 = arith.constant 0 : index
    %c0_170 = arith.constant 0 : index
    %316 = vector.load %arg10[%c0_168, %c0_169, %c0_170] : memref<8x2x32xf32, #tpu.memory_space<vmem>>, vector<8x1x32xf32>
    %317 = vector.shape_cast %316 : vector<8x1x32xf32> to vector<8x32xf32>
    %318 = vector.shape_cast %315 : vector<8x32xf32> to vector<8x1x32xf32>
    tpu.vector_store %arg10[%c0_168, %c0_169, %c0_170], %318 {strides = array<i32>} : memref<8x2x32xf32, #tpu.memory_space<vmem>>, vector<8x1x32xf32>,
    %319 = vector.extract_strided_slice %314 {offsets = [8, 0], sizes = [8, 32], strides = [1, 1]} : vector<16x32xf32> to vector<8x32xf32>
    %c0_171 = arith.constant 0 : index
    %c1_172 = arith.constant 1 : index
    %c0_173 = arith.constant 0 : index
    %320 = vector.load %arg10[%c0_171, %c1_172, %c0_173] : memref<8x2x32xf32, #tpu.memory_space<vmem>>, vector<8x1x32xf32>
    %321 = vector.shape_cast %320 : vector<8x1x32xf32> to vector<8x32xf32>
    %322 = vector.shape_cast %319 : vector<8x32xf32> to vector<8x1x32xf32>
    tpu.vector_store %arg10[%c0_171, %c1_172, %c0_173], %322 {strides = array<i32>} : memref<8x2x32xf32, #tpu.memory_space<vmem>>, vector<8x1x32xf32>,
    return
  }
}

</mosaic_0001>

<llo_original>
// kernel: transformer_decoder_layer.1
$region0: #{transformer_decoder_layer.1}
  #allocation0 [shape = 'u32[]', space=smem, size = 0x4, offset = 0x4, fixed_abs, tag = 'smem constant byte address 0x4 - core index']
  #allocation1 [shape = 'u32[72,128]{1,0:T(1,128)}', space=vmem, size = 0x9000, scoped, tag = 'internal scratch']
  #allocation2 [shape = 'f32[16,32]{1,0:T(8,128)}', space=vmem, size = 0x2000, scoped, tag = 'scratch operand']
  #allocation3 [shape = 'f32[16,32]{1,0:T(8,128)}', space=vmem, size = 0x2000, scoped, tag = 'scratch operand']
  #allocation4 [shape = 'f32[32,32]{1,0:T(8,128)}', space=vmem, size = 0x4000, scoped, tag = 'scratch operand']
  #allocation5 [shape = 'f32[32,32]{1,0:T(8,128)}', space=vmem, size = 0x4000, scoped, tag = 'scratch operand']
  #allocation6 [shape = 'f32[16,32]{1,0:T(8,128)}', space=vmem, size = 0x2000, scoped, tag = 'scratch operand']
  %s0 = inlined_call_operand.hbm [shape: f32[8,2,32], index: 0, kind: input, shape index: {}]
  %s1 = inlined_call_operand.hbm [shape: f32[8,2,32], index: 1, kind: input, shape index: {}]
  %s2 = inlined_call_operand.vmem [shape: f32[16,2,32], index: 2, kind: input, shape index: {}]
  %s3 = inlined_call_operand.hbm [shape: f32[16,2,32], index: 3, kind: input, shape index: {}]
  %s4 = inlined_call_operand.hbm [shape: f32[6,32,32], index: 4, kind: input, shape index: {}]
  %s5 = inlined_call_operand.vmem [shape: f32[2,32,32], index: 5, kind: input, shape index: {}]
  %s6 = inlined_call_operand.hbm [shape: f32[32,64], index: 6, kind: input, shape index: {}]
  %s7 = inlined_call_operand.vmem [shape: f32[1,64], index: 7, kind: input, shape index: {}]
  %s8 = inlined_call_operand.vmem [shape: f32[64,32], index: 8, kind: input, shape index: {}]
  %s9 = inlined_call_operand.hbm [shape: f32[16,32], index: 9, kind: input, shape index: {}]
  %s10 = inlined_call_operand.hbm [shape: f32[8,2,32], index: 10, kind: output, shape index: {}]
  %s11 = sld [smem:[#allocation0]]
  $region74: #{transformer_decoder_layer.1} parent=0
    _
  %s13 = ssub.s32 1, %s11
  %s14 = scalar_select 0, %s13, %s11
  $region1: #{transformer_decoder_layer.1} parent=0
    #allocation7 [shape = 'u8[8192]{0}', space=vmem, size = 0x2000, scoped, tag = 'input window, operand 0, single buffered']
    #allocation8 [shape = 's32[1]{0}', space=sflag, size = 0x4, scoped, tag = 'scoped memory for transformer_decoder_layer.1']
    #allocation9 [shape = 's32[1]{0}', space=sflag, size = 0x4, scoped, tag = 'scoped memory for transformer_decoder_layer.1']
    #allocation10 [shape = 'u8[8192]{0}', space=vmem, size = 0x2000, scoped, tag = 'input window, operand 1, single buffered']
    #allocation11 [shape = 's32[1]{0}', space=sflag, size = 0x4, scoped, tag = 'scoped memory for transformer_decoder_layer.1']
    #allocation12 [shape = 'u8[16384]{0}', space=vmem, size = 0x4000, scoped, tag = 'input window, operand 3, single buffered']
    #allocation13 [shape = 'u8[98304]{0}', space=vmem, size = 0x18000, scoped, tag = 'input window, operand 4, single buffered']
    #allocation14 [shape = 's32[1]{0}', space=sflag, size = 0x4, scoped, tag = 'scoped memory for transformer_decoder_layer.1']
    #allocation15 [shape = 'u8[16384]{0}', space=vmem, size = 0x4000, scoped, tag = 'input window, operand 6, single buffered']
    #allocation16 [shape = 'u8[8192]{0}', space=vmem, size = 0x2000, scoped, tag = 'input window, operand 9, single buffered']
    #allocation17 [shape = 's32[1]{0}', space=sflag, size = 0x4, scoped, tag = 'scoped memory for transformer_decoder_layer.1']
    #allocation18 [shape = 'u8[8192]{0}', space=vmem, size = 0x2000, scoped, tag = 'output window, operand 0, single buffered']
    %15 = vsyncpa [#allocation8], 0
    %16 = vsyncpa [#allocation11], 0
    %17 = vsyncpa [#allocation14], 0
    %18 = vsyncpa [#allocation17], 0
    %19 = vsyncpa [#allocation9], 0
    // Predicated region
    $region2: #{transformer_decoder_layer.1} parent=1 // pred_check
      _
    $region3: #{transformer_decoder_layer.1} parent=1 // pred_check_branch
      %21 = sbr.rel (0) target = $region5
    $region4: #{transformer_decoder_layer.1} parent=1 // pred_region
      %23 = vsyncadd [#allocation8], 0
      %s24 = sshll.u32 %s0, 4
      %s25 = int_to_ptr.hbm [resolvable:$true] %s24
      %s26 = sshll.u32 [#allocation7], 4
      %s27 = int_to_ptr.vmem [resolvable:$true] %s26
      %32 = dma.hbm_to_vmem [thread:$0]  %s25, 256, %s27, [#allocation8], 32, 32, 2
    $region5: #{transformer_decoder_layer.1} parent=1 // pred_fallthru
      _
    // Predicated region
    $region6: #{transformer_decoder_layer.1} parent=1 // pred_check
      _
    $region7: #{transformer_decoder_layer.1} parent=1 // pred_check_branch
      %34 = sbr.rel (0) target = $region9
    $region8: #{transformer_decoder_layer.1} parent=1 // pred_region
      %36 = vsyncadd [#allocation11], 0
      %s37 = sshll.u32 %s1, 4
      %s38 = int_to_ptr.hbm [resolvable:$true] %s37
      %s39 = sshll.u32 [#allocation10], 4
      %s40 = int_to_ptr.vmem [resolvable:$true] %s39
      %45 = dma.hbm_to_vmem [thread:$0]  %s38, 256, %s40, [#allocation11], 32, 32, 2
    $region9: #{transformer_decoder_layer.1} parent=1 // pred_fallthru
      _
    // Predicated region
    $region10: #{transformer_decoder_layer.1} parent=1 // pred_check
      _
    $region11: #{transformer_decoder_layer.1} parent=1 // pred_check_branch
      %47 = sbr.rel (0) target = $region13
    $region12: #{transformer_decoder_layer.1} parent=1 // pred_region
      _
    $region13: #{transformer_decoder_layer.1} parent=1 // pred_fallthru
      _
    // Predicated region
    $region14: #{transformer_decoder_layer.1} parent=1 // pred_check
      _
    $region15: #{transformer_decoder_layer.1} parent=1 // pred_check_branch
      %49 = sbr.rel (0) target = $region17
    $region16: #{transformer_decoder_layer.1} parent=1 // pred_region
      %51 = vsyncadd [#allocation11], 0
      %s52 = sshll.u32 %s3, 4
      %s53 = int_to_ptr.hbm [resolvable:$true] %s52
      %s54 = sshll.u32 [#allocation12], 4
      %s55 = int_to_ptr.vmem [resolvable:$true] %s54
      %60 = dma.hbm_to_vmem [thread:$0]  %s53, 512, %s55, [#allocation11], 32, 32, 2
    $region17: #{transformer_decoder_layer.1} parent=1 // pred_fallthru
      _
    // Predicated region
    $region18: #{transformer_decoder_layer.1} parent=1 // pred_check
      _
    $region19: #{transformer_decoder_layer.1} parent=1 // pred_check_branch
      %62 = sbr.rel (0) target = $region21
    $region20: #{transformer_decoder_layer.1} parent=1 // pred_region
      %64 = vsyncadd [#allocation14], 0
      %s65 = sshll.u32 %s4, 4
      %s66 = int_to_ptr.hbm [resolvable:$true] %s65
      %s67 = sshll.u32 [#allocation13], 4
      %s68 = int_to_ptr.vmem [resolvable:$true] %s67
      %73 = dma.hbm_to_vmem [thread:$0]  %s66, 3072, %s68, [#allocation14], 128, 128, 8
    $region21: #{transformer_decoder_layer.1} parent=1 // pred_fallthru
      _
    // Predicated region
    $region22: #{transformer_decoder_layer.1} parent=1 // pred_check
      _
    $region23: #{transformer_decoder_layer.1} parent=1 // pred_check_branch
      %75 = sbr.rel (0) target = $region25
    $region24: #{transformer_decoder_layer.1} parent=1 // pred_region
      _
    $region25: #{transformer_decoder_layer.1} parent=1 // pred_fallthru
      _
    // Predicated region
    $region26: #{transformer_decoder_layer.1} parent=1 // pred_check
      _
    $region27: #{transformer_decoder_layer.1} parent=1 // pred_check_branch
      %77 = sbr.rel (0) target = $region29
    $region28: #{transformer_decoder_layer.1} parent=1 // pred_region
      %79 = vsyncadd [#allocation14], 0
      %s80 = sshll.u32 %s6, 4
      %s81 = int_to_ptr.hbm [resolvable:$true] %s80
      %s82 = sshll.u32 [#allocation15], 4
      %s83 = int_to_ptr.vmem [resolvable:$true] %s82
      %88 = dma.hbm_to_vmem [thread:$0]  %s81, 512, %s83, [#allocation14], 128, 128, 8
    $region29: #{transformer_decoder_layer.1} parent=1 // pred_fallthru
      _
    // Predicated region
    $region30: #{transformer_decoder_layer.1} parent=1 // pred_check
      _
    $region31: #{transformer_decoder_layer.1} parent=1 // pred_check_branch
      %90 = sbr.rel (0) target = $region33
    $region32: #{transformer_decoder_layer.1} parent=1 // pred_region
      _
    $region33: #{transformer_decoder_layer.1} parent=1 // pred_fallthru
      _
    // Predicated region
    $region34: #{transformer_decoder_layer.1} parent=1 // pred_check
      _
    $region35: #{transformer_decoder_layer.1} parent=1 // pred_check_branch
      %92 = sbr.rel (0) target = $region37
    $region36: #{transformer_decoder_layer.1} parent=1 // pred_region
      _
    $region37: #{transformer_decoder_layer.1} parent=1 // pred_fallthru
      _
    // Predicated region
    $region38: #{transformer_decoder_layer.1} parent=1 // pred_check
      _
    $region39: #{transformer_decoder_layer.1} parent=1 // pred_check_branch
      %94 = sbr.rel (0) target = $region41
    $region40: #{transformer_decoder_layer.1} parent=1 // pred_region
      %96 = vsyncadd [#allocation17], 0
      %s97 = sshll.u32 %s9, 4
      %s98 = int_to_ptr.hbm [resolvable:$true] %s97
      %s99 = sshll.u32 [#allocation16], 4
      %s100 = int_to_ptr.vmem [resolvable:$true] %s99
      %105 = dma.hbm_to_vmem [thread:$0]  %s98, 256, %s100, [#allocation17], 128, 128, 8
    $region41: #{transformer_decoder_layer.1} parent=1 // pred_fallthru
      _
    // Predicated region
    $region42: #{transformer_decoder_layer.1} parent=1 // pred_check
      _
    $region43: #{transformer_decoder_layer.1} parent=1 // pred_check_branch
      %107 = sbr.rel (0) target = $region45
    $region44: #{transformer_decoder_layer.1} parent=1 // pred_region
      %109 = dma.done [#allocation8], 256
    $region45: #{transformer_decoder_layer.1} parent=1 // pred_fallthru
      _
    // Predicated region
    $region46: #{transformer_decoder_layer.1} parent=1 // pred_check
      _
    $region47: #{transformer_decoder_layer.1} parent=1 // pred_check_branch
      %111 = sbr.rel (0) target = $region49
    $region48: #{transformer_decoder_layer.1} parent=1 // pred_region
      %113 = dma.done [#allocation11], 256
    $region49: #{transformer_decoder_layer.1} parent=1 // pred_fallthru
      _
    // Predicated region
    $region50: #{transformer_decoder_layer.1} parent=1 // pred_check
      _
    $region51: #{transformer_decoder_layer.1} parent=1 // pred_check_branch
      %115 = sbr.rel (0) target = $region53
    $region52: #{transformer_decoder_layer.1} parent=1 // pred_region
      %117 = dma.done [#allocation11], 512
    $region53: #{transformer_decoder_layer.1} parent=1 // pred_fallthru
      _
    // Predicated region
    $region54: #{transformer_decoder_layer.1} parent=1 // pred_check
      _
    $region55: #{transformer_decoder_layer.1} parent=1 // pred_check_branch
      %119 = sbr.rel (0) target = $region57
    $region56: #{transformer_decoder_layer.1} parent=1 // pred_region
      %121 = dma.done [#allocation14], 3072
    $region57: #{transformer_decoder_layer.1} parent=1 // pred_fallthru
      _
    // Predicated region
    $region58: #{transformer_decoder_layer.1} parent=1 // pred_check
      _
    $region59: #{transformer_decoder_layer.1} parent=1 // pred_check_branch
      %123 = sbr.rel (0) target = $region61
    $region60: #{transformer_decoder_layer.1} parent=1 // pred_region
      %125 = dma.done [#allocation14], 512
    $region61: #{transformer_decoder_layer.1} parent=1 // pred_fallthru
      _
    // Predicated region
    $region62: #{transformer_decoder_layer.1} parent=1 // pred_check
      _
    $region63: #{transformer_decoder_layer.1} parent=1 // pred_check_branch
      %127 = sbr.rel (0) target = $region65
    $region64: #{transformer_decoder_layer.1} parent=1 // pred_region
      %129 = dma.done [#allocation17], 256
    $region65: #{transformer_decoder_layer.1} parent=1 // pred_fallthru
      _
    %v130 = vld [vmem:[#allocation7] sm:$0x1]
    %v131 = vld [vmem:[#allocation7 + $0x2] sm:$0x1]
    %v132 = vld [vmem:[#allocation7 + $0x4] sm:$0x1]
    %v133 = vld [vmem:[#allocation7 + $0x6] sm:$0x1]
    %v134 = vld [vmem:[#allocation7 + $0x8] sm:$0x1]
    %v135 = vld [vmem:[#allocation7 + $0xa] sm:$0x1]
    %v136 = vld [vmem:[#allocation7 + $0xc] sm:$0x1]
    %v137 = vld [vmem:[#allocation7 + $0xe] sm:$0x1]
    %v146 = vrot.slane %v131, 7
    %vm147 = vcmask 1041409
    %v148 = vsel %vm147, %v146, %v130
    %v149 = vrot.slane %v132, 6
    %vm150 = vcmask 1042434
    %v151 = vsel %vm150, %v149, %v148
    %v152 = vrot.slane %v133, 5
    %vm153 = vcmask 1043459
    %v154 = vsel %vm153, %v152, %v151
    %v155 = vrot.slane %v134, 4
    %vm156 = vcmask 1044484
    %v157 = vsel %vm156, %v155, %v154
    %v158 = vrot.slane %v135, 3
    %vm159 = vcmask 1045509
    %v160 = vsel %vm159, %v158, %v157
    %v161 = vrot.slane %v136, 2
    %vm162 = vcmask 1046534
    %v163 = vsel %vm162, %v161, %v160
    %v164 = vrot.slane %v137, 1
    %vm165 = vcmask 1047559
    %v166 = vsel %vm165, %v164, %v163
    %vm168 = vcmask 261120
    %169 = vst.msk [vmem:[#allocation2] sm:$0xff] %vm168, %v166
    %v170 = vld [vmem:[#allocation10] sm:$0x1]
    %v171 = vld [vmem:[#allocation10 + $0x2] sm:$0x1]
    %v172 = vld [vmem:[#allocation10 + $0x4] sm:$0x1]
    %v173 = vld [vmem:[#allocation10 + $0x6] sm:$0x1]
    %v174 = vld [vmem:[#allocation10 + $0x8] sm:$0x1]
    %v175 = vld [vmem:[#allocation10 + $0xa] sm:$0x1]
    %v176 = vld [vmem:[#allocation10 + $0xc] sm:$0x1]
    %v177 = vld [vmem:[#allocation10 + $0xe] sm:$0x1]
    %v186 = vrot.slane %v171, 7
    %v187 = vsel %vm147, %v186, %v170
    %v188 = vrot.slane %v172, 6
    %v189 = vsel %vm150, %v188, %v187
    %v190 = vrot.slane %v173, 5
    %v191 = vsel %vm153, %v190, %v189
    %v192 = vrot.slane %v174, 4
    %v193 = vsel %vm156, %v192, %v191
    %v194 = vrot.slane %v175, 3
    %v195 = vsel %vm159, %v194, %v193
    %v196 = vrot.slane %v176, 2
    %v197 = vsel %vm162, %v196, %v195
    %v198 = vrot.slane %v177, 1
    %v199 = vsel %vm165, %v198, %v197
    %201 = vst.msk [vmem:[#allocation3] sm:$0xff] %vm168, %v199
    %v202 = vld [vmem:[%s2] sm:$0x1]
    %v203 = vld [vmem:[%s2 + $0x2] sm:$0x1]
    %v204 = vld [vmem:[%s2 + $0x4] sm:$0x1]
    %v205 = vld [vmem:[%s2 + $0x6] sm:$0x1]
    %v206 = vld [vmem:[%s2 + $0x8] sm:$0x1]
    %v207 = vld [vmem:[%s2 + $0xa] sm:$0x1]
    %v208 = vld [vmem:[%s2 + $0xc] sm:$0x1]
    %v209 = vld [vmem:[%s2 + $0xe] sm:$0x1]
    %v210 = vld [vmem:[%s2 + $0x10] sm:$0x1]
    %v211 = vld [vmem:[%s2 + $0x12] sm:$0x1]
    %v212 = vld [vmem:[%s2 + $0x14] sm:$0x1]
    %v213 = vld [vmem:[%s2 + $0x16] sm:$0x1]
    %v214 = vld [vmem:[%s2 + $0x18] sm:$0x1]
    %v215 = vld [vmem:[%s2 + $0x1a] sm:$0x1]
    %v216 = vld [vmem:[%s2 + $0x1c] sm:$0x1]
    %v217 = vld [vmem:[%s2 + $0x1e] sm:$0x1]
    %v234 = vrot.slane %v203, 7
    %v235 = vsel %vm147, %v234, %v202
    %v236 = vrot.slane %v204, 6
    %v237 = vsel %vm150, %v236, %v235
    %v238 = vrot.slane %v205, 5
    %v239 = vsel %vm153, %v238, %v237
    %v240 = vrot.slane %v206, 4
    %v241 = vsel %vm156, %v240, %v239
    %v242 = vrot.slane %v207, 3
    %v243 = vsel %vm159, %v242, %v241
    %v244 = vrot.slane %v208, 2
    %v245 = vsel %vm162, %v244, %v243
    %v246 = vrot.slane %v209, 1
    %v247 = vsel %vm165, %v246, %v245
    %v248 = vrot.slane %v211, 7
    %v249 = vsel %vm147, %v248, %v210
    %v250 = vrot.slane %v212, 6
    %v251 = vsel %vm150, %v250, %v249
    %v252 = vrot.slane %v213, 5
    %v253 = vsel %vm153, %v252, %v251
    %v254 = vrot.slane %v214, 4
    %v255 = vsel %vm156, %v254, %v253
    %v256 = vrot.slane %v215, 3
    %v257 = vsel %vm159, %v256, %v255
    %v258 = vrot.slane %v216, 2
    %v259 = vsel %vm162, %v258, %v257
    %v260 = vrot.slane %v217, 1
    %v261 = vsel %vm165, %v260, %v259
    %264 = vst.msk [vmem:[#allocation4] sm:$0xff] %vm168, %v247
    %265 = vst.msk [vmem:[#allocation4 + $0x8] sm:$0xff] %vm168, %v261
    %v266 = vld [vmem:[#allocation12] sm:$0x1]
    %v267 = vld [vmem:[#allocation12 + $0x2] sm:$0x1]
    %v268 = vld [vmem:[#allocation12 + $0x4] sm:$0x1]
    %v269 = vld [vmem:[#allocation12 + $0x6] sm:$0x1]
    %v270 = vld [vmem:[#allocation12 + $0x8] sm:$0x1]
    %v271 = vld [vmem:[#allocation12 + $0xa] sm:$0x1]
    %v272 = vld [vmem:[#allocation12 + $0xc] sm:$0x1]
    %v273 = vld [vmem:[#allocation12 + $0xe] sm:$0x1]
    %v274 = vld [vmem:[#allocation12 + $0x10] sm:$0x1]
    %v275 = vld [vmem:[#allocation12 + $0x12] sm:$0x1]
    %v276 = vld [vmem:[#allocation12 + $0x14] sm:$0x1]
    %v277 = vld [vmem:[#allocation12 + $0x16] sm:$0x1]
    %v278 = vld [vmem:[#allocation12 + $0x18] sm:$0x1]
    %v279 = vld [vmem:[#allocation12 + $0x1a] sm:$0x1]
    %v280 = vld [vmem:[#allocation12 + $0x1c] sm:$0x1]
    %v281 = vld [vmem:[#allocation12 + $0x1e] sm:$0x1]
    %v282 = vadd.f32 %v202, %v266
    %v283 = vadd.f32 %v203, %v267
    %v284 = vadd.f32 %v204, %v268
    %v285 = vadd.f32 %v205, %v269
    %v286 = vadd.f32 %v206, %v270
    %v287 = vadd.f32 %v207, %v271
    %v288 = vadd.f32 %v208, %v272
    %v289 = vadd.f32 %v209, %v273
    %v290 = vadd.f32 %v210, %v274
    %v291 = vadd.f32 %v211, %v275
    %v292 = vadd.f32 %v212, %v276
    %v293 = vadd.f32 %v213, %v277
    %v294 = vadd.f32 %v214, %v278
    %v295 = vadd.f32 %v215, %v279
    %v296 = vadd.f32 %v216, %v280
    %v297 = vadd.f32 %v217, %v281
    %v314 = vrot.slane %v283, 7
    %v315 = vsel %vm147, %v314, %v282
    %v316 = vrot.slane %v284, 6
    %v317 = vsel %vm150, %v316, %v315
    %v318 = vrot.slane %v285, 5
    %v319 = vsel %vm153, %v318, %v317
    %v320 = vrot.slane %v286, 4
    %v321 = vsel %vm156, %v320, %v319
    %v322 = vrot.slane %v287, 3
    %v323 = vsel %vm159, %v322, %v321
    %v324 = vrot.slane %v288, 2
    %v325 = vsel %vm162, %v324, %v323
    %v326 = vrot.slane %v289, 1
    %v327 = vsel %vm165, %v326, %v325
    %v328 = vrot.slane %v291, 7
    %v329 = vsel %vm147, %v328, %v290
    %v330 = vrot.slane %v292, 6
    %v331 = vsel %vm150, %v330, %v329
    %v332 = vrot.slane %v293, 5
    %v333 = vsel %vm153, %v332, %v331
    %v334 = vrot.slane %v294, 4
    %v335 = vsel %vm156, %v334, %v333
    %v336 = vrot.slane %v295, 3
    %v337 = vsel %vm159, %v336, %v335
    %v338 = vrot.slane %v296, 2
    %v339 = vsel %vm162, %v338, %v337
    %v340 = vrot.slane %v297, 1
    %v341 = vsel %vm165, %v340, %v339
    %344 = vst.msk [vmem:[#allocation5] sm:$0xff] %vm168, %v327
    %345 = vst.msk [vmem:[#allocation5 + $0x8] sm:$0xff] %vm168, %v341
    %v346 = vld [vmem:[#allocation7 + $0x1] sm:$0x1]
    %v347 = vld [vmem:[#allocation7 + $0x3] sm:$0x1]
    %v348 = vld [vmem:[#allocation7 + $0x5] sm:$0x1]
    %v349 = vld [vmem:[#allocation7 + $0x7] sm:$0x1]
    %v350 = vld [vmem:[#allocation7 + $0x9] sm:$0x1]
    %v351 = vld [vmem:[#allocation7 + $0xb] sm:$0x1]
    %v352 = vld [vmem:[#allocation7 + $0xd] sm:$0x1]
    %v353 = vld [vmem:[#allocation7 + $0xf] sm:$0x1]
    %v362 = vrot.slane %v347, 7
    %v363 = vsel %vm147, %v362, %v346
    %v364 = vrot.slane %v348, 6
    %v365 = vsel %vm150, %v364, %v363
    %v366 = vrot.slane %v349, 5
    %v367 = vsel %vm153, %v366, %v365
    %v368 = vrot.slane %v350, 4
    %v369 = vsel %vm156, %v368, %v367
    %v370 = vrot.slane %v351, 3
    %v371 = vsel %vm159, %v370, %v369
    %v372 = vrot.slane %v352, 2
    %v373 = vsel %vm162, %v372, %v371
    %v374 = vrot.slane %v353, 1
    %v375 = vsel %vm165, %v374, %v373
    %377 = vst.msk [vmem:[#allocation2 + $0x8] sm:$0xff] %vm168, %v375
    %v378 = vld [vmem:[#allocation10 + $0x1] sm:$0x1]
    %v379 = vld [vmem:[#allocation10 + $0x3] sm:$0x1]
    %v380 = vld [vmem:[#allocation10 + $0x5] sm:$0x1]
    %v381 = vld [vmem:[#allocation10 + $0x7] sm:$0x1]
    %v382 = vld [vmem:[#allocation10 + $0x9] sm:$0x1]
    %v383 = vld [vmem:[#allocation10 + $0xb] sm:$0x1]
    %v384 = vld [vmem:[#allocation10 + $0xd] sm:$0x1]
    %v385 = vld [vmem:[#allocation10 + $0xf] sm:$0x1]
    %v394 = vrot.slane %v379, 7
    %v395 = vsel %vm147, %v394, %v378
    %v396 = vrot.slane %v380, 6
    %v397 = vsel %vm150, %v396, %v395
    %v398 = vrot.slane %v381, 5
    %v399 = vsel %vm153, %v398, %v397
    %v400 = vrot.slane %v382, 4
    %v401 = vsel %vm156, %v400, %v399
    %v402 = vrot.slane %v383, 3
    %v403 = vsel %vm159, %v402, %v401
    %v404 = vrot.slane %v384, 2
    %v405 = vsel %vm162, %v404, %v403
    %v406 = vrot.slane %v385, 1
    %v407 = vsel %vm165, %v406, %v405
    %409 = vst.msk [vmem:[#allocation3 + $0x8] sm:$0xff] %vm168, %v407
    %v410 = vld [vmem:[%s2 + $0x1] sm:$0x1]
    %v411 = vld [vmem:[%s2 + $0x3] sm:$0x1]
    %v412 = vld [vmem:[%s2 + $0x5] sm:$0x1]
    %v413 = vld [vmem:[%s2 + $0x7] sm:$0x1]
    %v414 = vld [vmem:[%s2 + $0x9] sm:$0x1]
    %v415 = vld [vmem:[%s2 + $0xb] sm:$0x1]
    %v416 = vld [vmem:[%s2 + $0xd] sm:$0x1]
    %v417 = vld [vmem:[%s2 + $0xf] sm:$0x1]
    %v418 = vld [vmem:[%s2 + $0x11] sm:$0x1]
    %v419 = vld [vmem:[%s2 + $0x13] sm:$0x1]
    %v420 = vld [vmem:[%s2 + $0x15] sm:$0x1]
    %v421 = vld [vmem:[%s2 + $0x17] sm:$0x1]
    %v422 = vld [vmem:[%s2 + $0x19] sm:$0x1]
    %v423 = vld [vmem:[%s2 + $0x1b] sm:$0x1]
    %v424 = vld [vmem:[%s2 + $0x1d] sm:$0x1]
    %v425 = vld [vmem:[%s2 + $0x1f] sm:$0x1]
    %v442 = vrot.slane %v411, 7
    %v443 = vsel %vm147, %v442, %v410
    %v444 = vrot.slane %v412, 6
    %v445 = vsel %vm150, %v444, %v443
    %v446 = vrot.slane %v413, 5
    %v447 = vsel %vm153, %v446, %v445
    %v448 = vrot.slane %v414, 4
    %v449 = vsel %vm156, %v448, %v447
    %v450 = vrot.slane %v415, 3
    %v451 = vsel %vm159, %v450, %v449
    %v452 = vrot.slane %v416, 2
    %v453 = vsel %vm162, %v452, %v451
    %v454 = vrot.slane %v417, 1
    %v455 = vsel %vm165, %v454, %v453
    %v456 = vrot.slane %v419, 7
    %v457 = vsel %vm147, %v456, %v418
    %v458 = vrot.slane %v420, 6
    %v459 = vsel %vm150, %v458, %v457
    %v460 = vrot.slane %v421, 5
    %v461 = vsel %vm153, %v460, %v459
    %v462 = vrot.slane %v422, 4
    %v463 = vsel %vm156, %v462, %v461
    %v464 = vrot.slane %v423, 3
    %v465 = vsel %vm159, %v464, %v463
    %v466 = vrot.slane %v424, 2
    %v467 = vsel %vm162, %v466, %v465
    %v468 = vrot.slane %v425, 1
    %v469 = vsel %vm165, %v468, %v467
    %472 = vst.msk [vmem:[#allocation4 + $0x10] sm:$0xff] %vm168, %v455
    %473 = vst.msk [vmem:[#allocation4 + $0x18] sm:$0xff] %vm168, %v469
    %v474 = vld [vmem:[#allocation12 + $0x1] sm:$0x1]
    %v475 = vld [vmem:[#allocation12 + $0x3] sm:$0x1]
    %v476 = vld [vmem:[#allocation12 + $0x5] sm:$0x1]
    %v477 = vld [vmem:[#allocation12 + $0x7] sm:$0x1]
    %v478 = vld [vmem:[#allocation12 + $0x9] sm:$0x1]
    %v479 = vld [vmem:[#allocation12 + $0xb] sm:$0x1]
    %v480 = vld [vmem:[#allocation12 + $0xd] sm:$0x1]
    %v481 = vld [vmem:[#allocation12 + $0xf] sm:$0x1]
    %v482 = vld [vmem:[#allocation12 + $0x11] sm:$0x1]
    %v483 = vld [vmem:[#allocation12 + $0x13] sm:$0x1]
    %v484 = vld [vmem:[#allocation12 + $0x15] sm:$0x1]
    %v485 = vld [vmem:[#allocation12 + $0x17] sm:$0x1]
    %v486 = vld [vmem:[#allocation12 + $0x19] sm:$0x1]
    %v487 = vld [vmem:[#allocation12 + $0x1b] sm:$0x1]
    %v488 = vld [vmem:[#allocation12 + $0x1d] sm:$0x1]
    %v489 = vld [vmem:[#allocation12 + $0x1f] sm:$0x1]
    %v490 = vadd.f32 %v410, %v474
    %v491 = vadd.f32 %v411, %v475
    %v492 = vadd.f32 %v412, %v476
    %v493 = vadd.f32 %v413, %v477
    %v494 = vadd.f32 %v414, %v478
    %v495 = vadd.f32 %v415, %v479
    %v496 = vadd.f32 %v416, %v480
    %v497 = vadd.f32 %v417, %v481
    %v498 = vadd.f32 %v418, %v482
    %v499 = vadd.f32 %v419, %v483
    %v500 = vadd.f32 %v420, %v484
    %v501 = vadd.f32 %v421, %v485
    %v502 = vadd.f32 %v422, %v486
    %v503 = vadd.f32 %v423, %v487
    %v504 = vadd.f32 %v424, %v488
    %v505 = vadd.f32 %v425, %v489
    %v522 = vrot.slane %v491, 7
    %v523 = vsel %vm147, %v522, %v490
    %v524 = vrot.slane %v492, 6
    %v525 = vsel %vm150, %v524, %v523
    %v526 = vrot.slane %v493, 5
    %v527 = vsel %vm153, %v526, %v525
    %v528 = vrot.slane %v494, 4
    %v529 = vsel %vm156, %v528, %v527
    %v530 = vrot.slane %v495, 3
    %v531 = vsel %vm159, %v530, %v529
    %v532 = vrot.slane %v496, 2
    %v533 = vsel %vm162, %v532, %v531
    %v534 = vrot.slane %v497, 1
    %v535 = vsel %vm165, %v534, %v533
    %v536 = vrot.slane %v499, 7
    %v537 = vsel %vm147, %v536, %v498
    %v538 = vrot.slane %v500, 6
    %v539 = vsel %vm150, %v538, %v537
    %v540 = vrot.slane %v501, 5
    %v541 = vsel %vm153, %v540, %v539
    %v542 = vrot.slane %v502, 4
    %v543 = vsel %vm156, %v542, %v541
    %v544 = vrot.slane %v503, 3
    %v545 = vsel %vm159, %v544, %v543
    %v546 = vrot.slane %v504, 2
    %v547 = vsel %vm162, %v546, %v545
    %v548 = vrot.slane %v505, 1
    %v549 = vsel %vm165, %v548, %v547
    %552 = vst.msk [vmem:[#allocation5 + $0x10] sm:$0xff] %vm168, %v535
    %553 = vst.msk [vmem:[#allocation5 + $0x18] sm:$0xff] %vm168, %v549
    %v554 = vld [vmem:[#allocation2] sm:$0xff]
    %v555 = vld [vmem:[#allocation2 + $0x8] sm:$0xff]
    %v556 = vld [vmem:[#allocation3] sm:$0xff]
    %v557 = vld [vmem:[#allocation3 + $0x8] sm:$0xff]
    %v558 = vadd.f32 %v554, %v556
    %v559 = vadd.f32 %v555, %v557
    %v560 = vld [vmem:[#allocation13] sm:$0xff]
    %v561 = vld [vmem:[#allocation13 + $0x8] sm:$0xff]
    %v562 = vld [vmem:[#allocation13 + $0x10] sm:$0xff]
    %v563 = vld [vmem:[#allocation13 + $0x18] sm:$0xff]
    %s564 = scalar_lea.vmem [#allocation13], 32
    %v565 = vld [vmem:[%s564] sm:$0xff]
    %v566 = vld [vmem:[%s564 + $0x8] sm:$0xff]
    %v567 = vld [vmem:[%s564 + $0x10] sm:$0xff]
    %v568 = vld [vmem:[%s564 + $0x18] sm:$0xff]
    %s569 = scalar_lea.vmem [#allocation13], 64
    %v570 = vld [vmem:[%s569] sm:$0xff]
    %v571 = vld [vmem:[%s569 + $0x8] sm:$0xff]
    %v572 = vld [vmem:[%s569 + $0x10] sm:$0xff]
    %v573 = vld [vmem:[%s569 + $0x18] sm:$0xff]
    %v574 = vld [vmem:[#allocation16] sm:$0x1]
    %v575 = vperm.slane %v574, 0
    %v577 = vsel %vm168, %v558, 0
    %v580 = vsel %vm168, %v559, 0
    %582 = vmatpush.msra.mxu0 0.0
    %583 = vmatpush.msra.mxu0 0.0
    %584 = vmatpush.msra.mxu0 0.0
    %585 = vmatpush.msra.mxu0 0.0
    %586 = vmatpush.msra.mxu0 0.0
    %587 = vmatpush.msra.mxu0 0.0
    %588 = vmatpush.msra.mxu0 0.0
    %589 = vmatpush.msra.mxu0 0.0
    %590 = vmatpush.msra.mxu0 0.0
    %591 = vmatpush.msra.mxu0 0.0
    %592 = vmatpush.msra.mxu0 0.0
    %593 = vmatpush.msra.mxu0 0.0
    %594 = vmatpush.msra.mxu0 %v563
    %595 = vmatpush.msra.mxu0 %v562
    %596 = vmatpush.msra.mxu0 %v561
    %597 = vmatpush.msra.mxu0 %v560
    %598 = vmatmul.f32.gmra.mxu0 %v577
    %v599 = vpop.f32.mrf.mxu0
    %v600 = vadd.f32 %v575, %v599
    %601 = vmatmul.f32.gmra.mxu0 %v580
    %v602 = vpop.f32.mrf.mxu0
    %v603 = vadd.f32 %v575, %v602
    %604 = vdwg.mxu0
    %v605 = vld [vmem:[#allocation16 + $0x1] sm:$0x1]
    %v606 = vperm.slane %v605, 0
    %607 = vmatpush.msra.mxu0 0.0
    %608 = vmatpush.msra.mxu0 0.0
    %609 = vmatpush.msra.mxu0 0.0
    %610 = vmatpush.msra.mxu0 0.0
    %611 = vmatpush.msra.mxu0 0.0
    %612 = vmatpush.msra.mxu0 0.0
    %613 = vmatpush.msra.mxu0 0.0
    %614 = vmatpush.msra.mxu0 0.0
    %615 = vmatpush.msra.mxu0 0.0
    %616 = vmatpush.msra.mxu0 0.0
    %617 = vmatpush.msra.mxu0 0.0
    %618 = vmatpush.msra.mxu0 0.0
    %619 = vmatpush.msra.mxu0 %v568
    %620 = vmatpush.msra.mxu0 %v567
    %621 = vmatpush.msra.mxu0 %v566
    %622 = vmatpush.msra.mxu0 %v565
    %623 = vmatmul.f32.gmra.mxu0 %v577
    %v624 = vpop.f32.mrf.mxu0
    %v625 = vadd.f32 %v606, %v624
    %626 = vmatmul.f32.gmra.mxu0 %v580
    %v627 = vpop.f32.mrf.mxu0
    %v628 = vadd.f32 %v606, %v627
    %629 = vdwg.mxu0
    %v630 = vld [vmem:[#allocation16 + $0x2] sm:$0x1]
    %v631 = vperm.slane %v630, 0
    %v633 = vsel %vm168, %v554, 0
    %v636 = vsel %vm168, %v555, 0
    %638 = vmatpush.msra.mxu0 0.0
    %639 = vmatpush.msra.mxu0 0.0
    %640 = vmatpush.msra.mxu0 0.0
    %641 = vmatpush.msra.mxu0 0.0
    %642 = vmatpush.msra.mxu0 0.0
    %643 = vmatpush.msra.mxu0 0.0
    %644 = vmatpush.msra.mxu0 0.0
    %645 = vmatpush.msra.mxu0 0.0
    %646 = vmatpush.msra.mxu0 0.0
    %647 = vmatpush.msra.mxu0 0.0
    %648 = vmatpush.msra.mxu0 0.0
    %649 = vmatpush.msra.mxu0 0.0
    %650 = vmatpush.msra.mxu0 %v573
    %651 = vmatpush.msra.mxu0 %v572
    %652 = vmatpush.msra.mxu0 %v571
    %653 = vmatpush.msra.mxu0 %v570
    %654 = vmatmul.f32.gmra.mxu0 %v633
    %v655 = vpop.f32.mrf.mxu0
    %v656 = vadd.f32 %v631, %v655
    %657 = vmatmul.f32.gmra.mxu0 %v636
    %v658 = vpop.f32.mrf.mxu0
    %v659 = vadd.f32 %v631, %v658
    %660 = vdwg.mxu0
    %vm661 = vcmask 64512
    %v663 = vsel %vm661, %v600, 0
    %v666 = vsel %vm661, %v625, 0
    %668 = vmatpush.xpose.msra.mxu0 0.0
    %669 = vmatpush.xpose.msra.mxu0 0.0
    %670 = vmatpush.xpose.msra.mxu0 0.0
    %671 = vmatpush.xpose.msra.mxu0 0.0
    %672 = vmatpush.xpose.msra.mxu0 0.0
    %673 = vmatpush.xpose.msra.mxu0 0.0
    %674 = vmatpush.xpose.msra.mxu0 0.0
    %675 = vmatpush.xpose.msra.mxu0 0.0
    %676 = vmatpush.xpose.msra.mxu0 0.0
    %677 = vmatpush.xpose.msra.mxu0 0.0
    %678 = vmatpush.xpose.msra.mxu0 0.0
    %679 = vmatpush.xpose.msra.mxu0 0.0
    %680 = vmatpush.xpose.msra.mxu0 0.0
    %681 = vmatpush.xpose.msra.mxu0 0.0
    %682 = vmatpush.xpose.msra.mxu0 0.0
    %683 = vmatpush.xpose.msra.mxu0 %v666
    %684 = vmatmul.f32.gmra.mxu0 %v663
    %v685 = vpop.f32.mrf.mxu0
    %v686 = vadd.f32 0.0, %v685
    %687 = vdwg.mxu0
    %v689 = vsel %vm661, %v603, 0
    %v692 = vsel %vm661, %v628, 0
    %694 = vmatpush.xpose.msra.mxu0 0.0
    %695 = vmatpush.xpose.msra.mxu0 0.0
    %696 = vmatpush.xpose.msra.mxu0 0.0
    %697 = vmatpush.xpose.msra.mxu0 0.0
    %698 = vmatpush.xpose.msra.mxu0 0.0
    %699 = vmatpush.xpose.msra.mxu0 0.0
    %700 = vmatpush.xpose.msra.mxu0 0.0
    %701 = vmatpush.xpose.msra.mxu0 0.0
    %702 = vmatpush.xpose.msra.mxu0 0.0
    %703 = vmatpush.xpose.msra.mxu0 0.0
    %704 = vmatpush.xpose.msra.mxu0 0.0
    %705 = vmatpush.xpose.msra.mxu0 0.0
    %706 = vmatpush.xpose.msra.mxu0 0.0
    %707 = vmatpush.xpose.msra.mxu0 0.0
    %708 = vmatpush.xpose.msra.mxu0 0.0
    %709 = vmatpush.xpose.msra.mxu0 %v692
    %710 = vmatmul.f32.gmra.mxu0 %v689
    %v711 = vpop.f32.mrf.mxu0
    %v712 = vadd.f32 0.0, %v711
    %713 = vdwg.mxu0
    %v714 = vsel %vm661, %v686, -inf
    %715 = vmax.xlane.f32.xlu0 %v714
    %v716 = vpop.xlane.xlu0 %715
    %v717 = vsel %vm661, %v712, -inf
    %718 = vmax.xlane.f32.xlu0 %v717
    %v719 = vpop.xlane.xlu0 %718
    %v720 = vsub.f32 %v686, %v716
    %v721 = vsub.f32 %v712, %v719
    %v722 = vmul.f32 %v720, 1.442695
    %v723 = vpow.pop %v722
    %v724 = vmul.f32 %v721, 1.442695
    %v725 = vpow.pop %v724
    %v726 = vsel %vm661, %v723, 0.0
    %727 = vadd.xlane.f32.xlu0 %v726
    %v728 = vpop.xlane.xlu0 %727
    %v729 = vsel %vm661, %v725, 0.0
    %730 = vadd.xlane.f32.xlu0 %v729
    %v731 = vpop.xlane.xlu0 %730
    %v732 = vrcp.pop %v728
    %v733 = vmul.f32 %v728, %v732
    %v734 = vsub.f32 1.0, %v733
    %v735 = vmul.f32 %v732, %v734
    %v736 = vadd.f32 %v732, %v735
    %vm737 = vweird.f32 %v728
    %vm738 = vweird.f32 %v732
    %vm739 = vmor %vm737, %vm738
    %v740 = vsel %vm739, %v732, %v736
    %v741 = vand.u32 2147483647, %v728
    %vm742 = vcmp.eq.f32.partialorder %v741, 8.507059e+37
    %v743 = vand.u32 %v728, 2147483648
    %v744 = vor.u32 1.1754944e-38, %v743
    %v745 = vsel %vm742, %v744, %v740
    %v746 = vmul.f32 %v723, %v745
    %v747 = vrcp.pop %v731
    %v748 = vmul.f32 %v731, %v747
    %v749 = vsub.f32 1.0, %v748
    %v750 = vmul.f32 %v747, %v749
    %v751 = vadd.f32 %v747, %v750
    %vm752 = vweird.f32 %v731
    %vm753 = vweird.f32 %v747
    %vm754 = vmor %vm752, %vm753
    %v755 = vsel %vm754, %v747, %v751
    %v756 = vand.u32 2147483647, %v731
    %vm757 = vcmp.eq.f32.partialorder %v756, 8.507059e+37
    %v758 = vand.u32 %v731, 2147483648
    %v759 = vor.u32 1.1754944e-38, %v758
    %v760 = vsel %vm757, %v759, %v755
    %v761 = vmul.f32 %v725, %v760
    %v763 = vsel %vm661, %v746, 0
    %765 = vmatpush.msra.mxu0 0.0
    %766 = vmatpush.msra.mxu0 0.0
    %767 = vmatpush.msra.mxu0 0.0
    %768 = vmatpush.msra.mxu0 0.0
    %769 = vmatpush.msra.mxu0 0.0
    %770 = vmatpush.msra.mxu0 0.0
    %771 = vmatpush.msra.mxu0 0.0
    %772 = vmatpush.msra.mxu0 0.0
    %773 = vmatpush.msra.mxu0 0.0
    %774 = vmatpush.msra.mxu0 0.0
    %775 = vmatpush.msra.mxu0 0.0
    %776 = vmatpush.msra.mxu0 0.0
    %777 = vmatpush.msra.mxu0 0.0
    %778 = vmatpush.msra.mxu0 0.0
    %779 = vmatpush.msra.mxu0 0.0
    %780 = vmatpush.msra.mxu0 %v656
    %781 = vmatmul.f32.gmra.mxu0 %v763
    %v782 = vpop.f32.mrf.mxu0
    %v783 = vadd.f32 0.0, %v782
    %784 = vdwg.mxu0
    %v786 = vsel %vm661, %v761, 0
    %788 = vmatpush.msra.mxu0 0.0
    %789 = vmatpush.msra.mxu0 0.0
    %790 = vmatpush.msra.mxu0 0.0
    %791 = vmatpush.msra.mxu0 0.0
    %792 = vmatpush.msra.mxu0 0.0
    %793 = vmatpush.msra.mxu0 0.0
    %794 = vmatpush.msra.mxu0 0.0
    %795 = vmatpush.msra.mxu0 0.0
    %796 = vmatpush.msra.mxu0 0.0
    %797 = vmatpush.msra.mxu0 0.0
    %798 = vmatpush.msra.mxu0 0.0
    %799 = vmatpush.msra.mxu0 0.0
    %800 = vmatpush.msra.mxu0 0.0
    %801 = vmatpush.msra.mxu0 0.0
    %802 = vmatpush.msra.mxu0 0.0
    %803 = vmatpush.msra.mxu0 %v659
    %804 = vmatmul.f32.gmra.mxu0 %v786
    %v805 = vpop.f32.mrf.mxu0
    %v806 = vadd.f32 0.0, %v805
    %807 = vdwg.mxu0
    %808 = vst.msk [vmem:[#allocation6] sm:$0xff] %vm661, %v783
    %809 = vst.msk [vmem:[#allocation6 + $0x8] sm:$0xff] %vm661, %v806
    %810 = vrot.lane.b32.xlu0 %v600, 120
    %v811 = vpop.permute.xlu0 %810
    %812 = vrot.lane.b32.xlu0 %v625, 120
    %v813 = vpop.permute.xlu0 %812
    %v814 = vsel %vm661, %v811, 0
    %v816 = vsel %vm661, %v813, 0
    %818 = vmatpush.xpose.msra.mxu0 0.0
    %819 = vmatpush.xpose.msra.mxu0 0.0
    %820 = vmatpush.xpose.msra.mxu0 0.0
    %821 = vmatpush.xpose.msra.mxu0 0.0
    %822 = vmatpush.xpose.msra.mxu0 0.0
    %823 = vmatpush.xpose.msra.mxu0 0.0
    %824 = vmatpush.xpose.msra.mxu0 0.0
    %825 = vmatpush.xpose.msra.mxu0 0.0
    %826 = vmatpush.xpose.msra.mxu0 0.0
    %827 = vmatpush.xpose.msra.mxu0 0.0
    %828 = vmatpush.xpose.msra.mxu0 0.0
    %829 = vmatpush.xpose.msra.mxu0 0.0
    %830 = vmatpush.xpose.msra.mxu0 0.0
    %831 = vmatpush.xpose.msra.mxu0 0.0
    %832 = vmatpush.xpose.msra.mxu0 0.0
    %833 = vmatpush.xpose.msra.mxu0 %v816
    %834 = vmatmul.f32.gmra.mxu0 %v814
    %v835 = vpop.f32.mrf.mxu0
    %v836 = vadd.f32 0.0, %v835
    %837 = vdwg.mxu0
    %838 = vrot.lane.b32.xlu0 %v603, 120
    %v839 = vpop.permute.xlu0 %838
    %840 = vrot.lane.b32.xlu0 %v628, 120
    %v841 = vpop.permute.xlu0 %840
    %v842 = vsel %vm661, %v839, 0
    %v844 = vsel %vm661, %v841, 0
    %846 = vmatpush.xpose.msra.mxu0 0.0
    %847 = vmatpush.xpose.msra.mxu0 0.0
    %848 = vmatpush.xpose.msra.mxu0 0.0
    %849 = vmatpush.xpose.msra.mxu0 0.0
    %850 = vmatpush.xpose.msra.mxu0 0.0
    %851 = vmatpush.xpose.msra.mxu0 0.0
    %852 = vmatpush.xpose.msra.mxu0 0.0
    %853 = vmatpush.xpose.msra.mxu0 0.0
    %854 = vmatpush.xpose.msra.mxu0 0.0
    %855 = vmatpush.xpose.msra.mxu0 0.0
    %856 = vmatpush.xpose.msra.mxu0 0.0
    %857 = vmatpush.xpose.msra.mxu0 0.0
    %858 = vmatpush.xpose.msra.mxu0 0.0
    %859 = vmatpush.xpose.msra.mxu0 0.0
    %860 = vmatpush.xpose.msra.mxu0 0.0
    %861 = vmatpush.xpose.msra.mxu0 %v844
    %862 = vmatmul.f32.gmra.mxu0 %v842
    %v863 = vpop.f32.mrf.mxu0
    %v864 = vadd.f32 0.0, %v863
    %865 = vdwg.mxu0
    %v866 = vsel %vm661, %v836, -inf
    %867 = vmax.xlane.f32.xlu0 %v866
    %v868 = vpop.xlane.xlu0 %867
    %v869 = vsel %vm661, %v864, -inf
    %870 = vmax.xlane.f32.xlu0 %v869
    %v871 = vpop.xlane.xlu0 %870
    %v872 = vsub.f32 %v836, %v868
    %v873 = vsub.f32 %v864, %v871
    %v874 = vmul.f32 %v872, 1.442695
    %v875 = vpow.pop %v874
    %v876 = vmul.f32 %v873, 1.442695
    %v877 = vpow.pop %v876
    %v878 = vsel %vm661, %v875, 0.0
    %879 = vadd.xlane.f32.xlu0 %v878
    %v880 = vpop.xlane.xlu0 %879
    %v881 = vsel %vm661, %v877, 0.0
    %882 = vadd.xlane.f32.xlu0 %v881
    %v883 = vpop.xlane.xlu0 %882
    %v884 = vrcp.pop %v880
    %v885 = vmul.f32 %v880, %v884
    %v886 = vsub.f32 1.0, %v885
    %v887 = vmul.f32 %v884, %v886
    %v888 = vadd.f32 %v884, %v887
    %vm889 = vweird.f32 %v880
    %vm890 = vweird.f32 %v884
    %vm891 = vmor %vm889, %vm890
    %v892 = vsel %vm891, %v884, %v888
    %v893 = vand.u32 2147483647, %v880
    %vm894 = vcmp.eq.f32.partialorder %v893, 8.507059e+37
    %v895 = vand.u32 %v880, 2147483648
    %v896 = vor.u32 1.1754944e-38, %v895
    %v897 = vsel %vm894, %v896, %v892
    %v898 = vmul.f32 %v875, %v897
    %v899 = vrcp.pop %v883
    %v900 = vmul.f32 %v883, %v899
    %v901 = vsub.f32 1.0, %v900
    %v902 = vmul.f32 %v899, %v901
    %v903 = vadd.f32 %v899, %v902
    %vm904 = vweird.f32 %v883
    %vm905 = vweird.f32 %v899
    %vm906 = vmor %vm904, %vm905
    %v907 = vsel %vm906, %v899, %v903
    %v908 = vand.u32 2147483647, %v883
    %vm909 = vcmp.eq.f32.partialorder %v908, 8.507059e+37
    %v910 = vand.u32 %v883, 2147483648
    %v911 = vor.u32 1.1754944e-38, %v910
    %v912 = vsel %vm909, %v911, %v907
    %v913 = vmul.f32 %v877, %v912
    %915 = vrot.lane.b32.xlu0 %v656, 120
    %v916 = vpop.permute.xlu0 %915
    %v919 = vsel %vm661, %v898, 0
    %921 = vmatpush.msra.mxu0 0.0
    %922 = vmatpush.msra.mxu0 0.0
    %923 = vmatpush.msra.mxu0 0.0
    %924 = vmatpush.msra.mxu0 0.0
    %925 = vmatpush.msra.mxu0 0.0
    %926 = vmatpush.msra.mxu0 0.0
    %927 = vmatpush.msra.mxu0 0.0
    %928 = vmatpush.msra.mxu0 0.0
    %929 = vmatpush.msra.mxu0 0.0
    %930 = vmatpush.msra.mxu0 0.0
    %931 = vmatpush.msra.mxu0 0.0
    %932 = vmatpush.msra.mxu0 0.0
    %933 = vmatpush.msra.mxu0 0.0
    %934 = vmatpush.msra.mxu0 0.0
    %935 = vmatpush.msra.mxu0 0.0
    %936 = vmatpush.msra.mxu0 %v916
    %937 = vmatmul.f32.gmra.mxu0 %v919
    %v938 = vpop.f32.mrf.mxu0
    %v939 = vadd.f32 0.0, %v938
    %940 = vdwg.mxu0
    %942 = vrot.lane.b32.xlu0 %v659, 120
    %v943 = vpop.permute.xlu0 %942
    %v946 = vsel %vm661, %v913, 0
    %948 = vmatpush.msra.mxu0 0.0
    %949 = vmatpush.msra.mxu0 0.0
    %950 = vmatpush.msra.mxu0 0.0
    %951 = vmatpush.msra.mxu0 0.0
    %952 = vmatpush.msra.mxu0 0.0
    %953 = vmatpush.msra.mxu0 0.0
    %954 = vmatpush.msra.mxu0 0.0
    %955 = vmatpush.msra.mxu0 0.0
    %956 = vmatpush.msra.mxu0 0.0
    %957 = vmatpush.msra.mxu0 0.0
    %958 = vmatpush.msra.mxu0 0.0
    %959 = vmatpush.msra.mxu0 0.0
    %960 = vmatpush.msra.mxu0 0.0
    %961 = vmatpush.msra.mxu0 0.0
    %962 = vmatpush.msra.mxu0 0.0
    %963 = vmatpush.msra.mxu0 %v943
    %964 = vmatmul.f32.gmra.mxu0 %v946
    %v965 = vpop.f32.mrf.mxu0
    %v966 = vadd.f32 0.0, %v965
    %967 = vdwg.mxu0
    %970 = vrot.lane.b32.xlu0 %v939, 8
    %v971 = vpop.permute.xlu0 %970
    %972 = vrot.lane.b32.xlu0 %v966, 8
    %v973 = vpop.permute.xlu0 %972
    %vm976 = vcmask 130112
    %977 = vst.msk [vmem:[#allocation6] sm:$0xff] %vm976, %v971
    %978 = vst.msk [vmem:[#allocation6 + $0x8] sm:$0xff] %vm976, %v973
    %979 = vrot.lane.b32.xlu0 %v600, 112
    %v980 = vpop.permute.xlu0 %979
    %981 = vrot.lane.b32.xlu0 %v625, 112
    %v982 = vpop.permute.xlu0 %981
    %v983 = vsel %vm661, %v980, 0
    %v985 = vsel %vm661, %v982, 0
    %987 = vmatpush.xpose.msra.mxu0 0.0
    %988 = vmatpush.xpose.msra.mxu0 0.0
    %989 = vmatpush.xpose.msra.mxu0 0.0
    %990 = vmatpush.xpose.msra.mxu0 0.0
    %991 = vmatpush.xpose.msra.mxu0 0.0
    %992 = vmatpush.xpose.msra.mxu0 0.0
    %993 = vmatpush.xpose.msra.mxu0 0.0
    %994 = vmatpush.xpose.msra.mxu0 0.0
    %995 = vmatpush.xpose.msra.mxu0 0.0
    %996 = vmatpush.xpose.msra.mxu0 0.0
    %997 = vmatpush.xpose.msra.mxu0 0.0
    %998 = vmatpush.xpose.msra.mxu0 0.0
    %999 = vmatpush.xpose.msra.mxu0 0.0
    %1000 = vmatpush.xpose.msra.mxu0 0.0
    %1001 = vmatpush.xpose.msra.mxu0 0.0
    %1002 = vmatpush.xpose.msra.mxu0 %v985
    %1003 = vmatmul.f32.gmra.mxu0 %v983
    %v1004 = vpop.f32.mrf.mxu0
    %v1005 = vadd.f32 0.0, %v1004
    %1006 = vdwg.mxu0
    %1007 = vrot.lane.b32.xlu0 %v603, 112
    %v1008 = vpop.permute.xlu0 %1007
    %1009 = vrot.lane.b32.xlu0 %v628, 112
    %v1010 = vpop.permute.xlu0 %1009
    %v1011 = vsel %vm661, %v1008, 0
    %v1013 = vsel %vm661, %v1010, 0
    %1015 = vmatpush.xpose.msra.mxu0 0.0
    %1016 = vmatpush.xpose.msra.mxu0 0.0
    %1017 = vmatpush.xpose.msra.mxu0 0.0
    %1018 = vmatpush.xpose.msra.mxu0 0.0
    %1019 = vmatpush.xpose.msra.mxu0 0.0
    %1020 = vmatpush.xpose.msra.mxu0 0.0
    %1021 = vmatpush.xpose.msra.mxu0 0.0
    %1022 = vmatpush.xpose.msra.mxu0 0.0
    %1023 = vmatpush.xpose.msra.mxu0 0.0
    %1024 = vmatpush.xpose.msra.mxu0 0.0
    %1025 = vmatpush.xpose.msra.mxu0 0.0
    %1026 = vmatpush.xpose.msra.mxu0 0.0
    %1027 = vmatpush.xpose.msra.mxu0 0.0
    %1028 = vmatpush.xpose.msra.mxu0 0.0
    %1029 = vmatpush.xpose.msra.mxu0 0.0
    %1030 = vmatpush.xpose.msra.mxu0 %v1013
    %1031 = vmatmul.f32.gmra.mxu0 %v1011
    %v1032 = vpop.f32.mrf.mxu0
    %v1033 = vadd.f32 0.0, %v1032
    %1034 = vdwg.mxu0
    %v1035 = vsel %vm661, %v1005, -inf
    %1036 = vmax.xlane.f32.xlu0 %v1035
    %v1037 = vpop.xlane.xlu0 %1036
    %v1038 = vsel %vm661, %v1033, -inf
    %1039 = vmax.xlane.f32.xlu0 %v1038
    %v1040 = vpop.xlane.xlu0 %1039
    %v1041 = vsub.f32 %v1005, %v1037
    %v1042 = vsub.f32 %v1033, %v1040
    %v1043 = vmul.f32 %v1041, 1.442695
    %v1044 = vpow.pop %v1043
    %v1045 = vmul.f32 %v1042, 1.442695
    %v1046 = vpow.pop %v1045
    %v1047 = vsel %vm661, %v1044, 0.0
    %1048 = vadd.xlane.f32.xlu0 %v1047
    %v1049 = vpop.xlane.xlu0 %1048
    %v1050 = vsel %vm661, %v1046, 0.0
    %1051 = vadd.xlane.f32.xlu0 %v1050
    %v1052 = vpop.xlane.xlu0 %1051
    %v1053 = vrcp.pop %v1049
    %v1054 = vmul.f32 %v1049, %v1053
    %v1055 = vsub.f32 1.0, %v1054
    %v1056 = vmul.f32 %v1053, %v1055
    %v1057 = vadd.f32 %v1053, %v1056
    %vm1058 = vweird.f32 %v1049
    %vm1059 = vweird.f32 %v1053
    %vm1060 = vmor %vm1058, %vm1059
    %v1061 = vsel %vm1060, %v1053, %v1057
    %v1062 = vand.u32 2147483647, %v1049
    %vm1063 = vcmp.eq.f32.partialorder %v1062, 8.507059e+37
    %v1064 = vand.u32 %v1049, 2147483648
    %v1065 = vor.u32 1.1754944e-38, %v1064
    %v1066 = vsel %vm1063, %v1065, %v1061
    %v1067 = vmul.f32 %v1044, %v1066
    %v1068 = vrcp.pop %v1052
    %v1069 = vmul.f32 %v1052, %v1068
    %v1070 = vsub.f32 1.0, %v1069
    %v1071 = vmul.f32 %v1068, %v1070
    %v1072 = vadd.f32 %v1068, %v1071
    %vm1073 = vweird.f32 %v1052
    %vm1074 = vweird.f32 %v1068
    %vm1075 = vmor %vm1073, %vm1074
    %v1076 = vsel %vm1075, %v1068, %v1072
    %v1077 = vand.u32 2147483647, %v1052
    %vm1078 = vcmp.eq.f32.partialorder %v1077, 8.507059e+37
    %v1079 = vand.u32 %v1052, 2147483648
    %v1080 = vor.u32 1.1754944e-38, %v1079
    %v1081 = vsel %vm1078, %v1080, %v1076
    %v1082 = vmul.f32 %v1046, %v1081
    %1083 = vrot.lane.b32.xlu0 %v656, 112
    %v1084 = vpop.permute.xlu0 %1083
    %v1087 = vsel %vm661, %v1067, 0
    %1089 = vmatpush.msra.mxu0 0.0
    %1090 = vmatpush.msra.mxu0 0.0
    %1091 = vmatpush.msra.mxu0 0.0
    %1092 = vmatpush.msra.mxu0 0.0
    %1093 = vmatpush.msra.mxu0 0.0
    %1094 = vmatpush.msra.mxu0 0.0
    %1095 = vmatpush.msra.mxu0 0.0
    %1096 = vmatpush.msra.mxu0 0.0
    %1097 = vmatpush.msra.mxu0 0.0
    %1098 = vmatpush.msra.mxu0 0.0
    %1099 = vmatpush.msra.mxu0 0.0
    %1100 = vmatpush.msra.mxu0 0.0
    %1101 = vmatpush.msra.mxu0 0.0
    %1102 = vmatpush.msra.mxu0 0.0
    %1103 = vmatpush.msra.mxu0 0.0
    %1104 = vmatpush.msra.mxu0 %v1084
    %1105 = vmatmul.f32.gmra.mxu0 %v1087
    %v1106 = vpop.f32.mrf.mxu0
    %v1107 = vadd.f32 0.0, %v1106
    %1108 = vdwg.mxu0
    %1109 = vrot.lane.b32.xlu0 %v659, 112
    %v1110 = vpop.permute.xlu0 %1109
    %v1113 = vsel %vm661, %v1082, 0
    %1115 = vmatpush.msra.mxu0 0.0
    %1116 = vmatpush.msra.mxu0 0.0
    %1117 = vmatpush.msra.mxu0 0.0
    %1118 = vmatpush.msra.mxu0 0.0
    %1119 = vmatpush.msra.mxu0 0.0
    %1120 = vmatpush.msra.mxu0 0.0
    %1121 = vmatpush.msra.mxu0 0.0
    %1122 = vmatpush.msra.mxu0 0.0
    %1123 = vmatpush.msra.mxu0 0.0
    %1124 = vmatpush.msra.mxu0 0.0
    %1125 = vmatpush.msra.mxu0 0.0
    %1126 = vmatpush.msra.mxu0 0.0
    %1127 = vmatpush.msra.mxu0 0.0
    %1128 = vmatpush.msra.mxu0 0.0
    %1129 = vmatpush.msra.mxu0 0.0
    %1130 = vmatpush.msra.mxu0 %v1110
    %1131 = vmatmul.f32.gmra.mxu0 %v1113
    %v1132 = vpop.f32.mrf.mxu0
    %v1133 = vadd.f32 0.0, %v1132
    %1134 = vdwg.mxu0
    %1137 = vrot.lane.b32.xlu0 %v1107, 16
    %v1138 = vpop.permute.xlu0 %1137
    %1139 = vrot.lane.b32.xlu0 %v1133, 16
    %v1140 = vpop.permute.xlu0 %1139
    %vm1143 = vcmask 195712
    %1144 = vst.msk [vmem:[#allocation6] sm:$0xff] %vm1143, %v1138
    %1145 = vst.msk [vmem:[#allocation6 + $0x8] sm:$0xff] %vm1143, %v1140
    %1146 = vrot.lane.b32.xlu0 %v600, 104
    %v1147 = vpop.permute.xlu0 %1146
    %1148 = vrot.lane.b32.xlu0 %v625, 104
    %v1149 = vpop.permute.xlu0 %1148
    %v1150 = vsel %vm661, %v1147, 0
    %v1152 = vsel %vm661, %v1149, 0
    %1154 = vmatpush.xpose.msra.mxu0 0.0
    %1155 = vmatpush.xpose.msra.mxu0 0.0
    %1156 = vmatpush.xpose.msra.mxu0 0.0
    %1157 = vmatpush.xpose.msra.mxu0 0.0
    %1158 = vmatpush.xpose.msra.mxu0 0.0
    %1159 = vmatpush.xpose.msra.mxu0 0.0
    %1160 = vmatpush.xpose.msra.mxu0 0.0
    %1161 = vmatpush.xpose.msra.mxu0 0.0
    %1162 = vmatpush.xpose.msra.mxu0 0.0
    %1163 = vmatpush.xpose.msra.mxu0 0.0
    %1164 = vmatpush.xpose.msra.mxu0 0.0
    %1165 = vmatpush.xpose.msra.mxu0 0.0
    %1166 = vmatpush.xpose.msra.mxu0 0.0
    %1167 = vmatpush.xpose.msra.mxu0 0.0
    %1168 = vmatpush.xpose.msra.mxu0 0.0
    %1169 = vmatpush.xpose.msra.mxu0 %v1152
    %1170 = vmatmul.f32.gmra.mxu0 %v1150
    %v1171 = vpop.f32.mrf.mxu0
    %v1172 = vadd.f32 0.0, %v1171
    %1173 = vdwg.mxu0
    %1174 = vrot.lane.b32.xlu0 %v603, 104
    %v1175 = vpop.permute.xlu0 %1174
    %1176 = vrot.lane.b32.xlu0 %v628, 104
    %v1177 = vpop.permute.xlu0 %1176
    %v1178 = vsel %vm661, %v1175, 0
    %v1180 = vsel %vm661, %v1177, 0
    %1182 = vmatpush.xpose.msra.mxu0 0.0
    %1183 = vmatpush.xpose.msra.mxu0 0.0
    %1184 = vmatpush.xpose.msra.mxu0 0.0
    %1185 = vmatpush.xpose.msra.mxu0 0.0
    %1186 = vmatpush.xpose.msra.mxu0 0.0
    %1187 = vmatpush.xpose.msra.mxu0 0.0
    %1188 = vmatpush.xpose.msra.mxu0 0.0
    %1189 = vmatpush.xpose.msra.mxu0 0.0
    %1190 = vmatpush.xpose.msra.mxu0 0.0
    %1191 = vmatpush.xpose.msra.mxu0 0.0
    %1192 = vmatpush.xpose.msra.mxu0 0.0
    %1193 = vmatpush.xpose.msra.mxu0 0.0
    %1194 = vmatpush.xpose.msra.mxu0 0.0
    %1195 = vmatpush.xpose.msra.mxu0 0.0
    %1196 = vmatpush.xpose.msra.mxu0 0.0
    %1197 = vmatpush.xpose.msra.mxu0 %v1180
    %1198 = vmatmul.f32.gmra.mxu0 %v1178
    %v1199 = vpop.f32.mrf.mxu0
    %v1200 = vadd.f32 0.0, %v1199
    %1201 = vdwg.mxu0
    %v1202 = vsel %vm661, %v1172, -inf
    %1203 = vmax.xlane.f32.xlu0 %v1202
    %v1204 = vpop.xlane.xlu0 %1203
    %v1205 = vsel %vm661, %v1200, -inf
    %1206 = vmax.xlane.f32.xlu0 %v1205
    %v1207 = vpop.xlane.xlu0 %1206
    %v1208 = vsub.f32 %v1172, %v1204
    %v1209 = vsub.f32 %v1200, %v1207
    %v1210 = vmul.f32 %v1208, 1.442695
    %v1211 = vpow.pop %v1210
    %v1212 = vmul.f32 %v1209, 1.442695
    %v1213 = vpow.pop %v1212
    %v1214 = vsel %vm661, %v1211, 0.0
    %1215 = vadd.xlane.f32.xlu0 %v1214
    %v1216 = vpop.xlane.xlu0 %1215
    %v1217 = vsel %vm661, %v1213, 0.0
    %1218 = vadd.xlane.f32.xlu0 %v1217
    %v1219 = vpop.xlane.xlu0 %1218
    %v1220 = vrcp.pop %v1216
    %v1221 = vmul.f32 %v1216, %v1220
    %v1222 = vsub.f32 1.0, %v1221
    %v1223 = vmul.f32 %v1220, %v1222
    %v1224 = vadd.f32 %v1220, %v1223
    %vm1225 = vweird.f32 %v1216
    %vm1226 = vweird.f32 %v1220
    %vm1227 = vmor %vm1225, %vm1226
    %v1228 = vsel %vm1227, %v1220, %v1224
    %v1229 = vand.u32 2147483647, %v1216
    %vm1230 = vcmp.eq.f32.partialorder %v1229, 8.507059e+37
    %v1231 = vand.u32 %v1216, 2147483648
    %v1232 = vor.u32 1.1754944e-38, %v1231
    %v1233 = vsel %vm1230, %v1232, %v1228
    %v1234 = vmul.f32 %v1211, %v1233
    %v1235 = vrcp.pop %v1219
    %v1236 = vmul.f32 %v1219, %v1235
    %v1237 = vsub.f32 1.0, %v1236
    %v1238 = vmul.f32 %v1235, %v1237
    %v1239 = vadd.f32 %v1235, %v1238
    %vm1240 = vweird.f32 %v1219
    %vm1241 = vweird.f32 %v1235
    %vm1242 = vmor %vm1240, %vm1241
    %v1243 = vsel %vm1242, %v1235, %v1239
    %v1244 = vand.u32 2147483647, %v1219
    %vm1245 = vcmp.eq.f32.partialorder %v1244, 8.507059e+37
    %v1246 = vand.u32 %v1219, 2147483648
    %v1247 = vor.u32 1.1754944e-38, %v1246
    %v1248 = vsel %vm1245, %v1247, %v1243
    %v1249 = vmul.f32 %v1213, %v1248
    %1250 = vrot.lane.b32.xlu0 %v656, 104
    %v1251 = vpop.permute.xlu0 %1250
    %v1254 = vsel %vm661, %v1234, 0
    %1256 = vmatpush.msra.mxu0 0.0
    %1257 = vmatpush.msra.mxu0 0.0
    %1258 = vmatpush.msra.mxu0 0.0
    %1259 = vmatpush.msra.mxu0 0.0
    %1260 = vmatpush.msra.mxu0 0.0
    %1261 = vmatpush.msra.mxu0 0.0
    %1262 = vmatpush.msra.mxu0 0.0
    %1263 = vmatpush.msra.mxu0 0.0
    %1264 = vmatpush.msra.mxu0 0.0
    %1265 = vmatpush.msra.mxu0 0.0
    %1266 = vmatpush.msra.mxu0 0.0
    %1267 = vmatpush.msra.mxu0 0.0
    %1268 = vmatpush.msra.mxu0 0.0
    %1269 = vmatpush.msra.mxu0 0.0
    %1270 = vmatpush.msra.mxu0 0.0
    %1271 = vmatpush.msra.mxu0 %v1251
    %1272 = vmatmul.f32.gmra.mxu0 %v1254
    %v1273 = vpop.f32.mrf.mxu0
    %v1274 = vadd.f32 0.0, %v1273
    %1275 = vdwg.mxu0
    %1276 = vrot.lane.b32.xlu0 %v659, 104
    %v1277 = vpop.permute.xlu0 %1276
    %v1280 = vsel %vm661, %v1249, 0
    %1282 = vmatpush.msra.mxu0 0.0
    %1283 = vmatpush.msra.mxu0 0.0
    %1284 = vmatpush.msra.mxu0 0.0
    %1285 = vmatpush.msra.mxu0 0.0
    %1286 = vmatpush.msra.mxu0 0.0
    %1287 = vmatpush.msra.mxu0 0.0
    %1288 = vmatpush.msra.mxu0 0.0
    %1289 = vmatpush.msra.mxu0 0.0
    %1290 = vmatpush.msra.mxu0 0.0
    %1291 = vmatpush.msra.mxu0 0.0
    %1292 = vmatpush.msra.mxu0 0.0
    %1293 = vmatpush.msra.mxu0 0.0
    %1294 = vmatpush.msra.mxu0 0.0
    %1295 = vmatpush.msra.mxu0 0.0
    %1296 = vmatpush.msra.mxu0 0.0
    %1297 = vmatpush.msra.mxu0 %v1277
    %1298 = vmatmul.f32.gmra.mxu0 %v1280
    %v1299 = vpop.f32.mrf.mxu0
    %v1300 = vadd.f32 0.0, %v1299
    %1301 = vdwg.mxu0
    %1304 = vrot.lane.b32.xlu0 %v1274, 24
    %v1305 = vpop.permute.xlu0 %1304
    %1306 = vrot.lane.b32.xlu0 %v1300, 24
    %v1307 = vpop.permute.xlu0 %1306
    %vm1310 = vcmask 261312
    %1311 = vst.msk [vmem:[#allocation6] sm:$0xff] %vm1310, %v1305
    %1312 = vst.msk [vmem:[#allocation6 + $0x8] sm:$0xff] %vm1310, %v1307
    %v1313 = vld [vmem:[%s5] sm:$0xff]
    %v1314 = vld [vmem:[%s5 + $0x8] sm:$0xff]
    %v1315 = vld [vmem:[%s5 + $0x10] sm:$0xff]
    %v1316 = vld [vmem:[%s5 + $0x18] sm:$0xff]
    %v1317 = vld [vmem:[#allocation6] sm:$0xff]
    %v1318 = vld [vmem:[#allocation6 + $0x8] sm:$0xff]
    %v1319 = vld [vmem:[#allocation16 + $0x3] sm:$0x1]
    %v1320 = vperm.slane %v1319, 0
    %v1322 = vsel %vm168, %v1317, 0
    %v1325 = vsel %vm168, %v1318, 0
    %1327 = vmatpush.msra.mxu0 0.0
    %1328 = vmatpush.msra.mxu0 0.0
    %1329 = vmatpush.msra.mxu0 0.0
    %1330 = vmatpush.msra.mxu0 0.0
    %1331 = vmatpush.msra.mxu0 0.0
    %1332 = vmatpush.msra.mxu0 0.0
    %1333 = vmatpush.msra.mxu0 0.0
    %1334 = vmatpush.msra.mxu0 0.0
    %1335 = vmatpush.msra.mxu0 0.0
    %1336 = vmatpush.msra.mxu0 0.0
    %1337 = vmatpush.msra.mxu0 0.0
    %1338 = vmatpush.msra.mxu0 0.0
    %1339 = vmatpush.msra.mxu0 %v1316
    %1340 = vmatpush.msra.mxu0 %v1315
    %1341 = vmatpush.msra.mxu0 %v1314
    %1342 = vmatpush.msra.mxu0 %v1313
    %1343 = vmatmul.f32.gmra.mxu0 %v1322
    %v1344 = vpop.f32.mrf.mxu0
    %v1345 = vadd.f32 %v1320, %v1344
    %1346 = vmatmul.f32.gmra.mxu0 %v1325
    %v1347 = vpop.f32.mrf.mxu0
    %v1348 = vadd.f32 %v1320, %v1347
    %1349 = vdwg.mxu0
    %v1350 = vadd.f32 %v554, %v1345
    %v1351 = vadd.f32 %v555, %v1348
    %v1352 = vsel %vm168, %v1350, 0.0
    %1353 = vadd.xlane.f32.xlu0 %v1352
    %v1354 = vpop.xlane.xlu0 %1353
    %v1355 = vsel %vm168, %v1351, 0.0
    %1356 = vadd.xlane.f32.xlu0 %v1355
    %v1357 = vpop.xlane.xlu0 %1356
    %v1358 = vrcp.pop 32.0
    %v1359 = vmul.f32 32.0, %v1358
    %v1360 = vsub.f32 1.0, %v1359
    %v1361 = vmul.f32 %v1358, %v1360
    %v1362 = vadd.f32 %v1358, %v1361
    %vm1363 = vweird.f32 %v1358
    %v1364 = vsel %vm1363, %v1358, %v1362
    %v1365 = vmul.f32 %v1354, %v1364
    %v1366 = vmul.f32 %v1357, %v1364
    %v1367 = vsub.f32 %v1350, %v1365
    %v1368 = vsub.f32 %v1351, %v1366
    %v1369 = vmul.f32 %v1367, %v1367
    %v1370 = vmul.f32 %v1368, %v1368
    %v1371 = vsel %vm168, %v1369, 0.0
    %1372 = vadd.xlane.f32.xlu0 %v1371
    %v1373 = vpop.xlane.xlu0 %1372
    %v1374 = vsel %vm168, %v1370, 0.0
    %1375 = vadd.xlane.f32.xlu0 %v1374
    %v1376 = vpop.xlane.xlu0 %1375
    %v1377 = vmul.f32 %v1373, %v1364
    %v1378 = vmul.f32 %v1376, %v1364
    %v1379 = vadd.f32 %v1377, 1e-05
    %v1380 = vadd.f32 %v1378, 1e-05
    %v1381 = vrsqrt.pop %v1379
    %v1382 = vmul.f32 %v1381, %v1379
    %v1383 = vmul.f32 %v1382, %v1381
    %v1384 = vmul.f32 0.5, %v1383
    %v1385 = vsub.f32 1.5, %v1384
    %v1386 = vmul.f32 %v1381, %v1385
    %vm1387 = vweird.f32 %v1379
    %vm1388 = vweird.f32 %v1381
    %vm1389 = vmor %vm1387, %vm1388
    %v1390 = vsel %vm1389, %v1381, %v1386
    %v1391 = vrsqrt.pop %v1380
    %v1392 = vmul.f32 %v1391, %v1380
    %v1393 = vmul.f32 %v1392, %v1391
    %v1394 = vmul.f32 0.5, %v1393
    %v1395 = vsub.f32 1.5, %v1394
    %v1396 = vmul.f32 %v1391, %v1395
    %vm1397 = vweird.f32 %v1380
    %vm1398 = vweird.f32 %v1391
    %vm1399 = vmor %vm1397, %vm1398
    %v1400 = vsel %vm1399, %v1391, %v1396
    %v1401 = vmul.f32 %v1367, %v1390
    %v1402 = vmul.f32 %v1368, %v1400
    %v1403 = vld [vmem:[#allocation16 + $0x9] sm:$0x1]
    %v1404 = vperm.slane %v1403, 0
    %v1405 = vmul.f32 %v1401, %v1404
    %v1406 = vmul.f32 %v1402, %v1404
    %v1407 = vld [vmem:[#allocation16 + $0xa] sm:$0x1]
    %v1408 = vperm.slane %v1407, 0
    %v1409 = vadd.f32 %v1405, %v1408
    %v1410 = vadd.f32 %v1406, %v1408
    %v1411 = vadd.f32 %v1409, %v556
    %v1412 = vadd.f32 %v1410, %v557
    %v1413 = vld [vmem:[#allocation5] sm:$0xff]
    %v1414 = vld [vmem:[#allocation5 + $0x8] sm:$0xff]
    %v1415 = vld [vmem:[#allocation5 + $0x10] sm:$0xff]
    %v1416 = vld [vmem:[#allocation5 + $0x18] sm:$0xff]
    %v1417 = vld [vmem:[#allocation4] sm:$0xff]
    %v1418 = vld [vmem:[#allocation4 + $0x8] sm:$0xff]
    %v1419 = vld [vmem:[#allocation4 + $0x10] sm:$0xff]
    %v1420 = vld [vmem:[#allocation4 + $0x18] sm:$0xff]
    %s1421 = scalar_lea.vmem [#allocation13], 96
    %v1422 = vld [vmem:[%s1421] sm:$0xff]
    %v1423 = vld [vmem:[%s1421 + $0x8] sm:$0xff]
    %v1424 = vld [vmem:[%s1421 + $0x10] sm:$0xff]
    %v1425 = vld [vmem:[%s1421 + $0x18] sm:$0xff]
    %s1426 = scalar_lea.vmem [#allocation13], 128
    %v1427 = vld [vmem:[%s1426] sm:$0xff]
    %v1428 = vld [vmem:[%s1426 + $0x8] sm:$0xff]
    %v1429 = vld [vmem:[%s1426 + $0x10] sm:$0xff]
    %v1430 = vld [vmem:[%s1426 + $0x18] sm:$0xff]
    %s1431 = scalar_lea.vmem [#allocation13], 160
    %v1432 = vld [vmem:[%s1431] sm:$0xff]
    %v1433 = vld [vmem:[%s1431 + $0x8] sm:$0xff]
    %v1434 = vld [vmem:[%s1431 + $0x10] sm:$0xff]
    %v1435 = vld [vmem:[%s1431 + $0x18] sm:$0xff]
    %v1436 = vld [vmem:[#allocation16 + $0x4] sm:$0x1]
    %v1437 = vperm.slane %v1436, 0
    %v1439 = vsel %vm168, %v1411, 0
    %v1442 = vsel %vm168, %v1412, 0
    %1444 = vmatpush.msra.mxu0 0.0
    %1445 = vmatpush.msra.mxu0 0.0
    %1446 = vmatpush.msra.mxu0 0.0
    %1447 = vmatpush.msra.mxu0 0.0
    %1448 = vmatpush.msra.mxu0 0.0
    %1449 = vmatpush.msra.mxu0 0.0
    %1450 = vmatpush.msra.mxu0 0.0
    %1451 = vmatpush.msra.mxu0 0.0
    %1452 = vmatpush.msra.mxu0 0.0
    %1453 = vmatpush.msra.mxu0 0.0
    %1454 = vmatpush.msra.mxu0 0.0
    %1455 = vmatpush.msra.mxu0 0.0
    %1456 = vmatpush.msra.mxu0 %v1425
    %1457 = vmatpush.msra.mxu0 %v1424
    %1458 = vmatpush.msra.mxu0 %v1423
    %1459 = vmatpush.msra.mxu0 %v1422
    %1460 = vmatmul.f32.gmra.mxu0 %v1439
    %v1461 = vpop.f32.mrf.mxu0
    %v1462 = vadd.f32 %v1437, %v1461
    %1463 = vmatmul.f32.gmra.mxu0 %v1442
    %v1464 = vpop.f32.mrf.mxu0
    %v1465 = vadd.f32 %v1437, %v1464
    %1466 = vdwg.mxu0
    %v1467 = vld [vmem:[#allocation16 + $0x5] sm:$0x1]
    %v1468 = vperm.slane %v1467, 0
    %v1470 = vsel %vm168, %v1413, 0
    %v1473 = vsel %vm168, %v1414, 0
    %v1476 = vsel %vm168, %v1415, 0
    %v1479 = vsel %vm168, %v1416, 0
    %1481 = vmatpush.msra.mxu0 0.0
    %1482 = vmatpush.msra.mxu0 0.0
    %1483 = vmatpush.msra.mxu0 0.0
    %1484 = vmatpush.msra.mxu0 0.0
    %1485 = vmatpush.msra.mxu0 0.0
    %1486 = vmatpush.msra.mxu0 0.0
    %1487 = vmatpush.msra.mxu0 0.0
    %1488 = vmatpush.msra.mxu0 0.0
    %1489 = vmatpush.msra.mxu0 0.0
    %1490 = vmatpush.msra.mxu0 0.0
    %1491 = vmatpush.msra.mxu0 0.0
    %1492 = vmatpush.msra.mxu0 0.0
    %1493 = vmatpush.msra.mxu0 %v1430
    %1494 = vmatpush.msra.mxu0 %v1429
    %1495 = vmatpush.msra.mxu0 %v1428
    %1496 = vmatpush.msra.mxu0 %v1427
    %1497 = vmatmul.f32.gmra.mxu0 %v1470
    %v1498 = vpop.f32.mrf.mxu0
    %v1499 = vadd.f32 %v1468, %v1498
    %1500 = vmatmul.f32.gmra.mxu0 %v1473
    %v1501 = vpop.f32.mrf.mxu0
    %v1502 = vadd.f32 %v1468, %v1501
    %1503 = vmatmul.f32.gmra.mxu0 %v1476
    %v1504 = vpop.f32.mrf.mxu0
    %v1505 = vadd.f32 %v1468, %v1504
    %1506 = vmatmul.f32.gmra.mxu0 %v1479
    %v1507 = vpop.f32.mrf.mxu0
    %v1508 = vadd.f32 %v1468, %v1507
    %1509 = vdwg.mxu0
    %v1510 = vld [vmem:[#allocation16 + $0x6] sm:$0x1]
    %v1511 = vperm.slane %v1510, 0
    %v1513 = vsel %vm168, %v1417, 0
    %v1516 = vsel %vm168, %v1418, 0
    %v1519 = vsel %vm168, %v1419, 0
    %v1522 = vsel %vm168, %v1420, 0
    %1524 = vmatpush.msra.mxu0 0.0
    %1525 = vmatpush.msra.mxu0 0.0
    %1526 = vmatpush.msra.mxu0 0.0
    %1527 = vmatpush.msra.mxu0 0.0
    %1528 = vmatpush.msra.mxu0 0.0
    %1529 = vmatpush.msra.mxu0 0.0
    %1530 = vmatpush.msra.mxu0 0.0
    %1531 = vmatpush.msra.mxu0 0.0
    %1532 = vmatpush.msra.mxu0 0.0
    %1533 = vmatpush.msra.mxu0 0.0
    %1534 = vmatpush.msra.mxu0 0.0
    %1535 = vmatpush.msra.mxu0 0.0
    %1536 = vmatpush.msra.mxu0 %v1435
    %1537 = vmatpush.msra.mxu0 %v1434
    %1538 = vmatpush.msra.mxu0 %v1433
    %1539 = vmatpush.msra.mxu0 %v1432
    %1540 = vmatmul.f32.gmra.mxu0 %v1513
    %v1541 = vpop.f32.mrf.mxu0
    %v1542 = vadd.f32 %v1511, %v1541
    %1543 = vmatmul.f32.gmra.mxu0 %v1516
    %v1544 = vpop.f32.mrf.mxu0
    %v1545 = vadd.f32 %v1511, %v1544
    %1546 = vmatmul.f32.gmra.mxu0 %v1519
    %v1547 = vpop.f32.mrf.mxu0
    %v1548 = vadd.f32 %v1511, %v1547
    %1549 = vmatmul.f32.gmra.mxu0 %v1522
    %v1550 = vpop.f32.mrf.mxu0
    %v1551 = vadd.f32 %v1511, %v1550
    %1552 = vdwg.mxu0
    %v1554 = vsel %vm661, %v1462, 0
    %v1557 = vsel %vm661, %v1499, 0
    %v1560 = vsel %vm661, %v1502, 0
    %1562 = vmatpush.xpose.msra.mxu0 0.0
    %1563 = vmatpush.xpose.msra.mxu0 0.0
    %1564 = vmatpush.xpose.msra.mxu0 0.0
    %1565 = vmatpush.xpose.msra.mxu0 0.0
    %1566 = vmatpush.xpose.msra.mxu0 0.0
    %1567 = vmatpush.xpose.msra.mxu0 0.0
    %1568 = vmatpush.xpose.msra.mxu0 0.0
    %1569 = vmatpush.xpose.msra.mxu0 0.0
    %1570 = vmatpush.xpose.msra.mxu0 0.0
    %1571 = vmatpush.xpose.msra.mxu0 0.0
    %1572 = vmatpush.xpose.msra.mxu0 0.0
    %1573 = vmatpush.xpose.msra.mxu0 0.0
    %1574 = vmatpush.xpose.msra.mxu0 0.0
    %1575 = vmatpush.xpose.msra.mxu0 0.0
    %1576 = vmatpush.xpose.msra.mxu0 %v1560
    %1577 = vmatpush.xpose.msra.mxu0 %v1557
    %1578 = vmatmul.f32.gmra.mxu0 %v1554
    %v1579 = vpop.f32.mrf.mxu0
    %v1580 = vadd.f32 0.0, %v1579
    %1581 = vdwg.mxu0
    %v1583 = vsel %vm661, %v1465, 0
    %v1586 = vsel %vm661, %v1505, 0
    %v1589 = vsel %vm661, %v1508, 0
    %1591 = vmatpush.xpose.msra.mxu0 0.0
    %1592 = vmatpush.xpose.msra.mxu0 0.0
    %1593 = vmatpush.xpose.msra.mxu0 0.0
    %1594 = vmatpush.xpose.msra.mxu0 0.0
    %1595 = vmatpush.xpose.msra.mxu0 0.0
    %1596 = vmatpush.xpose.msra.mxu0 0.0
    %1597 = vmatpush.xpose.msra.mxu0 0.0
    %1598 = vmatpush.xpose.msra.mxu0 0.0
    %1599 = vmatpush.xpose.msra.mxu0 0.0
    %1600 = vmatpush.xpose.msra.mxu0 0.0
    %1601 = vmatpush.xpose.msra.mxu0 0.0
    %1602 = vmatpush.xpose.msra.mxu0 0.0
    %1603 = vmatpush.xpose.msra.mxu0 0.0
    %1604 = vmatpush.xpose.msra.mxu0 0.0
    %1605 = vmatpush.xpose.msra.mxu0 %v1589
    %1606 = vmatpush.xpose.msra.mxu0 %v1586
    %1607 = vmatmul.f32.gmra.mxu0 %v1583
    %v1608 = vpop.f32.mrf.mxu0
    %v1609 = vadd.f32 0.0, %v1608
    %1610 = vdwg.mxu0
    %vm1611 = vcmask 130048
    %v1612 = vsel %vm1611, %v1580, -inf
    %1613 = vmax.xlane.f32.xlu0 %v1612
    %v1614 = vpop.xlane.xlu0 %1613
    %v1615 = vsel %vm1611, %v1609, -inf
    %1616 = vmax.xlane.f32.xlu0 %v1615
    %v1617 = vpop.xlane.xlu0 %1616
    %v1618 = vsub.f32 %v1580, %v1614
    %v1619 = vsub.f32 %v1609, %v1617
    %v1620 = vmul.f32 %v1618, 1.442695
    %v1621 = vpow.pop %v1620
    %v1622 = vmul.f32 %v1619, 1.442695
    %v1623 = vpow.pop %v1622
    %v1624 = vsel %vm1611, %v1621, 0.0
    %1625 = vadd.xlane.f32.xlu0 %v1624
    %v1626 = vpop.xlane.xlu0 %1625
    %v1627 = vsel %vm1611, %v1623, 0.0
    %1628 = vadd.xlane.f32.xlu0 %v1627
    %v1629 = vpop.xlane.xlu0 %1628
    %v1630 = vrcp.pop %v1626
    %v1631 = vmul.f32 %v1626, %v1630
    %v1632 = vsub.f32 1.0, %v1631
    %v1633 = vmul.f32 %v1630, %v1632
    %v1634 = vadd.f32 %v1630, %v1633
    %vm1635 = vweird.f32 %v1626
    %vm1636 = vweird.f32 %v1630
    %vm1637 = vmor %vm1635, %vm1636
    %v1638 = vsel %vm1637, %v1630, %v1634
    %v1639 = vand.u32 2147483647, %v1626
    %vm1640 = vcmp.eq.f32.partialorder %v1639, 8.507059e+37
    %v1641 = vand.u32 %v1626, 2147483648
    %v1642 = vor.u32 1.1754944e-38, %v1641
    %v1643 = vsel %vm1640, %v1642, %v1638
    %v1644 = vmul.f32 %v1621, %v1643
    %v1645 = vrcp.pop %v1629
    %v1646 = vmul.f32 %v1629, %v1645
    %v1647 = vsub.f32 1.0, %v1646
    %v1648 = vmul.f32 %v1645, %v1647
    %v1649 = vadd.f32 %v1645, %v1648
    %vm1650 = vweird.f32 %v1629
    %vm1651 = vweird.f32 %v1645
    %vm1652 = vmor %vm1650, %vm1651
    %v1653 = vsel %vm1652, %v1645, %v1649
    %v1654 = vand.u32 2147483647, %v1629
    %vm1655 = vcmp.eq.f32.partialorder %v1654, 8.507059e+37
    %v1656 = vand.u32 %v1629, 2147483648
    %v1657 = vor.u32 1.1754944e-38, %v1656
    %v1658 = vsel %vm1655, %v1657, %v1653
    %v1659 = vmul.f32 %v1623, %v1658
    %v1661 = vsel %vm1611, %v1644, 0
    %1663 = vmatpush.msra.mxu0 0.0
    %1664 = vmatpush.msra.mxu0 0.0
    %1665 = vmatpush.msra.mxu0 0.0
    %1666 = vmatpush.msra.mxu0 0.0
    %1667 = vmatpush.msra.mxu0 0.0
    %1668 = vmatpush.msra.mxu0 0.0
    %1669 = vmatpush.msra.mxu0 0.0
    %1670 = vmatpush.msra.mxu0 0.0
    %1671 = vmatpush.msra.mxu0 0.0
    %1672 = vmatpush.msra.mxu0 0.0
    %1673 = vmatpush.msra.mxu0 0.0
    %1674 = vmatpush.msra.mxu0 0.0
    %1675 = vmatpush.msra.mxu0 0.0
    %1676 = vmatpush.msra.mxu0 0.0
    %1677 = vmatpush.msra.mxu0 %v1545
    %1678 = vmatpush.msra.mxu0 %v1542
    %1679 = vmatmul.f32.gmra.mxu0 %v1661
    %v1680 = vpop.f32.mrf.mxu0
    %v1681 = vadd.f32 0.0, %v1680
    %1682 = vdwg.mxu0
    %v1684 = vsel %vm1611, %v1659, 0
    %1686 = vmatpush.msra.mxu0 0.0
    %1687 = vmatpush.msra.mxu0 0.0
    %1688 = vmatpush.msra.mxu0 0.0
    %1689 = vmatpush.msra.mxu0 0.0
    %1690 = vmatpush.msra.mxu0 0.0
    %1691 = vmatpush.msra.mxu0 0.0
    %1692 = vmatpush.msra.mxu0 0.0
    %1693 = vmatpush.msra.mxu0 0.0
    %1694 = vmatpush.msra.mxu0 0.0
    %1695 = vmatpush.msra.mxu0 0.0
    %1696 = vmatpush.msra.mxu0 0.0
    %1697 = vmatpush.msra.mxu0 0.0
    %1698 = vmatpush.msra.mxu0 0.0
    %1699 = vmatpush.msra.mxu0 0.0
    %1700 = vmatpush.msra.mxu0 %v1551
    %1701 = vmatpush.msra.mxu0 %v1548
    %1702 = vmatmul.f32.gmra.mxu0 %v1684
    %v1703 = vpop.f32.mrf.mxu0
    %v1704 = vadd.f32 0.0, %v1703
    %1705 = vdwg.mxu0
    %1706 = vst.msk [vmem:[#allocation6] sm:$0xff] %vm661, %v1681
    %1707 = vst.msk [vmem:[#allocation6 + $0x8] sm:$0xff] %vm661, %v1704
    %1708 = vrot.lane.b32.xlu0 %v1462, 120
    %v1709 = vpop.permute.xlu0 %1708
    %1710 = vrot.lane.b32.xlu0 %v1499, 120
    %v1711 = vpop.permute.xlu0 %1710
    %1712 = vrot.lane.b32.xlu0 %v1502, 120
    %v1713 = vpop.permute.xlu0 %1712
    %v1714 = vsel %vm661, %v1709, 0
    %v1716 = vsel %vm661, %v1711, 0
    %v1718 = vsel %vm661, %v1713, 0
    %1720 = vmatpush.xpose.msra.mxu0 0.0
    %1721 = vmatpush.xpose.msra.mxu0 0.0
    %1722 = vmatpush.xpose.msra.mxu0 0.0
    %1723 = vmatpush.xpose.msra.mxu0 0.0
    %1724 = vmatpush.xpose.msra.mxu0 0.0
    %1725 = vmatpush.xpose.msra.mxu0 0.0
    %1726 = vmatpush.xpose.msra.mxu0 0.0
    %1727 = vmatpush.xpose.msra.mxu0 0.0
    %1728 = vmatpush.xpose.msra.mxu0 0.0
    %1729 = vmatpush.xpose.msra.mxu0 0.0
    %1730 = vmatpush.xpose.msra.mxu0 0.0
    %1731 = vmatpush.xpose.msra.mxu0 0.0
    %1732 = vmatpush.xpose.msra.mxu0 0.0
    %1733 = vmatpush.xpose.msra.mxu0 0.0
    %1734 = vmatpush.xpose.msra.mxu0 %v1718
    %1735 = vmatpush.xpose.msra.mxu0 %v1716
    %1736 = vmatmul.f32.gmra.mxu0 %v1714
    %v1737 = vpop.f32.mrf.mxu0
    %v1738 = vadd.f32 0.0, %v1737
    %1739 = vdwg.mxu0
    %1740 = vrot.lane.b32.xlu0 %v1465, 120
    %v1741 = vpop.permute.xlu0 %1740
    %1742 = vrot.lane.b32.xlu0 %v1505, 120
    %v1743 = vpop.permute.xlu0 %1742
    %1744 = vrot.lane.b32.xlu0 %v1508, 120
    %v1745 = vpop.permute.xlu0 %1744
    %v1746 = vsel %vm661, %v1741, 0
    %v1748 = vsel %vm661, %v1743, 0
    %v1750 = vsel %vm661, %v1745, 0
    %1752 = vmatpush.xpose.msra.mxu0 0.0
    %1753 = vmatpush.xpose.msra.mxu0 0.0
    %1754 = vmatpush.xpose.msra.mxu0 0.0
    %1755 = vmatpush.xpose.msra.mxu0 0.0
    %1756 = vmatpush.xpose.msra.mxu0 0.0
    %1757 = vmatpush.xpose.msra.mxu0 0.0
    %1758 = vmatpush.xpose.msra.mxu0 0.0
    %1759 = vmatpush.xpose.msra.mxu0 0.0
    %1760 = vmatpush.xpose.msra.mxu0 0.0
    %1761 = vmatpush.xpose.msra.mxu0 0.0
    %1762 = vmatpush.xpose.msra.mxu0 0.0
    %1763 = vmatpush.xpose.msra.mxu0 0.0
    %1764 = vmatpush.xpose.msra.mxu0 0.0
    %1765 = vmatpush.xpose.msra.mxu0 0.0
    %1766 = vmatpush.xpose.msra.mxu0 %v1750
    %1767 = vmatpush.xpose.msra.mxu0 %v1748
    %1768 = vmatmul.f32.gmra.mxu0 %v1746
    %v1769 = vpop.f32.mrf.mxu0
    %v1770 = vadd.f32 0.0, %v1769
    %1771 = vdwg.mxu0
    %v1772 = vsel %vm1611, %v1738, -inf
    %1773 = vmax.xlane.f32.xlu0 %v1772
    %v1774 = vpop.xlane.xlu0 %1773
    %v1775 = vsel %vm1611, %v1770, -inf
    %1776 = vmax.xlane.f32.xlu0 %v1775
    %v1777 = vpop.xlane.xlu0 %1776
    %v1778 = vsub.f32 %v1738, %v1774
    %v1779 = vsub.f32 %v1770, %v1777
    %v1780 = vmul.f32 %v1778, 1.442695
    %v1781 = vpow.pop %v1780
    %v1782 = vmul.f32 %v1779, 1.442695
    %v1783 = vpow.pop %v1782
    %v1784 = vsel %vm1611, %v1781, 0.0
    %1785 = vadd.xlane.f32.xlu0 %v1784
    %v1786 = vpop.xlane.xlu0 %1785
    %v1787 = vsel %vm1611, %v1783, 0.0
    %1788 = vadd.xlane.f32.xlu0 %v1787
    %v1789 = vpop.xlane.xlu0 %1788
    %v1790 = vrcp.pop %v1786
    %v1791 = vmul.f32 %v1786, %v1790
    %v1792 = vsub.f32 1.0, %v1791
    %v1793 = vmul.f32 %v1790, %v1792
    %v1794 = vadd.f32 %v1790, %v1793
    %vm1795 = vweird.f32 %v1786
    %vm1796 = vweird.f32 %v1790
    %vm1797 = vmor %vm1795, %vm1796
    %v1798 = vsel %vm1797, %v1790, %v1794
    %v1799 = vand.u32 2147483647, %v1786
    %vm1800 = vcmp.eq.f32.partialorder %v1799, 8.507059e+37
    %v1801 = vand.u32 %v1786, 2147483648
    %v1802 = vor.u32 1.1754944e-38, %v1801
    %v1803 = vsel %vm1800, %v1802, %v1798
    %v1804 = vmul.f32 %v1781, %v1803
    %v1805 = vrcp.pop %v1789
    %v1806 = vmul.f32 %v1789, %v1805
    %v1807 = vsub.f32 1.0, %v1806
    %v1808 = vmul.f32 %v1805, %v1807
    %v1809 = vadd.f32 %v1805, %v1808
    %vm1810 = vweird.f32 %v1789
    %vm1811 = vweird.f32 %v1805
    %vm1812 = vmor %vm1810, %vm1811
    %v1813 = vsel %vm1812, %v1805, %v1809
    %v1814 = vand.u32 2147483647, %v1789
    %vm1815 = vcmp.eq.f32.partialorder %v1814, 8.507059e+37
    %v1816 = vand.u32 %v1789, 2147483648
    %v1817 = vor.u32 1.1754944e-38, %v1816
    %v1818 = vsel %vm1815, %v1817, %v1813
    %v1819 = vmul.f32 %v1783, %v1818
    %1822 = vrot.lane.b32.xlu0 %v1542, 120
    %v1823 = vpop.permute.xlu0 %1822
    %1824 = vrot.lane.b32.xlu0 %v1545, 120
    %v1825 = vpop.permute.xlu0 %1824
    %v1829 = vsel %vm1611, %v1804, 0
    %1831 = vmatpush.msra.mxu0 0.0
    %1832 = vmatpush.msra.mxu0 0.0
    %1833 = vmatpush.msra.mxu0 0.0
    %1834 = vmatpush.msra.mxu0 0.0
    %1835 = vmatpush.msra.mxu0 0.0
    %1836 = vmatpush.msra.mxu0 0.0
    %1837 = vmatpush.msra.mxu0 0.0
    %1838 = vmatpush.msra.mxu0 0.0
    %1839 = vmatpush.msra.mxu0 0.0
    %1840 = vmatpush.msra.mxu0 0.0
    %1841 = vmatpush.msra.mxu0 0.0
    %1842 = vmatpush.msra.mxu0 0.0
    %1843 = vmatpush.msra.mxu0 0.0
    %1844 = vmatpush.msra.mxu0 0.0
    %1845 = vmatpush.msra.mxu0 %v1825
    %1846 = vmatpush.msra.mxu0 %v1823
    %1847 = vmatmul.f32.gmra.mxu0 %v1829
    %v1848 = vpop.f32.mrf.mxu0
    %v1849 = vadd.f32 0.0, %v1848
    %1850 = vdwg.mxu0
    %1853 = vrot.lane.b32.xlu0 %v1548, 120
    %v1854 = vpop.permute.xlu0 %1853
    %1855 = vrot.lane.b32.xlu0 %v1551, 120
    %v1856 = vpop.permute.xlu0 %1855
    %v1860 = vsel %vm1611, %v1819, 0
    %1862 = vmatpush.msra.mxu0 0.0
    %1863 = vmatpush.msra.mxu0 0.0
    %1864 = vmatpush.msra.mxu0 0.0
    %1865 = vmatpush.msra.mxu0 0.0
    %1866 = vmatpush.msra.mxu0 0.0
    %1867 = vmatpush.msra.mxu0 0.0
    %1868 = vmatpush.msra.mxu0 0.0
    %1869 = vmatpush.msra.mxu0 0.0
    %1870 = vmatpush.msra.mxu0 0.0
    %1871 = vmatpush.msra.mxu0 0.0
    %1872 = vmatpush.msra.mxu0 0.0
    %1873 = vmatpush.msra.mxu0 0.0
    %1874 = vmatpush.msra.mxu0 0.0
    %1875 = vmatpush.msra.mxu0 0.0
    %1876 = vmatpush.msra.mxu0 %v1856
    %1877 = vmatpush.msra.mxu0 %v1854
    %1878 = vmatmul.f32.gmra.mxu0 %v1860
    %v1879 = vpop.f32.mrf.mxu0
    %v1880 = vadd.f32 0.0, %v1879
    %1881 = vdwg.mxu0
    %1884 = vrot.lane.b32.xlu0 %v1849, 8
    %v1885 = vpop.permute.xlu0 %1884
    %1886 = vrot.lane.b32.xlu0 %v1880, 8
    %v1887 = vpop.permute.xlu0 %1886
    %1890 = vst.msk [vmem:[#allocation6] sm:$0xff] %vm976, %v1885
    %1891 = vst.msk [vmem:[#allocation6 + $0x8] sm:$0xff] %vm976, %v1887
    %1892 = vrot.lane.b32.xlu0 %v1462, 112
    %v1893 = vpop.permute.xlu0 %1892
    %1894 = vrot.lane.b32.xlu0 %v1499, 112
    %v1895 = vpop.permute.xlu0 %1894
    %1896 = vrot.lane.b32.xlu0 %v1502, 112
    %v1897 = vpop.permute.xlu0 %1896
    %v1898 = vsel %vm661, %v1893, 0
    %v1900 = vsel %vm661, %v1895, 0
    %v1902 = vsel %vm661, %v1897, 0
    %1904 = vmatpush.xpose.msra.mxu0 0.0
    %1905 = vmatpush.xpose.msra.mxu0 0.0
    %1906 = vmatpush.xpose.msra.mxu0 0.0
    %1907 = vmatpush.xpose.msra.mxu0 0.0
    %1908 = vmatpush.xpose.msra.mxu0 0.0
    %1909 = vmatpush.xpose.msra.mxu0 0.0
    %1910 = vmatpush.xpose.msra.mxu0 0.0
    %1911 = vmatpush.xpose.msra.mxu0 0.0
    %1912 = vmatpush.xpose.msra.mxu0 0.0
    %1913 = vmatpush.xpose.msra.mxu0 0.0
    %1914 = vmatpush.xpose.msra.mxu0 0.0
    %1915 = vmatpush.xpose.msra.mxu0 0.0
    %1916 = vmatpush.xpose.msra.mxu0 0.0
    %1917 = vmatpush.xpose.msra.mxu0 0.0
    %1918 = vmatpush.xpose.msra.mxu0 %v1902
    %1919 = vmatpush.xpose.msra.mxu0 %v1900
    %1920 = vmatmul.f32.gmra.mxu0 %v1898
    %v1921 = vpop.f32.mrf.mxu0
    %v1922 = vadd.f32 0.0, %v1921
    %1923 = vdwg.mxu0
    %1924 = vrot.lane.b32.xlu0 %v1465, 112
    %v1925 = vpop.permute.xlu0 %1924
    %1926 = vrot.lane.b32.xlu0 %v1505, 112
    %v1927 = vpop.permute.xlu0 %1926
    %1928 = vrot.lane.b32.xlu0 %v1508, 112
    %v1929 = vpop.permute.xlu0 %1928
    %v1930 = vsel %vm661, %v1925, 0
    %v1932 = vsel %vm661, %v1927, 0
    %v1934 = vsel %vm661, %v1929, 0
    %1936 = vmatpush.xpose.msra.mxu0 0.0
    %1937 = vmatpush.xpose.msra.mxu0 0.0
    %1938 = vmatpush.xpose.msra.mxu0 0.0
    %1939 = vmatpush.xpose.msra.mxu0 0.0
    %1940 = vmatpush.xpose.msra.mxu0 0.0
    %1941 = vmatpush.xpose.msra.mxu0 0.0
    %1942 = vmatpush.xpose.msra.mxu0 0.0
    %1943 = vmatpush.xpose.msra.mxu0 0.0
    %1944 = vmatpush.xpose.msra.mxu0 0.0
    %1945 = vmatpush.xpose.msra.mxu0 0.0
    %1946 = vmatpush.xpose.msra.mxu0 0.0
    %1947 = vmatpush.xpose.msra.mxu0 0.0
    %1948 = vmatpush.xpose.msra.mxu0 0.0
    %1949 = vmatpush.xpose.msra.mxu0 0.0
    %1950 = vmatpush.xpose.msra.mxu0 %v1934
    %1951 = vmatpush.xpose.msra.mxu0 %v1932
    %1952 = vmatmul.f32.gmra.mxu0 %v1930
    %v1953 = vpop.f32.mrf.mxu0
    %v1954 = vadd.f32 0.0, %v1953
    %1955 = vdwg.mxu0
    %v1956 = vsel %vm1611, %v1922, -inf
    %1957 = vmax.xlane.f32.xlu0 %v1956
    %v1958 = vpop.xlane.xlu0 %1957
    %v1959 = vsel %vm1611, %v1954, -inf
    %1960 = vmax.xlane.f32.xlu0 %v1959
    %v1961 = vpop.xlane.xlu0 %1960
    %v1962 = vsub.f32 %v1922, %v1958
    %v1963 = vsub.f32 %v1954, %v1961
    %v1964 = vmul.f32 %v1962, 1.442695
    %v1965 = vpow.pop %v1964
    %v1966 = vmul.f32 %v1963, 1.442695
    %v1967 = vpow.pop %v1966
    %v1968 = vsel %vm1611, %v1965, 0.0
    %1969 = vadd.xlane.f32.xlu0 %v1968
    %v1970 = vpop.xlane.xlu0 %1969
    %v1971 = vsel %vm1611, %v1967, 0.0
    %1972 = vadd.xlane.f32.xlu0 %v1971
    %v1973 = vpop.xlane.xlu0 %1972
    %v1974 = vrcp.pop %v1970
    %v1975 = vmul.f32 %v1970, %v1974
    %v1976 = vsub.f32 1.0, %v1975
    %v1977 = vmul.f32 %v1974, %v1976
    %v1978 = vadd.f32 %v1974, %v1977
    %vm1979 = vweird.f32 %v1970
    %vm1980 = vweird.f32 %v1974
    %vm1981 = vmor %vm1979, %vm1980
    %v1982 = vsel %vm1981, %v1974, %v1978
    %v1983 = vand.u32 2147483647, %v1970
    %vm1984 = vcmp.eq.f32.partialorder %v1983, 8.507059e+37
    %v1985 = vand.u32 %v1970, 2147483648
    %v1986 = vor.u32 1.1754944e-38, %v1985
    %v1987 = vsel %vm1984, %v1986, %v1982
    %v1988 = vmul.f32 %v1965, %v1987
    %v1989 = vrcp.pop %v1973
    %v1990 = vmul.f32 %v1973, %v1989
    %v1991 = vsub.f32 1.0, %v1990
    %v1992 = vmul.f32 %v1989, %v1991
    %v1993 = vadd.f32 %v1989, %v1992
    %vm1994 = vweird.f32 %v1973
    %vm1995 = vweird.f32 %v1989
    %vm1996 = vmor %vm1994, %vm1995
    %v1997 = vsel %vm1996, %v1989, %v1993
    %v1998 = vand.u32 2147483647, %v1973
    %vm1999 = vcmp.eq.f32.partialorder %v1998, 8.507059e+37
    %v2000 = vand.u32 %v1973, 2147483648
    %v2001 = vor.u32 1.1754944e-38, %v2000
    %v2002 = vsel %vm1999, %v2001, %v1997
    %v2003 = vmul.f32 %v1967, %v2002
    %2004 = vrot.lane.b32.xlu0 %v1542, 112
    %v2005 = vpop.permute.xlu0 %2004
    %2006 = vrot.lane.b32.xlu0 %v1545, 112
    %v2007 = vpop.permute.xlu0 %2006
    %v2011 = vsel %vm1611, %v1988, 0
    %2013 = vmatpush.msra.mxu0 0.0
    %2014 = vmatpush.msra.mxu0 0.0
    %2015 = vmatpush.msra.mxu0 0.0
    %2016 = vmatpush.msra.mxu0 0.0
    %2017 = vmatpush.msra.mxu0 0.0
    %2018 = vmatpush.msra.mxu0 0.0
    %2019 = vmatpush.msra.mxu0 0.0
    %2020 = vmatpush.msra.mxu0 0.0
    %2021 = vmatpush.msra.mxu0 0.0
    %2022 = vmatpush.msra.mxu0 0.0
    %2023 = vmatpush.msra.mxu0 0.0
    %2024 = vmatpush.msra.mxu0 0.0
    %2025 = vmatpush.msra.mxu0 0.0
    %2026 = vmatpush.msra.mxu0 0.0
    %2027 = vmatpush.msra.mxu0 %v2007
    %2028 = vmatpush.msra.mxu0 %v2005
    %2029 = vmatmul.f32.gmra.mxu0 %v2011
    %v2030 = vpop.f32.mrf.mxu0
    %v2031 = vadd.f32 0.0, %v2030
    %2032 = vdwg.mxu0
    %2033 = vrot.lane.b32.xlu0 %v1548, 112
    %v2034 = vpop.permute.xlu0 %2033
    %2035 = vrot.lane.b32.xlu0 %v1551, 112
    %v2036 = vpop.permute.xlu0 %2035
    %v2040 = vsel %vm1611, %v2003, 0
    %2042 = vmatpush.msra.mxu0 0.0
    %2043 = vmatpush.msra.mxu0 0.0
    %2044 = vmatpush.msra.mxu0 0.0
    %2045 = vmatpush.msra.mxu0 0.0
    %2046 = vmatpush.msra.mxu0 0.0
    %2047 = vmatpush.msra.mxu0 0.0
    %2048 = vmatpush.msra.mxu0 0.0
    %2049 = vmatpush.msra.mxu0 0.0
    %2050 = vmatpush.msra.mxu0 0.0
    %2051 = vmatpush.msra.mxu0 0.0
    %2052 = vmatpush.msra.mxu0 0.0
    %2053 = vmatpush.msra.mxu0 0.0
    %2054 = vmatpush.msra.mxu0 0.0
    %2055 = vmatpush.msra.mxu0 0.0
    %2056 = vmatpush.msra.mxu0 %v2036
    %2057 = vmatpush.msra.mxu0 %v2034
    %2058 = vmatmul.f32.gmra.mxu0 %v2040
    %v2059 = vpop.f32.mrf.mxu0
    %v2060 = vadd.f32 0.0, %v2059
    %2061 = vdwg.mxu0
    %2064 = vrot.lane.b32.xlu0 %v2031, 16
    %v2065 = vpop.permute.xlu0 %2064
    %2066 = vrot.lane.b32.xlu0 %v2060, 16
    %v2067 = vpop.permute.xlu0 %2066
    %2070 = vst.msk [vmem:[#allocation6] sm:$0xff] %vm1143, %v2065
    %2071 = vst.msk [vmem:[#allocation6 + $0x8] sm:$0xff] %vm1143, %v2067
    %2072 = vrot.lane.b32.xlu0 %v1462, 104
    %v2073 = vpop.permute.xlu0 %2072
    %2074 = vrot.lane.b32.xlu0 %v1499, 104
    %v2075 = vpop.permute.xlu0 %2074
    %2076 = vrot.lane.b32.xlu0 %v1502, 104
    %v2077 = vpop.permute.xlu0 %2076
    %v2078 = vsel %vm661, %v2073, 0
    %v2080 = vsel %vm661, %v2075, 0
    %v2082 = vsel %vm661, %v2077, 0
    %2084 = vmatpush.xpose.msra.mxu0 0.0
    %2085 = vmatpush.xpose.msra.mxu0 0.0
    %2086 = vmatpush.xpose.msra.mxu0 0.0
    %2087 = vmatpush.xpose.msra.mxu0 0.0
    %2088 = vmatpush.xpose.msra.mxu0 0.0
    %2089 = vmatpush.xpose.msra.mxu0 0.0
    %2090 = vmatpush.xpose.msra.mxu0 0.0
    %2091 = vmatpush.xpose.msra.mxu0 0.0
    %2092 = vmatpush.xpose.msra.mxu0 0.0
    %2093 = vmatpush.xpose.msra.mxu0 0.0
    %2094 = vmatpush.xpose.msra.mxu0 0.0
    %2095 = vmatpush.xpose.msra.mxu0 0.0
    %2096 = vmatpush.xpose.msra.mxu0 0.0
    %2097 = vmatpush.xpose.msra.mxu0 0.0
    %2098 = vmatpush.xpose.msra.mxu0 %v2082
    %2099 = vmatpush.xpose.msra.mxu0 %v2080
    %2100 = vmatmul.f32.gmra.mxu0 %v2078
    %v2101 = vpop.f32.mrf.mxu0
    %v2102 = vadd.f32 0.0, %v2101
    %2103 = vdwg.mxu0
    %2104 = vrot.lane.b32.xlu0 %v1465, 104
    %v2105 = vpop.permute.xlu0 %2104
    %2106 = vrot.lane.b32.xlu0 %v1505, 104
    %v2107 = vpop.permute.xlu0 %2106
    %2108 = vrot.lane.b32.xlu0 %v1508, 104
    %v2109 = vpop.permute.xlu0 %2108
    %v2110 = vsel %vm661, %v2105, 0
    %v2112 = vsel %vm661, %v2107, 0
    %v2114 = vsel %vm661, %v2109, 0
    %2116 = vmatpush.xpose.msra.mxu0 0.0
    %2117 = vmatpush.xpose.msra.mxu0 0.0
    %2118 = vmatpush.xpose.msra.mxu0 0.0
    %2119 = vmatpush.xpose.msra.mxu0 0.0
    %2120 = vmatpush.xpose.msra.mxu0 0.0
    %2121 = vmatpush.xpose.msra.mxu0 0.0
    %2122 = vmatpush.xpose.msra.mxu0 0.0
    %2123 = vmatpush.xpose.msra.mxu0 0.0
    %2124 = vmatpush.xpose.msra.mxu0 0.0
    %2125 = vmatpush.xpose.msra.mxu0 0.0
    %2126 = vmatpush.xpose.msra.mxu0 0.0
    %2127 = vmatpush.xpose.msra.mxu0 0.0
    %2128 = vmatpush.xpose.msra.mxu0 0.0
    %2129 = vmatpush.xpose.msra.mxu0 0.0
    %2130 = vmatpush.xpose.msra.mxu0 %v2114
    %2131 = vmatpush.xpose.msra.mxu0 %v2112
    %2132 = vmatmul.f32.gmra.mxu0 %v2110
    %v2133 = vpop.f32.mrf.mxu0
    %v2134 = vadd.f32 0.0, %v2133
    %2135 = vdwg.mxu0
    %v2136 = vsel %vm1611, %v2102, -inf
    %2137 = vmax.xlane.f32.xlu0 %v2136
    %v2138 = vpop.xlane.xlu0 %2137
    %v2139 = vsel %vm1611, %v2134, -inf
    %2140 = vmax.xlane.f32.xlu0 %v2139
    %v2141 = vpop.xlane.xlu0 %2140
    %v2142 = vsub.f32 %v2102, %v2138
    %v2143 = vsub.f32 %v2134, %v2141
    %v2144 = vmul.f32 %v2142, 1.442695
    %v2145 = vpow.pop %v2144
    %v2146 = vmul.f32 %v2143, 1.442695
    %v2147 = vpow.pop %v2146
    %v2148 = vsel %vm1611, %v2145, 0.0
    %2149 = vadd.xlane.f32.xlu0 %v2148
    %v2150 = vpop.xlane.xlu0 %2149
    %v2151 = vsel %vm1611, %v2147, 0.0
    %2152 = vadd.xlane.f32.xlu0 %v2151
    %v2153 = vpop.xlane.xlu0 %2152
    %v2154 = vrcp.pop %v2150
    %v2155 = vmul.f32 %v2150, %v2154
    %v2156 = vsub.f32 1.0, %v2155
    %v2157 = vmul.f32 %v2154, %v2156
    %v2158 = vadd.f32 %v2154, %v2157
    %vm2159 = vweird.f32 %v2150
    %vm2160 = vweird.f32 %v2154
    %vm2161 = vmor %vm2159, %vm2160
    %v2162 = vsel %vm2161, %v2154, %v2158
    %v2163 = vand.u32 2147483647, %v2150
    %vm2164 = vcmp.eq.f32.partialorder %v2163, 8.507059e+37
    %v2165 = vand.u32 %v2150, 2147483648
    %v2166 = vor.u32 1.1754944e-38, %v2165
    %v2167 = vsel %vm2164, %v2166, %v2162
    %v2168 = vmul.f32 %v2145, %v2167
    %v2169 = vrcp.pop %v2153
    %v2170 = vmul.f32 %v2153, %v2169
    %v2171 = vsub.f32 1.0, %v2170
    %v2172 = vmul.f32 %v2169, %v2171
    %v2173 = vadd.f32 %v2169, %v2172
    %vm2174 = vweird.f32 %v2153
    %vm2175 = vweird.f32 %v2169
    %vm2176 = vmor %vm2174, %vm2175
    %v2177 = vsel %vm2176, %v2169, %v2173
    %v2178 = vand.u32 2147483647, %v2153
    %vm2179 = vcmp.eq.f32.partialorder %v2178, 8.507059e+37
    %v2180 = vand.u32 %v2153, 2147483648
    %v2181 = vor.u32 1.1754944e-38, %v2180
    %v2182 = vsel %vm2179, %v2181, %v2177
    %v2183 = vmul.f32 %v2147, %v2182
    %2184 = vrot.lane.b32.xlu0 %v1542, 104
    %v2185 = vpop.permute.xlu0 %2184
    %2186 = vrot.lane.b32.xlu0 %v1545, 104
    %v2187 = vpop.permute.xlu0 %2186
    %v2191 = vsel %vm1611, %v2168, 0
    %2193 = vmatpush.msra.mxu0 0.0
    %2194 = vmatpush.msra.mxu0 0.0
    %2195 = vmatpush.msra.mxu0 0.0
    %2196 = vmatpush.msra.mxu0 0.0
    %2197 = vmatpush.msra.mxu0 0.0
    %2198 = vmatpush.msra.mxu0 0.0
    %2199 = vmatpush.msra.mxu0 0.0
    %2200 = vmatpush.msra.mxu0 0.0
    %2201 = vmatpush.msra.mxu0 0.0
    %2202 = vmatpush.msra.mxu0 0.0
    %2203 = vmatpush.msra.mxu0 0.0
    %2204 = vmatpush.msra.mxu0 0.0
    %2205 = vmatpush.msra.mxu0 0.0
    %2206 = vmatpush.msra.mxu0 0.0
    %2207 = vmatpush.msra.mxu0 %v2187
    %2208 = vmatpush.msra.mxu0 %v2185
    %2209 = vmatmul.f32.gmra.mxu0 %v2191
    %v2210 = vpop.f32.mrf.mxu0
    %v2211 = vadd.f32 0.0, %v2210
    %2212 = vdwg.mxu0
    %2213 = vrot.lane.b32.xlu0 %v1548, 104
    %v2214 = vpop.permute.xlu0 %2213
    %2215 = vrot.lane.b32.xlu0 %v1551, 104
    %v2216 = vpop.permute.xlu0 %2215
    %v2220 = vsel %vm1611, %v2183, 0
    %2222 = vmatpush.msra.mxu0 0.0
    %2223 = vmatpush.msra.mxu0 0.0
    %2224 = vmatpush.msra.mxu0 0.0
    %2225 = vmatpush.msra.mxu0 0.0
    %2226 = vmatpush.msra.mxu0 0.0
    %2227 = vmatpush.msra.mxu0 0.0
    %2228 = vmatpush.msra.mxu0 0.0
    %2229 = vmatpush.msra.mxu0 0.0
    %2230 = vmatpush.msra.mxu0 0.0
    %2231 = vmatpush.msra.mxu0 0.0
    %2232 = vmatpush.msra.mxu0 0.0
    %2233 = vmatpush.msra.mxu0 0.0
    %2234 = vmatpush.msra.mxu0 0.0
    %2235 = vmatpush.msra.mxu0 0.0
    %2236 = vmatpush.msra.mxu0 %v2216
    %2237 = vmatpush.msra.mxu0 %v2214
    %2238 = vmatmul.f32.gmra.mxu0 %v2220
    %v2239 = vpop.f32.mrf.mxu0
    %v2240 = vadd.f32 0.0, %v2239
    %2241 = vdwg.mxu0
    %2244 = vrot.lane.b32.xlu0 %v2211, 24
    %v2245 = vpop.permute.xlu0 %2244
    %2246 = vrot.lane.b32.xlu0 %v2240, 24
    %v2247 = vpop.permute.xlu0 %2246
    %2250 = vst.msk [vmem:[#allocation6] sm:$0xff] %vm1310, %v2245
    %2251 = vst.msk [vmem:[#allocation6 + $0x8] sm:$0xff] %vm1310, %v2247
    %s2252 = scalar_lea.vmem %s5, 32
    %v2253 = vld [vmem:[%s2252] sm:$0xff]
    %v2254 = vld [vmem:[%s2252 + $0x8] sm:$0xff]
    %v2255 = vld [vmem:[%s2252 + $0x10] sm:$0xff]
    %v2256 = vld [vmem:[%s2252 + $0x18] sm:$0xff]
    %v2257 = vld [vmem:[#allocation6] sm:$0xff]
    %v2258 = vld [vmem:[#allocation6 + $0x8] sm:$0xff]
    %v2259 = vld [vmem:[#allocation16 + $0x7] sm:$0x1]
    %v2260 = vperm.slane %v2259, 0
    %v2262 = vsel %vm168, %v2257, 0
    %v2265 = vsel %vm168, %v2258, 0
    %2267 = vmatpush.msra.mxu0 0.0
    %2268 = vmatpush.msra.mxu0 0.0
    %2269 = vmatpush.msra.mxu0 0.0
    %2270 = vmatpush.msra.mxu0 0.0
    %2271 = vmatpush.msra.mxu0 0.0
    %2272 = vmatpush.msra.mxu0 0.0
    %2273 = vmatpush.msra.mxu0 0.0
    %2274 = vmatpush.msra.mxu0 0.0
    %2275 = vmatpush.msra.mxu0 0.0
    %2276 = vmatpush.msra.mxu0 0.0
    %2277 = vmatpush.msra.mxu0 0.0
    %2278 = vmatpush.msra.mxu0 0.0
    %2279 = vmatpush.msra.mxu0 %v2256
    %2280 = vmatpush.msra.mxu0 %v2255
    %2281 = vmatpush.msra.mxu0 %v2254
    %2282 = vmatpush.msra.mxu0 %v2253
    %2283 = vmatmul.f32.gmra.mxu0 %v2262
    %v2284 = vpop.f32.mrf.mxu0
    %v2285 = vadd.f32 %v2260, %v2284
    %2286 = vmatmul.f32.gmra.mxu0 %v2265
    %v2287 = vpop.f32.mrf.mxu0
    %v2288 = vadd.f32 %v2260, %v2287
    %2289 = vdwg.mxu0
    %v2290 = vadd.f32 %v1409, %v2285
    %v2291 = vadd.f32 %v1410, %v2288
    %v2292 = vsel %vm168, %v2290, 0.0
    %2293 = vadd.xlane.f32.xlu0 %v2292
    %v2294 = vpop.xlane.xlu0 %2293
    %v2295 = vsel %vm168, %v2291, 0.0
    %2296 = vadd.xlane.f32.xlu0 %v2295
    %v2297 = vpop.xlane.xlu0 %2296
    %v2298 = vmul.f32 %v2294, %v1364
    %v2299 = vmul.f32 %v2297, %v1364
    %v2300 = vsub.f32 %v2290, %v2298
    %v2301 = vsub.f32 %v2291, %v2299
    %v2302 = vmul.f32 %v2300, %v2300
    %v2303 = vmul.f32 %v2301, %v2301
    %v2304 = vsel %vm168, %v2302, 0.0
    %2305 = vadd.xlane.f32.xlu0 %v2304
    %v2306 = vpop.xlane.xlu0 %2305
    %v2307 = vsel %vm168, %v2303, 0.0
    %2308 = vadd.xlane.f32.xlu0 %v2307
    %v2309 = vpop.xlane.xlu0 %2308
    %v2310 = vmul.f32 %v2306, %v1364
    %v2311 = vmul.f32 %v2309, %v1364
    %v2312 = vadd.f32 %v2310, 1e-05
    %v2313 = vadd.f32 %v2311, 1e-05
    %v2314 = vrsqrt.pop %v2312
    %v2315 = vmul.f32 %v2314, %v2312
    %v2316 = vmul.f32 %v2315, %v2314
    %v2317 = vmul.f32 0.5, %v2316
    %v2318 = vsub.f32 1.5, %v2317
    %v2319 = vmul.f32 %v2314, %v2318
    %vm2320 = vweird.f32 %v2312
    %vm2321 = vweird.f32 %v2314
    %vm2322 = vmor %vm2320, %vm2321
    %v2323 = vsel %vm2322, %v2314, %v2319
    %v2324 = vrsqrt.pop %v2313
    %v2325 = vmul.f32 %v2324, %v2313
    %v2326 = vmul.f32 %v2325, %v2324
    %v2327 = vmul.f32 0.5, %v2326
    %v2328 = vsub.f32 1.5, %v2327
    %v2329 = vmul.f32 %v2324, %v2328
    %vm2330 = vweird.f32 %v2313
    %vm2331 = vweird.f32 %v2324
    %vm2332 = vmor %vm2330, %vm2331
    %v2333 = vsel %vm2332, %v2324, %v2329
    %v2334 = vmul.f32 %v2300, %v2323
    %v2335 = vmul.f32 %v2301, %v2333
    %v2336 = vld [vmem:[#allocation16 + $0xb] sm:$0x1]
    %v2337 = vperm.slane %v2336, 0
    %v2338 = vmul.f32 %v2334, %v2337
    %v2339 = vmul.f32 %v2335, %v2337
    %v2340 = vld [vmem:[#allocation16 + $0xc] sm:$0x1]
    %v2341 = vperm.slane %v2340, 0
    %v2342 = vadd.f32 %v2338, %v2341
    %v2343 = vadd.f32 %v2339, %v2341
    %v2344 = vld [vmem:[#allocation15] sm:$0xff]
    %v2345 = vld [vmem:[#allocation15 + $0x8] sm:$0xff]
    %v2346 = vld [vmem:[#allocation15 + $0x10] sm:$0xff]
    %v2347 = vld [vmem:[#allocation15 + $0x18] sm:$0xff]
    %v2348 = vld [vmem:[%s7] sm:$0x1]
    %v2350 = vperm.slane %v2348, 0
    %v2353 = vsel %vm168, %v2342, 0
    %v2356 = vsel %vm168, %v2343, 0
    %2358 = vmatpush.msra.mxu0 0.0
    %2359 = vmatpush.msra.mxu0 0.0
    %2360 = vmatpush.msra.mxu0 0.0
    %2361 = vmatpush.msra.mxu0 0.0
    %2362 = vmatpush.msra.mxu0 0.0
    %2363 = vmatpush.msra.mxu0 0.0
    %2364 = vmatpush.msra.mxu0 0.0
    %2365 = vmatpush.msra.mxu0 0.0
    %2366 = vmatpush.msra.mxu0 0.0
    %2367 = vmatpush.msra.mxu0 0.0
    %2368 = vmatpush.msra.mxu0 0.0
    %2369 = vmatpush.msra.mxu0 0.0
    %2370 = vmatpush.msra.mxu0 %v2347
    %2371 = vmatpush.msra.mxu0 %v2346
    %2372 = vmatpush.msra.mxu0 %v2345
    %2373 = vmatpush.msra.mxu0 %v2344
    %2374 = vmatmul.f32.gmra.mxu0 %v2353
    %v2375 = vpop.f32.mrf.mxu0
    %v2376 = vadd.f32 %v2350, %v2375
    %2377 = vmatmul.f32.gmra.mxu0 %v2356
    %v2378 = vpop.f32.mrf.mxu0
    %v2379 = vadd.f32 %v2350, %v2378
    %2380 = vdwg.mxu0
    %v2381 = vmax.f32 %v2376, 0.0
    %v2382 = vmax.f32 %v2379, 0.0
    %v2383 = vld [vmem:[%s8] sm:$0xff]
    %v2384 = vld [vmem:[%s8 + $0x8] sm:$0xff]
    %v2385 = vld [vmem:[%s8 + $0x10] sm:$0xff]
    %v2386 = vld [vmem:[%s8 + $0x18] sm:$0xff]
    %v2387 = vld [vmem:[%s8 + $0x20] sm:$0xff]
    %v2388 = vld [vmem:[%s8 + $0x28] sm:$0xff]
    %v2389 = vld [vmem:[%s8 + $0x30] sm:$0xff]
    %v2390 = vld [vmem:[%s8 + $0x38] sm:$0xff]
    %v2391 = vld [vmem:[#allocation16 + $0x8] sm:$0x1]
    %v2392 = vperm.slane %v2391, 0
    %vm2393 = vcmask 523264
    %v2395 = vsel %vm2393, %v2381, 0
    %v2398 = vsel %vm2393, %v2382, 0
    %2400 = vmatpush.msra.mxu0 0.0
    %2401 = vmatpush.msra.mxu0 0.0
    %2402 = vmatpush.msra.mxu0 0.0
    %2403 = vmatpush.msra.mxu0 0.0
    %2404 = vmatpush.msra.mxu0 0.0
    %2405 = vmatpush.msra.mxu0 0.0
    %2406 = vmatpush.msra.mxu0 0.0
    %2407 = vmatpush.msra.mxu0 0.0
    %2408 = vmatpush.msra.mxu0 %v2390
    %2409 = vmatpush.msra.mxu0 %v2389
    %2410 = vmatpush.msra.mxu0 %v2388
    %2411 = vmatpush.msra.mxu0 %v2387
    %2412 = vmatpush.msra.mxu0 %v2386
    %2413 = vmatpush.msra.mxu0 %v2385
    %2414 = vmatpush.msra.mxu0 %v2384
    %2415 = vmatpush.msra.mxu0 %v2383
    %2416 = vmatmul.f32.gmra.mxu0 %v2395
    %v2417 = vpop.f32.mrf.mxu0
    %v2418 = vadd.f32 %v2392, %v2417
    %2419 = vmatmul.f32.gmra.mxu0 %v2398
    %v2420 = vpop.f32.mrf.mxu0
    %v2421 = vadd.f32 %v2392, %v2420
    %2422 = vdwg.mxu0
    %v2423 = vadd.f32 %v2342, %v2418
    %v2424 = vadd.f32 %v2343, %v2421
    %v2425 = vsel %vm168, %v2423, 0.0
    %2426 = vadd.xlane.f32.xlu0 %v2425
    %v2427 = vpop.xlane.xlu0 %2426
    %v2428 = vsel %vm168, %v2424, 0.0
    %2429 = vadd.xlane.f32.xlu0 %v2428
    %v2430 = vpop.xlane.xlu0 %2429
    %v2431 = vmul.f32 %v2427, %v1364
    %v2432 = vmul.f32 %v2430, %v1364
    %v2433 = vsub.f32 %v2423, %v2431
    %v2434 = vsub.f32 %v2424, %v2432
    %v2435 = vmul.f32 %v2433, %v2433
    %v2436 = vmul.f32 %v2434, %v2434
    %v2437 = vsel %vm168, %v2435, 0.0
    %2438 = vadd.xlane.f32.xlu0 %v2437
    %v2439 = vpop.xlane.xlu0 %2438
    %v2440 = vsel %vm168, %v2436, 0.0
    %2441 = vadd.xlane.f32.xlu0 %v2440
    %v2442 = vpop.xlane.xlu0 %2441
    %v2443 = vmul.f32 %v2439, %v1364
    %v2444 = vmul.f32 %v2442, %v1364
    %v2445 = vadd.f32 %v2443, 1e-05
    %v2446 = vadd.f32 %v2444, 1e-05
    %v2447 = vrsqrt.pop %v2445
    %v2448 = vmul.f32 %v2447, %v2445
    %v2449 = vmul.f32 %v2448, %v2447
    %v2450 = vmul.f32 0.5, %v2449
    %v2451 = vsub.f32 1.5, %v2450
    %v2452 = vmul.f32 %v2447, %v2451
    %vm2453 = vweird.f32 %v2445
    %vm2454 = vweird.f32 %v2447
    %vm2455 = vmor %vm2453, %vm2454
    %v2456 = vsel %vm2455, %v2447, %v2452
    %v2457 = vrsqrt.pop %v2446
    %v2458 = vmul.f32 %v2457, %v2446
    %v2459 = vmul.f32 %v2458, %v2457
    %v2460 = vmul.f32 0.5, %v2459
    %v2461 = vsub.f32 1.5, %v2460
    %v2462 = vmul.f32 %v2457, %v2461
    %vm2463 = vweird.f32 %v2446
    %vm2464 = vweird.f32 %v2457
    %vm2465 = vmor %vm2463, %vm2464
    %v2466 = vsel %vm2465, %v2457, %v2462
    %v2467 = vmul.f32 %v2433, %v2456
    %v2468 = vmul.f32 %v2434, %v2466
    %v2469 = vld [vmem:[#allocation16 + $0xd] sm:$0x1]
    %v2470 = vperm.slane %v2469, 0
    %v2471 = vmul.f32 %v2467, %v2470
    %v2472 = vmul.f32 %v2468, %v2470
    %v2473 = vld [vmem:[#allocation16 + $0xe] sm:$0x1]
    %v2474 = vperm.slane %v2473, 0
    %v2475 = vadd.f32 %v2471, %v2474
    %v2476 = vadd.f32 %v2472, %v2474
    %v2478 = vrot.slane %v2475, 1
    %v2479 = vrot.slane %v2475, 2
    %v2480 = vrot.slane %v2475, 3
    %v2481 = vrot.slane %v2475, 4
    %v2482 = vrot.slane %v2475, 5
    %v2483 = vrot.slane %v2475, 6
    %v2484 = vrot.slane %v2475, 7
    %vm2492 = vcmask 253952
    %2493 = vst.msk [vmem:[#allocation18] sm:$0x1] %vm2492, %v2475
    %2494 = vst.msk [vmem:[#allocation18 + $0x2] sm:$0x1] %vm2492, %v2478
    %2495 = vst.msk [vmem:[#allocation18 + $0x4] sm:$0x1] %vm2492, %v2479
    %2496 = vst.msk [vmem:[#allocation18 + $0x6] sm:$0x1] %vm2492, %v2480
    %2497 = vst.msk [vmem:[#allocation18 + $0x8] sm:$0x1] %vm2492, %v2481
    %2498 = vst.msk [vmem:[#allocation18 + $0xa] sm:$0x1] %vm2492, %v2482
    %2499 = vst.msk [vmem:[#allocation18 + $0xc] sm:$0x1] %vm2492, %v2483
    %2500 = vst.msk [vmem:[#allocation18 + $0xe] sm:$0x1] %vm2492, %v2484
    %v2502 = vrot.slane %v2476, 1
    %v2503 = vrot.slane %v2476, 2
    %v2504 = vrot.slane %v2476, 3
    %v2505 = vrot.slane %v2476, 4
    %v2506 = vrot.slane %v2476, 5
    %v2507 = vrot.slane %v2476, 6
    %v2508 = vrot.slane %v2476, 7
    %2516 = vst.msk [vmem:[#allocation18 + $0x1] sm:$0x1] %vm2492, %v2476
    %2517 = vst.msk [vmem:[#allocation18 + $0x3] sm:$0x1] %vm2492, %v2502
    %2518 = vst.msk [vmem:[#allocation18 + $0x5] sm:$0x1] %vm2492, %v2503
    %2519 = vst.msk [vmem:[#allocation18 + $0x7] sm:$0x1] %vm2492, %v2504
    %2520 = vst.msk [vmem:[#allocation18 + $0x9] sm:$0x1] %vm2492, %v2505
    %2521 = vst.msk [vmem:[#allocation18 + $0xb] sm:$0x1] %vm2492, %v2506
    %2522 = vst.msk [vmem:[#allocation18 + $0xd] sm:$0x1] %vm2492, %v2507
    %2523 = vst.msk [vmem:[#allocation18 + $0xf] sm:$0x1] %vm2492, %v2508
    // Predicated region
    $region66: #{transformer_decoder_layer.1} parent=1 // pred_check
      _
    $region67: #{transformer_decoder_layer.1} parent=1 // pred_check_branch
      %2525 = sbr.rel (0) target = $region69
    $region68: #{transformer_decoder_layer.1} parent=1 // pred_region
      %2527 = vsyncadd [#allocation9], 0
      %s2528 = sshll.u32 [#allocation18], 4
      %s2529 = int_to_ptr.vmem [resolvable:$true] %s2528
      %s2530 = sshll.u32 %s10, 4
      %s2531 = int_to_ptr.hbm [resolvable:$true] %s2530
      %2536 = dma.vmem_to_hbm [thread:$0]  %s2529, 256, %s2531, [#allocation9], 32, 32, 2
    $region69: #{transformer_decoder_layer.1} parent=1 // pred_fallthru
      _
    // Predicated region
    $region70: #{transformer_decoder_layer.1} parent=1 // pred_check
      _
    $region71: #{transformer_decoder_layer.1} parent=1 // pred_check_branch
      %2538 = sbr.rel (0) target = $region73
    $region72: #{transformer_decoder_layer.1} parent=1 // pred_region
      %2540 = dma.done [#allocation9], 256
    $region73: #{transformer_decoder_layer.1} parent=1 // pred_fallthru
      _
    %2541 = vsyncpa [#allocation8], 1
    %2542 = vsyncpa [#allocation11], 1
    %2543 = vsyncpa [#allocation14], 1
    %2544 = vsyncpa [#allocation17], 1
    %2545 = vsyncpa [#allocation9], 1

</llo_original>
